<compile_context>
chip_gen: v6e
topology: v6e:2x2x1
jax: 0.10.0
libtpu: 0.0.40
codegen_flags: <defaults>
</compile_context>

<pallas_src>
import numpy as np
import jax
import jax.numpy as jnp
from jax.experimental import pallas as pl
from jax.experimental.pallas import tpu as pltpu

# Geometry implied by the module: the fc reshape (-1, 32*4) forces the encoder output to be
# (B, 32, 4), which means the input length is 41:
#   41 --conv(k4,s3)--> 13 --conv(k4,s3)--> 4 --convT(k4,s3)--> 13 --convT(k5,s3)--> 41
L_IN = 41
L1, C1 = 13, 16
L2, C2 = 4, 32
EPS = 1e-5
LANE_PAD = 128            # lane-dense padded width for kernel input/output
SLAB_LANES = 128          # lane width of the packed parameter slab
BF16_BATCH_THRESHOLD = 256  # below this the kernel is latency-bound -> keep exact f32 path


# ----------------------------------------------------------------------------- packing
class _SlabPacker:
    """Packs parameter matrices into one (rows, SLAB_LANES) f32 slab.

    Every entry starts at an 8-aligned sublane offset; inside the kernel it is read back
    with a static window load slab_ref[off:off+rows, :cols]."""

    def __init__(self, lanes):
        self.lanes = lanes
        self.row = 0
        self.entries = []
        self.specs = {}

    def add(self, name, arr):
        arr = np.asarray(arr, np.float32)
        if arr.ndim == 1:
            arr = arr[None, :]
        r, c = arr.shape
        assert c <= self.lanes, (name, arr.shape)
        self.specs[name] = (self.row, r, c)
        self.entries.append((self.row, arr))
        self.row += -(-r // 8) * 8          # advance by rows rounded up to 8

    def finalize(self):
        total = max(8, -(-self.row // 8) * 8)
        slab = np.zeros((total, self.lanes), np.float32)
        for off, arr in self.entries:
            slab[off:off + arr.shape[0], :arr.shape[1]] = arr
        return slab, self.specs


# ------------------------------------------------------------------------------ kernel
def make_ae_kernel(specs, b_true, b_pad, use_bf16):
    """Builds the kernel; slab offsets, batch sizes and dtype policy are static (closure)."""

    def kernel(x_ref, slab_ref, out_ref):
        f32 = jnp.float32

        def get(name):
            off, r, c = specs[name]
            return slab_ref[off:off + r, :c]

        # Weight matmuls: optionally bf16-fed MXU (f32 accumulate) for large batches.
        if use_bf16:
            def mmw(a, w):
                return jnp.dot(a.astype(jnp.bfloat16), w.astype(jnp.bfloat16),
                               preferred_element_type=f32)
        else:
            def mmw(a, w):
                return jnp.dot(a, w, preferred_element_type=f32)

        # Statistics matmuls: always f32.
        def mms(a, w):
            return jnp.dot(a, w, preferred_element_type=f32)

        def leaky(v, alpha):
            return jnp.where(v > 0, v, alpha * v)

        # --- per-invocation constants, hoisted out of the three BatchNorms ---
        # (1, Bpad) row selecting the real batch rows: masked sums ride the MXU K dimension
        # (padded rows get weight 0, so they never touch the BN statistics).
        col = jax.lax.broadcasted_iota(jnp.int32, (1, b_pad), 1)
        mask_row = (col < b_true).astype(f32)

        def selectors(n_pos, C):
            # pool : (n_pos*C, C) 0/1 per-channel pooling selector; bcast = pool.T.
            # Generated from iota (C is a power of two -> '& (C-1)' == '% C'); cheaper than
            # storing ~380 slab rows and DMA'ing them every call.
            r = n_pos * C
            pool = ((jax.lax.broadcasted_iota(jnp.int32, (r, C), 0) & (C - 1))
                    == jax.lax.broadcasted_iota(jnp.int32, (r, C), 1)).astype(f32)
            bcast = ((jax.lax.broadcasted_iota(jnp.int32, (C, r), 1) & (C - 1))
                     == jax.lax.broadcasted_iota(jnp.int32, (C, r), 0)).astype(f32)
            return pool, bcast

        pool16, bcast16 = selectors(L1, C1)   # shared by BN1 and BN3
        pool32, bcast32 = selectors(L2, C2)

        def batchnorm(h, pool, bcast, gamma, beta, n_pos):
            # Training-mode BatchNorm1d: biased per-channel stats over (batch, position).
            # h: (Bpad, n_pos*C), columns ordered pos*C + c.  One-pass statistics
            # (var = E[h^2] - mean^2, clamped at 0) -- validated vs the two-pass f64
            # reference in __main__.
            inv_n = 1.0 / float(b_true * n_pos)
            sum_h = mms(mask_row, h)                  # (1, n_pos*C)  masked batch sum
            sum_h2 = mms(mask_row, h * h)             # (1, n_pos*C)  masked sum of squares
            mean = mms(sum_h, pool) * inv_n           # (1, C)
            ex2 = mms(sum_h2, pool) * inv_n           # (1, C)
            var = jnp.maximum(ex2 - mean * mean, 0.0)
            a = gamma * jax.lax.rsqrt(var + EPS)      # (1, C)
            b = beta - mean * a                       # (1, C)
            a_col = mms(a, bcast)                     # (1, n_pos*C)
            b_col = mms(b, bcast)                     # (1, n_pos*C)
            return h * a_col + b_col                  # single fused mul-add on the big tensor

        x = x_ref[...]                                # (Bpad, 128), lane-padded

        # ---- conv1d encoder (convs as dense matmuls; conv biases before training-mode BN
        #      are exactly absorbed by the mean subtraction, so they were dropped) ----
        h = jnp.concatenate([mmw(x, get("M1a")), mmw(x, get("M1b"))], axis=1)   # (B, 13*16)
        h = batchnorm(h, pool16, bcast16, get("g1"), get("be1"), L1)
        h = mmw(h, get("M2"))                                                   # (B, 4*32)
        h = batchnorm(h, pool32, bcast32, get("g2"), get("be2"), L2)

        # ---- fc encoder ----
        h = leaky(mmw(h, get("Wf1")) + get("bf1"), 0.1)          # (B, 64)
        h = leaky(mmw(h, get("Wf2")) + get("bf2"), 0.1)          # (B, 32)
        h = jnp.maximum(mmw(h, get("Wf3")) + get("bf3"), 0.0)    # (B, 16)

        # ---- fc decoder (fc_encoder's trailing Linear(16,16) has no activation after it,
        #      so it is folded into fc_decoder's Linear(16,32) at pack time) ----
        h = leaky(mmw(h, get("Wfd")) + get("bfd"), 0.01)         # (B, 32)
        h = leaky(mmw(h, get("Wd2")) + get("bd2"), 0.01)         # (B, 64)
        h = jnp.tanh(mmw(h, get("Wd3")) + get("bd3"))            # (B, 128) pos-major

        # ---- conv1d decoder (transposed convs as dense matmuls) ----
        h = jnp.concatenate([mmw(h, get("M3a")), mmw(h, get("M3b"))], axis=1)   # (B, 13*16)
        h = batchnorm(h, pool16, bcast16, get("g3"), get("be3"), L1)
        h = mmw(h, get("M4")) + get("b4")                                        # (B, 128)
        out_ref[...] = jnp.tanh(h)                    # padding cols stay exactly 0

    return kernel


# ------------------------------------------------------------------------------ params
def build_params(rng):
    def rnd(shape, scale=0.2):
        return (scale * rng.standard_normal(shape)).astype(np.float32)

    # --- PyTorch-shaped parameters (deterministic synthetic init) ---
    w_c1, b_c1 = rnd((16, 1, 4)), rnd((16,))
    g1, be1 = np.asarray(1.0 + rnd((16,), 0.1), np.float32), rnd((16,), 0.1)
    w_c2, b_c2 = rnd((32, 16, 4)), rnd((32,))
    g2, be2 = np.asarray(1.0 + rnd((32,), 0.1), np.float32), rnd((32,), 0.1)
    w_f1, b_f1 = rnd((64, 128)), rnd((64,))
    w_f2, b_f2 = rnd((32, 64)), rnd((32,))
    w_f3, b_f3 = rnd((16, 32)), rnd((16,))
    w_f4, b_f4 = rnd((16, 16)), rnd((16,))
    w_d1, b_d1 = rnd((32, 16)), rnd((32,))
    w_d2, b_d2 = rnd((64, 32)), rnd((64,))
    w_d3, b_d3 = rnd((128, 64)), rnd((128,))
    w_t1, b_t1 = rnd((32, 16, 4)), rnd((16,))   # ConvTranspose1d(32,16,4,3): (in, out, k)
    g3, be3 = np.asarray(1.0 + rnd((16,), 0.1), np.float32), rnd((16,), 0.1)
    w_t2, b_t2 = rnd((16, 1, 5)), rnd((1,))     # ConvTranspose1d(16,1,5,3)

    torch_params = dict(
        w_c1=w_c1, b_c1=b_c1, g1=g1, be1=be1, w_c2=w_c2, b_c2=b_c2, g2=g2, be2=be2,
        w_f1=w_f1, b_f1=b_f1, w_f2=w_f2, b_f2=b_f2, w_f3=w_f3, b_f3=b_f3,
        w_f4=w_f4, b_f4=b_f4, w_d1=w_d1, b_d1=b_d1, w_d2=w_d2, b_d2=b_d2,
        w_d3=w_d3, b_d3=b_d3, w_t1=w_t1, b_t1=b_t1, g3=g3, be3=be3, w_t2=w_t2, b_t2=b_t2)

    # --- convert convs into dense matmul matrices (exact, zero-padded) ---
    # Conv biases b_c1 / b_c2 / b_t1 are NOT packed: a per-channel constant added before a
    # training-mode BatchNorm is exactly removed by the mean subtraction.
    M1 = np.zeros((LANE_PAD, L1 * C1), np.float32)      # input lane-padded to 128
    for t in range(L1):
        for k in range(4):
            M1[3 * t + k, t * C1:(t + 1) * C1] = w_c1[:, 0, k]

    M2 = np.zeros((L1 * C1, L2 * C2), np.float32)
    for m in range(L2):
        for k in range(4):
            t = 3 * m + k
            M2[t * C1:(t + 1) * C1, m * C2:(m + 1) * C2] = w_c2[:, :, k].T

    # permutation between kernel layout (pos*32 + c) and torch flatten (c*4 + pos)
    perm = np.array([(j % C2) * L2 + (j // C2) for j in range(L2 * C2)])

    Wf1 = w_f1.T[perm, :]
    Wf2, Wf3 = w_f2.T, w_f3.T
    # fuse fc_encoder Linear(16,16) (no activation) with fc_decoder Linear(16,32)
    Wfd = w_f4.T @ w_d1.T
    bfd = b_f4[None, :] @ w_d1.T + b_d1[None, :]
    Wd2 = w_d2.T
    Wd3 = w_d3.T[:, perm]
    bd3 = b_d3[perm]

    M3 = np.zeros((L2 * C2, L1 * C1), np.float32)
    for l in range(L2):
        for k in range(4):
            t = 3 * l + k
            M3[l * C2:(l + 1) * C2, t * C1:(t + 1) * C1] = w_t1[:, :, k]

    M4 = np.zeros((L1 * C1, LANE_PAD), np.float32)      # output lane-padded to 128
    for t in range(L1):
        for k in range(5):
            M4[t * C1:(t + 1) * C1, 3 * t + k] = w_t2[:, 0, k]
    b4 = np.zeros((1, LANE_PAD), np.float32)
    b4[0, :L_IN] = b_t2[0]

    # --- pack everything into one 128-lane f32 slab (single DMA, ~0.68 MB) ---
    pk = _SlabPacker(SLAB_LANES)
    pk.add("M1a", M1[:, :SLAB_LANES]); pk.add("M1b", M1[:, SLAB_LANES:])
    pk.add("g1", g1); pk.add("be1", be1)
    pk.add("M2", M2)
    pk.add("g2", g2); pk.add("be2", be2)
    pk.add("Wf1", Wf1); pk.add("bf1", b_f1)
    pk.add("Wf2", Wf2); pk.add("bf2", b_f2)
    pk.add("Wf3", Wf3); pk.add("bf3", b_f3)
    pk.add("Wfd", Wfd); pk.add("bfd", bfd)
    pk.add("Wd2", Wd2); pk.add("bd2", b_d2)
    pk.add("Wd3", Wd3); pk.add("bd3", bd3)
    pk.add("M3a", M3[:, :SLAB_LANES]); pk.add("M3b", M3[:, SLAB_LANES:])
    pk.add("g3", g3); pk.add("be3", be3)
    pk.add("M4", M4); pk.add("b4", b4)
    slab, specs = pk.finalize()
    return jnp.asarray(slab, jnp.float32), specs, torch_params


# ----------------------------------------------------------------------------- wrapper
def conv1d_ae_forward(x_ncl, slab, specs):
    B = x_ncl.shape[0]
    assert x_ncl.shape == (B, 1, L_IN)
    b_pad = max(8, -(-B // 8) * 8)          # sublane-aligned batch

    # lane-dense, sublane-aligned input block (extra rows/cols are zero)
    x2d = jnp.zeros((b_pad, LANE_PAD), jnp.float32)
    x2d = x2d.at[:B, :L_IN].set(x_ncl.reshape(B, L_IN).astype(jnp.float32))

    slab_shape = tuple(int(s) for s in slab.shape)
    use_bf16 = B >= BF16_BATCH_THRESHOLD    # latency-bound small batches stay exact f32
    kernel = make_ae_kernel(specs, B, b_pad, use_bf16)

    # Explicit VMEM budget: double-buffered slab + I/O plus an allowance for the live
    # (B, ~208) f32 intermediates of the fully-unrolled single block.
    slab_bytes = slab_shape[0] * slab_shape[1] * 4
    io_bytes = b_pad * LANE_PAD * 4
    est = 2 * slab_bytes + 4 * io_bytes + 16 * b_pad * 256 * 4 + (4 << 20)
    vmem_limit = int(min(48 << 20, max(est, 8 << 20)))

    out = pl.pallas_call(
        kernel,
        out_shape=jax.ShapeDtypeStruct((b_pad, LANE_PAD), jnp.float32),
        grid=(1,),
        in_specs=[pl.BlockSpec((b_pad, LANE_PAD), lambda i: (0, 0)),
                  pl.BlockSpec(slab_shape, lambda i: (0, 0))],
        out_specs=pl.BlockSpec((b_pad, LANE_PAD), lambda i: (0, 0)),
        compiler_params=pltpu.CompilerParams(dimension_semantics=("arbitrary",),
                                             vmem_limit_bytes=vmem_limit),
    )(x2d, slab)

    return out[:B, :L_IN].reshape(B, 1, L_IN)


# ----------------------------------------------- independent float64 numpy reference
def reference_forward(x_ncl, P):
    x = np.asarray(x_ncl, np.float64).reshape(-1, 1, L_IN)
    B = x.shape[0]

    def conv1d(h, w, b, stride):
        w = np.asarray(w, np.float64); b = np.asarray(b, np.float64)
        Cout, _, k = w.shape
        Lout = (h.shape[2] - k) // stride + 1
        out = np.zeros((B, Cout, Lout))
        for t in range(Lout):
            out[:, :, t] = np.einsum("bik,oik->bo", h[:, :, t * stride:t * stride + k], w) + b
        return out

    def convT1d(h, w, b, stride):
        w = np.asarray(w, np.float64); b = np.asarray(b, np.float64)
        _, Cout, k = w.shape
        Lout = (h.shape[2] - 1) * stride + k
        out = np.zeros((B, Cout, Lout))
        for t in range(h.shape[2]):
            out[:, :, t * stride:t * stride + k] += np.einsum("bi,iok->bok", h[:, :, t], w)
        return out + b[None, :, None]

    def bn(h, g, bt):
        mean = h.mean(axis=(0, 2), keepdims=True)
        var = h.var(axis=(0, 2), keepdims=True)     # biased, training-mode
        return (np.asarray(g, np.float64)[None, :, None] * (h - mean) / np.sqrt(var + EPS)
                + np.asarray(bt, np.float64)[None, :, None])

    def leaky(v, a):
        return np.where(v > 0, v, a * v)

    h = bn(conv1d(x, P["w_c1"], P["b_c1"], 3), P["g1"], P["be1"])
    h = bn(conv1d(h, P["w_c2"], P["b_c2"], 3), P["g2"], P["be2"])
    h = h.reshape(B, -1)                                    # torch .view(-1, 32*4)
    h = leaky(h @ np.float64(P["w_f1"]).T + P["b_f1"], 0.1)
    h = leaky(h @ np.float64(P["w_f2"]).T + P["b_f2"], 0.1)
    h = np.maximum(h @ np.float64(P["w_f3"]).T + P["b_f3"], 0.0)
    h = h @ np.float64(P["w_f4"]).T + P["b_f4"]
    h = leaky(h @ np.float64(P["w_d1"]).T + P["b_d1"], 0.01)
    h = leaky(h @ np.float64(P["w_d2"]).T + P["b_d2"], 0.01)
    h = np.tanh(h @ np.float64(P["w_d3"]).T + P["b_d3"])
    h = h.reshape(B, 32, 4)                                 # torch .view(-1, 32, 4)
    h = bn(convT1d(h, P["w_t1"], P["b_t1"], 3), P["g3"], P["be3"])
    h = np.tanh(convT1d(h, P["w_t2"], P["b_t2"], 3))
    return h                                                # (B, 1, 41)


if __name__ == "__main__":
    B = 4
    key = jax.random.PRNGKey(0)
    x = jax.random.normal(key, (B, 1, L_IN), dtype=jnp.float32)   # NCL like PyTorch
    slab, specs, torch_params = build_params(np.random.default_rng(0))

    y = conv1d_ae_forward(x, slab, specs)
    jax.block_until_ready(y)

    assert y.shape == (B, 1, L_IN) and y.dtype == jnp.float32
    y_np = np.asarray(y)
    assert np.all(np.isfinite(y_np))
    y_ref = reference_forward(np.asarray(x), torch_params)
    max_err = float(np.max(np.abs(y_np - y_ref)))
    assert max_err < 2e-3, max_err
    print("KERNEL_OK")
</pallas_src>

<mosaic_0001>
module attributes {stable_mosaic.version = 11 : i64} {
  func.func @kernel(%arg0: i32, %arg1: memref<8x128xf32, #tpu.memory_space<vmem>>, %arg2: memref<1368x128xf32, #tpu.memory_space<vmem>>, %arg3: memref<8x128xf32, #tpu.memory_space<vmem>>) attributes {dimension_semantics = [#tpu.dimension_semantics<arbitrary>], iteration_bounds = array<i64: 1>, scalar_prefetch = 0 : i64, scratch_operands = 0 : i64, tpu.core_type = #tpu.core_type<tc>, window_params = [{pipeline_mode = #tpu.pipeline_mode<synchronous>, transform_indices = @transform_0, window_bounds = array<i64: 8, 128>}, {pipeline_mode = #tpu.pipeline_mode<synchronous>, transform_indices = @transform_1, window_bounds = array<i64: 1368, 128>}, {pipeline_mode = #tpu.pipeline_mode<synchronous>, transform_indices = @transform_2, window_bounds = array<i64: 8, 128>}]} {
    %0 = tpu.iota {dimensions = array<i32: 1>} : vector<1x8xi32>
    %c4_i32 = arith.constant 4 : i32
    %1 = vector.broadcast %c4_i32 : i32 to vector<1x8xi32>
    %2 = arith.cmpi slt, %0, %1 : vector<1x8xi32>
    %3 = arith.extui %2 : vector<1x8xi1> to vector<1x8xi32>
    %4 = arith.sitofp %3 : vector<1x8xi32> to vector<1x8xf32>
    %5 = tpu.iota {dimensions = array<i32: 0>} : vector<208x16xi32>
    %c15_i32 = arith.constant 15 : i32
    %6 = vector.broadcast %c15_i32 : i32 to vector<208x16xi32>
    %7 = arith.andi %5, %6 : vector<208x16xi32>
    %8 = tpu.iota {dimensions = array<i32: 1>} : vector<208x16xi32>
    %9 = arith.cmpi eq, %7, %8 : vector<208x16xi32>
    %10 = arith.extui %9 : vector<208x16xi1> to vector<208x16xi32>
    %11 = arith.sitofp %10 : vector<208x16xi32> to vector<208x16xf32>
    %12 = tpu.iota {dimensions = array<i32: 1>} : vector<16x208xi32>
    %c15_i32_0 = arith.constant 15 : i32
    %13 = vector.broadcast %c15_i32_0 : i32 to vector<16x208xi32>
    %14 = arith.andi %12, %13 : vector<16x208xi32>
    %15 = tpu.iota {dimensions = array<i32: 0>} : vector<16x208xi32>
    %16 = arith.cmpi eq, %14, %15 : vector<16x208xi32>
    %17 = arith.extui %16 : vector<16x208xi1> to vector<16x208xi32>
    %18 = arith.sitofp %17 : vector<16x208xi32> to vector<16x208xf32>
    %19 = tpu.iota {dimensions = array<i32: 0>} : vector<128x32xi32>
    %c31_i32 = arith.constant 31 : i32
    %20 = vector.broadcast %c31_i32 : i32 to vector<128x32xi32>
    %21 = arith.andi %19, %20 : vector<128x32xi32>
    %22 = tpu.iota {dimensions = array<i32: 1>} : vector<128x32xi32>
    %23 = arith.cmpi eq, %21, %22 : vector<128x32xi32>
    %24 = arith.extui %23 : vector<128x32xi1> to vector<128x32xi32>
    %25 = arith.sitofp %24 : vector<128x32xi32> to vector<128x32xf32>
    %26 = tpu.iota {dimensions = array<i32: 1>} : vector<32x128xi32>
    %c31_i32_1 = arith.constant 31 : i32
    %27 = vector.broadcast %c31_i32_1 : i32 to vector<32x128xi32>
    %28 = arith.andi %26, %27 : vector<32x128xi32>
    %29 = tpu.iota {dimensions = array<i32: 0>} : vector<32x128xi32>
    %30 = arith.cmpi eq, %28, %29 : vector<32x128xi32>
    %31 = arith.extui %30 : vector<32x128xi1> to vector<32x128xi32>
    %32 = arith.sitofp %31 : vector<32x128xi32> to vector<32x128xf32>
    %c0 = arith.constant 0 : index
    %c0_2 = arith.constant 0 : index
    %33 = vector.load %arg1[%c0, %c0_2] : memref<8x128xf32, #tpu.memory_space<vmem>>, vector<8x128xf32>
    %c0_3 = arith.constant 0 : index
    %c0_4 = arith.constant 0 : index
    %34 = vector.load %arg2[%c0_3, %c0_4] : memref<1368x128xf32, #tpu.memory_space<vmem>>, vector<128x128xf32>
    %cst = arith.constant dense<0.000000e+00> : vector<8x128xf32>
    %35 = tpu.matmul %33, %34, %cst {dimension_numbers = #tpu.dot_dimension_numbers<[1], [0], [0], [1], [0, 0, 1, 1], [], []>} : vector<8x128xf32>, vector<128x128xf32>, vector<8x128xf32> -> vector<8x128xf32>
    %c128 = arith.constant 128 : index
    %c0_5 = arith.constant 0 : index
    %36 = vector.load %arg2[%c128, %c0_5] : memref<1368x128xf32, #tpu.memory_space<vmem>>, vector<128x80xf32>
    %cst_6 = arith.constant dense<0.000000e+00> : vector<8x80xf32>
    %37 = tpu.matmul %33, %36, %cst_6 {dimension_numbers = #tpu.dot_dimension_numbers<[1], [0], [0], [1], [0, 0, 1, 1], [], []>} : vector<8x128xf32>, vector<128x80xf32>, vector<8x80xf32> -> vector<8x80xf32>
    %38 = tpu.concatenate %35, %37 in 1 : vector<8x128xf32>, vector<8x80xf32> -> vector<8x208xf32>
    %c256 = arith.constant 256 : index
    %c0_7 = arith.constant 0 : index
    %39 = vector.load %arg2[%c256, %c0_7] : memref<1368x128xf32, #tpu.memory_space<vmem>>, vector<1x16xf32>
    %c264 = arith.constant 264 : index
    %c0_8 = arith.constant 0 : index
    %40 = vector.load %arg2[%c264, %c0_8] : memref<1368x128xf32, #tpu.memory_space<vmem>>, vector<1x16xf32>
    %cst_9 = arith.constant dense<0.000000e+00> : vector<1x208xf32>
    %41 = tpu.matmul %4, %38, %cst_9 {dimension_numbers = #tpu.dot_dimension_numbers<[1], [0], [0], [1], [0, 0, 1, 1], [], []>} : vector<1x8xf32>, vector<8x208xf32>, vector<1x208xf32> -> vector<1x208xf32>
    %42 = arith.mulf %38, %38 : vector<8x208xf32>
    %cst_10 = arith.constant dense<0.000000e+00> : vector<1x208xf32>
    %43 = tpu.matmul %4, %42, %cst_10 {dimension_numbers = #tpu.dot_dimension_numbers<[1], [0], [0], [1], [0, 0, 1, 1], [], []>} : vector<1x8xf32>, vector<8x208xf32>, vector<1x208xf32> -> vector<1x208xf32>
    %cst_11 = arith.constant dense<0.000000e+00> : vector<1x16xf32>
    %44 = tpu.matmul %41, %11, %cst_11 {dimension_numbers = #tpu.dot_dimension_numbers<[1], [0], [0], [1], [0, 0, 1, 1], [], []>} : vector<1x208xf32>, vector<208x16xf32>, vector<1x16xf32> -> vector<1x16xf32>
    %cst_12 = arith.constant 0.0192307699 : f32
    %45 = vector.broadcast %cst_12 : f32 to vector<1x16xf32>
    %46 = arith.mulf %44, %45 : vector<1x16xf32>
    %cst_13 = arith.constant dense<0.000000e+00> : vector<1x16xf32>
    %47 = tpu.matmul %43, %11, %cst_13 {dimension_numbers = #tpu.dot_dimension_numbers<[1], [0], [0], [1], [0, 0, 1, 1], [], []>} : vector<1x208xf32>, vector<208x16xf32>, vector<1x16xf32> -> vector<1x16xf32>
    %cst_14 = arith.constant 0.0192307699 : f32
    %48 = vector.broadcast %cst_14 : f32 to vector<1x16xf32>
    %49 = arith.mulf %47, %48 : vector<1x16xf32>
    %50 = arith.mulf %46, %46 : vector<1x16xf32>
    %51 = arith.subf %49, %50 : vector<1x16xf32>
    %cst_15 = arith.constant 0.000000e+00 : f32
    %52 = vector.broadcast %cst_15 : f32 to vector<1x16xf32>
    %53 = arith.maximumf %51, %52 : vector<1x16xf32>
    %cst_16 = arith.constant 9.99999974E-6 : f32
    %54 = vector.broadcast %cst_16 : f32 to vector<1x16xf32>
    %55 = arith.addf %53, %54 : vector<1x16xf32>
    %56 = math.rsqrt %55 : vector<1x16xf32>
    %57 = arith.mulf %39, %56 : vector<1x16xf32>
    %58 = arith.mulf %46, %57 : vector<1x16xf32>
    %59 = arith.subf %40, %58 : vector<1x16xf32>
    %cst_17 = arith.constant dense<0.000000e+00> : vector<1x208xf32>
    %60 = tpu.matmul %57, %18, %cst_17 {dimension_numbers = #tpu.dot_dimension_numbers<[1], [0], [0], [1], [0, 0, 1, 1], [], []>} : vector<1x16xf32>, vector<16x208xf32>, vector<1x208xf32> -> vector<1x208xf32>
    %cst_18 = arith.constant dense<0.000000e+00> : vector<1x208xf32>
    %61 = tpu.matmul %59, %18, %cst_18 {dimension_numbers = #tpu.dot_dimension_numbers<[1], [0], [0], [1], [0, 0, 1, 1], [], []>} : vector<1x16xf32>, vector<16x208xf32>, vector<1x208xf32> -> vector<1x208xf32>
    %62 = vector.broadcast %60 : vector<1x208xf32> to vector<8x208xf32>
    %63 = arith.mulf %38, %62 : vector<8x208xf32>
    %64 = vector.broadcast %61 : vector<1x208xf32> to vector<8x208xf32>
    %65 = arith.addf %63, %64 : vector<8x208xf32>
    %c272 = arith.constant 272 : index
    %c0_19 = arith.constant 0 : index
    %66 = vector.load %arg2[%c272, %c0_19] : memref<1368x128xf32, #tpu.memory_space<vmem>>, vector<208x128xf32>
    %cst_20 = arith.constant dense<0.000000e+00> : vector<8x128xf32>
    %67 = tpu.matmul %65, %66, %cst_20 {dimension_numbers = #tpu.dot_dimension_numbers<[1], [0], [0], [1], [0, 0, 1, 1], [], []>} : vector<8x208xf32>, vector<208x128xf32>, vector<8x128xf32> -> vector<8x128xf32>
    %c480 = arith.constant 480 : index
    %c0_21 = arith.constant 0 : index
    %68 = vector.load %arg2[%c480, %c0_21] : memref<1368x128xf32, #tpu.memory_space<vmem>>, vector<1x32xf32>
    %c488 = arith.constant 488 : index
    %c0_22 = arith.constant 0 : index
    %69 = vector.load %arg2[%c488, %c0_22] : memref<1368x128xf32, #tpu.memory_space<vmem>>, vector<1x32xf32>
    %cst_23 = arith.constant dense<0.000000e+00> : vector<1x128xf32>
    %70 = tpu.matmul %4, %67, %cst_23 {dimension_numbers = #tpu.dot_dimension_numbers<[1], [0], [0], [1], [0, 0, 1, 1], [], []>} : vector<1x8xf32>, vector<8x128xf32>, vector<1x128xf32> -> vector<1x128xf32>
    %71 = arith.mulf %67, %67 : vector<8x128xf32>
    %cst_24 = arith.constant dense<0.000000e+00> : vector<1x128xf32>
    %72 = tpu.matmul %4, %71, %cst_24 {dimension_numbers = #tpu.dot_dimension_numbers<[1], [0], [0], [1], [0, 0, 1, 1], [], []>} : vector<1x8xf32>, vector<8x128xf32>, vector<1x128xf32> -> vector<1x128xf32>
    %cst_25 = arith.constant dense<0.000000e+00> : vector<1x32xf32>
    %73 = tpu.matmul %70, %25, %cst_25 {dimension_numbers = #tpu.dot_dimension_numbers<[1], [0], [0], [1], [0, 0, 1, 1], [], []>} : vector<1x128xf32>, vector<128x32xf32>, vector<1x32xf32> -> vector<1x32xf32>
    %cst_26 = arith.constant 6.250000e-02 : f32
    %74 = vector.broadcast %cst_26 : f32 to vector<1x32xf32>
    %75 = arith.mulf %73, %74 : vector<1x32xf32>
    %cst_27 = arith.constant dense<0.000000e+00> : vector<1x32xf32>
    %76 = tpu.matmul %72, %25, %cst_27 {dimension_numbers = #tpu.dot_dimension_numbers<[1], [0], [0], [1], [0, 0, 1, 1], [], []>} : vector<1x128xf32>, vector<128x32xf32>, vector<1x32xf32> -> vector<1x32xf32>
    %cst_28 = arith.constant 6.250000e-02 : f32
    %77 = vector.broadcast %cst_28 : f32 to vector<1x32xf32>
    %78 = arith.mulf %76, %77 : vector<1x32xf32>
    %79 = arith.mulf %75, %75 : vector<1x32xf32>
    %80 = arith.subf %78, %79 : vector<1x32xf32>
    %cst_29 = arith.constant 0.000000e+00 : f32
    %81 = vector.broadcast %cst_29 : f32 to vector<1x32xf32>
    %82 = arith.maximumf %80, %81 : vector<1x32xf32>
    %cst_30 = arith.constant 9.99999974E-6 : f32
    %83 = vector.broadcast %cst_30 : f32 to vector<1x32xf32>
    %84 = arith.addf %82, %83 : vector<1x32xf32>
    %85 = math.rsqrt %84 : vector<1x32xf32>
    %86 = arith.mulf %68, %85 : vector<1x32xf32>
    %87 = arith.mulf %75, %86 : vector<1x32xf32>
    %88 = arith.subf %69, %87 : vector<1x32xf32>
    %cst_31 = arith.constant dense<0.000000e+00> : vector<1x128xf32>
    %89 = tpu.matmul %86, %32, %cst_31 {dimension_numbers = #tpu.dot_dimension_numbers<[1], [0], [0], [1], [0, 0, 1, 1], [], []>} : vector<1x32xf32>, vector<32x128xf32>, vector<1x128xf32> -> vector<1x128xf32>
    %cst_32 = arith.constant dense<0.000000e+00> : vector<1x128xf32>
    %90 = tpu.matmul %88, %32, %cst_32 {dimension_numbers = #tpu.dot_dimension_numbers<[1], [0], [0], [1], [0, 0, 1, 1], [], []>} : vector<1x32xf32>, vector<32x128xf32>, vector<1x128xf32> -> vector<1x128xf32>
    %91 = vector.broadcast %89 : vector<1x128xf32> to vector<8x128xf32>
    %92 = arith.mulf %67, %91 : vector<8x128xf32>
    %93 = vector.broadcast %90 : vector<1x128xf32> to vector<8x128xf32>
    %94 = arith.addf %92, %93 : vector<8x128xf32>
    %c496 = arith.constant 496 : index
    %c0_33 = arith.constant 0 : index
    %95 = vector.load %arg2[%c496, %c0_33] : memref<1368x128xf32, #tpu.memory_space<vmem>>, vector<128x64xf32>
    %cst_34 = arith.constant dense<0.000000e+00> : vector<8x64xf32>
    %96 = tpu.matmul %94, %95, %cst_34 {dimension_numbers = #tpu.dot_dimension_numbers<[1], [0], [0], [1], [0, 0, 1, 1], [], []>} : vector<8x128xf32>, vector<128x64xf32>, vector<8x64xf32> -> vector<8x64xf32>
    %c624 = arith.constant 624 : index
    %c0_35 = arith.constant 0 : index
    %97 = vector.load %arg2[%c624, %c0_35] : memref<1368x128xf32, #tpu.memory_space<vmem>>, vector<1x64xf32>
    %98 = vector.broadcast %97 : vector<1x64xf32> to vector<8x64xf32>
    %99 = arith.addf %96, %98 : vector<8x64xf32>
    %cst_36 = arith.constant 0.000000e+00 : f32
    %100 = vector.broadcast %cst_36 : f32 to vector<8x64xf32>
    %101 = arith.cmpf ogt, %99, %100 : vector<8x64xf32>
    %cst_37 = arith.constant 1.000000e-01 : f32
    %102 = vector.broadcast %cst_37 : f32 to vector<8x64xf32>
    %103 = arith.mulf %102, %99 : vector<8x64xf32>
    %104 = arith.select %101, %99, %103 : vector<8x64xi1>, vector<8x64xf32>
    %c632 = arith.constant 632 : index
    %c0_38 = arith.constant 0 : index
    %105 = vector.load %arg2[%c632, %c0_38] : memref<1368x128xf32, #tpu.memory_space<vmem>>, vector<64x32xf32>
    %cst_39 = arith.constant dense<0.000000e+00> : vector<8x32xf32>
    %106 = tpu.matmul %104, %105, %cst_39 {dimension_numbers = #tpu.dot_dimension_numbers<[1], [0], [0], [1], [0, 0, 1, 1], [], []>} : vector<8x64xf32>, vector<64x32xf32>, vector<8x32xf32> -> vector<8x32xf32>
    %c696 = arith.constant 696 : index
    %c0_40 = arith.constant 0 : index
    %107 = vector.load %arg2[%c696, %c0_40] : memref<1368x128xf32, #tpu.memory_space<vmem>>, vector<1x32xf32>
    %108 = vector.broadcast %107 : vector<1x32xf32> to vector<8x32xf32>
    %109 = arith.addf %106, %108 : vector<8x32xf32>
    %cst_41 = arith.constant 0.000000e+00 : f32
    %110 = vector.broadcast %cst_41 : f32 to vector<8x32xf32>
    %111 = arith.cmpf ogt, %109, %110 : vector<8x32xf32>
    %cst_42 = arith.constant 1.000000e-01 : f32
    %112 = vector.broadcast %cst_42 : f32 to vector<8x32xf32>
    %113 = arith.mulf %112, %109 : vector<8x32xf32>
    %114 = arith.select %111, %109, %113 : vector<8x32xi1>, vector<8x32xf32>
    %c704 = arith.constant 704 : index
    %c0_43 = arith.constant 0 : index
    %115 = vector.load %arg2[%c704, %c0_43] : memref<1368x128xf32, #tpu.memory_space<vmem>>, vector<32x16xf32>
    %cst_44 = arith.constant dense<0.000000e+00> : vector<8x16xf32>
    %116 = tpu.matmul %114, %115, %cst_44 {dimension_numbers = #tpu.dot_dimension_numbers<[1], [0], [0], [1], [0, 0, 1, 1], [], []>} : vector<8x32xf32>, vector<32x16xf32>, vector<8x16xf32> -> vector<8x16xf32>
    %c736 = arith.constant 736 : index
    %c0_45 = arith.constant 0 : index
    %117 = vector.load %arg2[%c736, %c0_45] : memref<1368x128xf32, #tpu.memory_space<vmem>>, vector<1x16xf32>
    %118 = vector.broadcast %117 : vector<1x16xf32> to vector<8x16xf32>
    %119 = arith.addf %116, %118 : vector<8x16xf32>
    %cst_46 = arith.constant 0.000000e+00 : f32
    %120 = vector.broadcast %cst_46 : f32 to vector<8x16xf32>
    %121 = arith.maximumf %119, %120 : vector<8x16xf32>
    %c744 = arith.constant 744 : index
    %c0_47 = arith.constant 0 : index
    %122 = vector.load %arg2[%c744, %c0_47] : memref<1368x128xf32, #tpu.memory_space<vmem>>, vector<16x32xf32>
    %cst_48 = arith.constant dense<0.000000e+00> : vector<8x32xf32>
    %123 = tpu.matmul %121, %122, %cst_48 {dimension_numbers = #tpu.dot_dimension_numbers<[1], [0], [0], [1], [0, 0, 1, 1], [], []>} : vector<8x16xf32>, vector<16x32xf32>, vector<8x32xf32> -> vector<8x32xf32>
    %c760 = arith.constant 760 : index
    %c0_49 = arith.constant 0 : index
    %124 = vector.load %arg2[%c760, %c0_49] : memref<1368x128xf32, #tpu.memory_space<vmem>>, vector<1x32xf32>
    %125 = vector.broadcast %124 : vector<1x32xf32> to vector<8x32xf32>
    %126 = arith.addf %123, %125 : vector<8x32xf32>
    %cst_50 = arith.constant 0.000000e+00 : f32
    %127 = vector.broadcast %cst_50 : f32 to vector<8x32xf32>
    %128 = arith.cmpf ogt, %126, %127 : vector<8x32xf32>
    %cst_51 = arith.constant 0.00999999977 : f32
    %129 = vector.broadcast %cst_51 : f32 to vector<8x32xf32>
    %130 = arith.mulf %129, %126 : vector<8x32xf32>
    %131 = arith.select %128, %126, %130 : vector<8x32xi1>, vector<8x32xf32>
    %c768 = arith.constant 768 : index
    %c0_52 = arith.constant 0 : index
    %132 = vector.load %arg2[%c768, %c0_52] : memref<1368x128xf32, #tpu.memory_space<vmem>>, vector<32x64xf32>
    %cst_53 = arith.constant dense<0.000000e+00> : vector<8x64xf32>
    %133 = tpu.matmul %131, %132, %cst_53 {dimension_numbers = #tpu.dot_dimension_numbers<[1], [0], [0], [1], [0, 0, 1, 1], [], []>} : vector<8x32xf32>, vector<32x64xf32>, vector<8x64xf32> -> vector<8x64xf32>
    %c800 = arith.constant 800 : index
    %c0_54 = arith.constant 0 : index
    %134 = vector.load %arg2[%c800, %c0_54] : memref<1368x128xf32, #tpu.memory_space<vmem>>, vector<1x64xf32>
    %135 = vector.broadcast %134 : vector<1x64xf32> to vector<8x64xf32>
    %136 = arith.addf %133, %135 : vector<8x64xf32>
    %cst_55 = arith.constant 0.000000e+00 : f32
    %137 = vector.broadcast %cst_55 : f32 to vector<8x64xf32>
    %138 = arith.cmpf ogt, %136, %137 : vector<8x64xf32>
    %cst_56 = arith.constant 0.00999999977 : f32
    %139 = vector.broadcast %cst_56 : f32 to vector<8x64xf32>
    %140 = arith.mulf %139, %136 : vector<8x64xf32>
    %141 = arith.select %138, %136, %140 : vector<8x64xi1>, vector<8x64xf32>
    %c808 = arith.constant 808 : index
    %c0_57 = arith.constant 0 : index
    %142 = vector.load %arg2[%c808, %c0_57] : memref<1368x128xf32, #tpu.memory_space<vmem>>, vector<64x128xf32>
    %cst_58 = arith.constant dense<0.000000e+00> : vector<8x128xf32>
    %143 = tpu.matmul %141, %142, %cst_58 {dimension_numbers = #tpu.dot_dimension_numbers<[1], [0], [0], [1], [0, 0, 1, 1], [], []>} : vector<8x64xf32>, vector<64x128xf32>, vector<8x128xf32> -> vector<8x128xf32>
    %c872 = arith.constant 872 : index
    %c0_59 = arith.constant 0 : index
    %144 = vector.load %arg2[%c872, %c0_59] : memref<1368x128xf32, #tpu.memory_space<vmem>>, vector<1x128xf32>
    %145 = vector.broadcast %144 : vector<1x128xf32> to vector<8x128xf32>
    %146 = arith.addf %143, %145 : vector<8x128xf32>
    %147 = math.tanh %146 : vector<8x128xf32>
    %c880 = arith.constant 880 : index
    %c0_60 = arith.constant 0 : index
    %148 = vector.load %arg2[%c880, %c0_60] : memref<1368x128xf32, #tpu.memory_space<vmem>>, vector<128x128xf32>
    %cst_61 = arith.constant dense<0.000000e+00> : vector<8x128xf32>
    %149 = tpu.matmul %147, %148, %cst_61 {dimension_numbers = #tpu.dot_dimension_numbers<[1], [0], [0], [1], [0, 0, 1, 1], [], []>} : vector<8x128xf32>, vector<128x128xf32>, vector<8x128xf32> -> vector<8x128xf32>
    %c1008 = arith.constant 1008 : index
    %c0_62 = arith.constant 0 : index
    %150 = vector.load %arg2[%c1008, %c0_62] : memref<1368x128xf32, #tpu.memory_space<vmem>>, vector<128x80xf32>
    %cst_63 = arith.constant dense<0.000000e+00> : vector<8x80xf32>
    %151 = tpu.matmul %147, %150, %cst_63 {dimension_numbers = #tpu.dot_dimension_numbers<[1], [0], [0], [1], [0, 0, 1, 1], [], []>} : vector<8x128xf32>, vector<128x80xf32>, vector<8x80xf32> -> vector<8x80xf32>
    %152 = tpu.concatenate %149, %151 in 1 : vector<8x128xf32>, vector<8x80xf32> -> vector<8x208xf32>
    %c1136 = arith.constant 1136 : index
    %c0_64 = arith.constant 0 : index
    %153 = vector.load %arg2[%c1136, %c0_64] : memref<1368x128xf32, #tpu.memory_space<vmem>>, vector<1x16xf32>
    %c1144 = arith.constant 1144 : index
    %c0_65 = arith.constant 0 : index
    %154 = vector.load %arg2[%c1144, %c0_65] : memref<1368x128xf32, #tpu.memory_space<vmem>>, vector<1x16xf32>
    %cst_66 = arith.constant dense<0.000000e+00> : vector<1x208xf32>
    %155 = tpu.matmul %4, %152, %cst_66 {dimension_numbers = #tpu.dot_dimension_numbers<[1], [0], [0], [1], [0, 0, 1, 1], [], []>} : vector<1x8xf32>, vector<8x208xf32>, vector<1x208xf32> -> vector<1x208xf32>
    %156 = arith.mulf %152, %152 : vector<8x208xf32>
    %cst_67 = arith.constant dense<0.000000e+00> : vector<1x208xf32>
    %157 = tpu.matmul %4, %156, %cst_67 {dimension_numbers = #tpu.dot_dimension_numbers<[1], [0], [0], [1], [0, 0, 1, 1], [], []>} : vector<1x8xf32>, vector<8x208xf32>, vector<1x208xf32> -> vector<1x208xf32>
    %cst_68 = arith.constant dense<0.000000e+00> : vector<1x16xf32>
    %158 = tpu.matmul %155, %11, %cst_68 {dimension_numbers = #tpu.dot_dimension_numbers<[1], [0], [0], [1], [0, 0, 1, 1], [], []>} : vector<1x208xf32>, vector<208x16xf32>, vector<1x16xf32> -> vector<1x16xf32>
    %cst_69 = arith.constant 0.0192307699 : f32
    %159 = vector.broadcast %cst_69 : f32 to vector<1x16xf32>
    %160 = arith.mulf %158, %159 : vector<1x16xf32>
    %cst_70 = arith.constant dense<0.000000e+00> : vector<1x16xf32>
    %161 = tpu.matmul %157, %11, %cst_70 {dimension_numbers = #tpu.dot_dimension_numbers<[1], [0], [0], [1], [0, 0, 1, 1], [], []>} : vector<1x208xf32>, vector<208x16xf32>, vector<1x16xf32> -> vector<1x16xf32>
    %cst_71 = arith.constant 0.0192307699 : f32
    %162 = vector.broadcast %cst_71 : f32 to vector<1x16xf32>
    %163 = arith.mulf %161, %162 : vector<1x16xf32>
    %164 = arith.mulf %160, %160 : vector<1x16xf32>
    %165 = arith.subf %163, %164 : vector<1x16xf32>
    %cst_72 = arith.constant 0.000000e+00 : f32
    %166 = vector.broadcast %cst_72 : f32 to vector<1x16xf32>
    %167 = arith.maximumf %165, %166 : vector<1x16xf32>
    %cst_73 = arith.constant 9.99999974E-6 : f32
    %168 = vector.broadcast %cst_73 : f32 to vector<1x16xf32>
    %169 = arith.addf %167, %168 : vector<1x16xf32>
    %170 = math.rsqrt %169 : vector<1x16xf32>
    %171 = arith.mulf %153, %170 : vector<1x16xf32>
    %172 = arith.mulf %160, %171 : vector<1x16xf32>
    %173 = arith.subf %154, %172 : vector<1x16xf32>
    %cst_74 = arith.constant dense<0.000000e+00> : vector<1x208xf32>
    %174 = tpu.matmul %171, %18, %cst_74 {dimension_numbers = #tpu.dot_dimension_numbers<[1], [0], [0], [1], [0, 0, 1, 1], [], []>} : vector<1x16xf32>, vector<16x208xf32>, vector<1x208xf32> -> vector<1x208xf32>
    %cst_75 = arith.constant dense<0.000000e+00> : vector<1x208xf32>
    %175 = tpu.matmul %173, %18, %cst_75 {dimension_numbers = #tpu.dot_dimension_numbers<[1], [0], [0], [1], [0, 0, 1, 1], [], []>} : vector<1x16xf32>, vector<16x208xf32>, vector<1x208xf32> -> vector<1x208xf32>
    %176 = vector.broadcast %174 : vector<1x208xf32> to vector<8x208xf32>
    %177 = arith.mulf %152, %176 : vector<8x208xf32>
    %178 = vector.broadcast %175 : vector<1x208xf32> to vector<8x208xf32>
    %179 = arith.addf %177, %178 : vector<8x208xf32>
    %c1152 = arith.constant 1152 : index
    %c0_76 = arith.constant 0 : index
    %180 = vector.load %arg2[%c1152, %c0_76] : memref<1368x128xf32, #tpu.memory_space<vmem>>, vector<208x128xf32>
    %cst_77 = arith.constant dense<0.000000e+00> : vector<8x128xf32>
    %181 = tpu.matmul %179, %180, %cst_77 {dimension_numbers = #tpu.dot_dimension_numbers<[1], [0], [0], [1], [0, 0, 1, 1], [], []>} : vector<8x208xf32>, vector<208x128xf32>, vector<8x128xf32> -> vector<8x128xf32>
    %c1360 = arith.constant 1360 : index
    %c0_78 = arith.constant 0 : index
    %182 = vector.load %arg2[%c1360, %c0_78] : memref<1368x128xf32, #tpu.memory_space<vmem>>, vector<1x128xf32>
    %183 = vector.broadcast %182 : vector<1x128xf32> to vector<8x128xf32>
    %184 = arith.addf %181, %183 : vector<8x128xf32>
    %185 = math.tanh %184 : vector<8x128xf32>
    %c0_79 = arith.constant 0 : index
    %c0_80 = arith.constant 0 : index
    %186 = vector.load %arg3[%c0_79, %c0_80] : memref<8x128xf32, #tpu.memory_space<vmem>>, vector<8x128xf32>
    tpu.vector_store %arg3[%c0_79, %c0_80], %185 {strides = array<i32>} : memref<8x128xf32, #tpu.memory_space<vmem>>, vector<8x128xf32>,
    return
  }
  func.func @transform_0(%arg0: i32) -> (i32, i32) {
    %c0_i32 = arith.constant 0 : i32
    %c0_i32_0 = arith.constant 0 : i32
    %c0_i32_1 = arith.constant 0 : i32
    return %c0_i32, %c0_i32_0 : i32, i32
  }
  func.func @transform_1(%arg0: i32) -> (i32, i32) {
    %c0_i32 = arith.constant 0 : i32
    %c0_i32_0 = arith.constant 0 : i32
    %c0_i32_1 = arith.constant 0 : i32
    return %c0_i32, %c0_i32_0 : i32, i32
  }
  func.func @transform_2(%arg0: i32) -> (i32, i32) {
    %c0_i32 = arith.constant 0 : i32
    %c0_i32_0 = arith.constant 0 : i32
    %c0_i32_1 = arith.constant 0 : i32
    return %c0_i32, %c0_i32_0 : i32, i32
  }
}

</mosaic_0001>

<llo_original>
// kernel: tpu_custom_call.1
$region0: #{tpu_custom_call.1}
  #allocation0 [shape = 'u32[]', space=smem, size = 0x4, offset = 0x4, fixed_abs, tag = 'smem constant byte address 0x4 - core index']
  #allocation1 [shape = 'u32[144,128]{1,0:T(1,128)}', space=vmem, size = 0x12000, scoped, tag = 'internal scratch']
  %s0 = inlined_call_operand.hbm [shape: f32[8,128], index: 0, kind: input, shape index: {}]
  %s1 = inlined_call_operand.hbm [shape: f32[1368,128], index: 1, kind: input, shape index: {}]
  %s2 = inlined_call_operand.hbm [shape: f32[8,128], index: 2, kind: output, shape index: {}]
  %s3 = sld [smem:[#allocation0]]
  $region26: #{tpu_custom_call.1} parent=0
    _
  %s5 = ssub.s32 1, %s3
  %s6 = scalar_select 0, %s5, %s3
  $region1: #{tpu_custom_call.1} parent=0
    #allocation2 [shape = 'u8[4096]{0}', space=vmem, size = 0x1000, scoped, tag = 'input window, operand 0, single buffered']
    #allocation3 [shape = 's32[1]{0}', space=sflag, size = 0x4, scoped, tag = 'scoped memory for tpu_custom_call.1']
    #allocation4 [shape = 's32[1]{0}', space=sflag, size = 0x4, scoped, tag = 'scoped memory for tpu_custom_call.1']
    #allocation5 [shape = 'u8[700416]{0}', space=vmem, size = 0xab000, scoped, tag = 'input window, operand 1, single buffered']
    #allocation6 [shape = 's32[1]{0}', space=sflag, size = 0x4, scoped, tag = 'scoped memory for tpu_custom_call.1']
    #allocation7 [shape = 'u8[4096]{0}', space=vmem, size = 0x1000, scoped, tag = 'output window, operand 0, single buffered']
    %7 = vsyncpa [#allocation3], 0
    %8 = vsyncpa [#allocation6], 0
    %9 = vsyncpa [#allocation4], 0
    // Predicated region
    $region2: #{tpu_custom_call.1} parent=1 // pred_check
      _
    $region3: #{tpu_custom_call.1} parent=1 // pred_check_branch
      %11 = sbr.rel (0) target = $region5
    $region4: #{tpu_custom_call.1} parent=1 // pred_region
      %s13 = ssub.s32 128, 128
      %14 = vsyncadd [#allocation3], %s13
      %s16 = sshll.u32 [#allocation2], 4
      %s17 = int_to_ptr.vmem [resolvable:$true] %s16
      %19 = dma.hbm_to_vmem [thread:$0]  %s0, 128, %s17, [#allocation3]
    $region5: #{tpu_custom_call.1} parent=1 // pred_fallthru
      _
    // Predicated region
    $region6: #{tpu_custom_call.1} parent=1 // pred_check
      _
    $region7: #{tpu_custom_call.1} parent=1 // pred_check_branch
      %21 = sbr.rel (0) target = $region9
    $region8: #{tpu_custom_call.1} parent=1 // pred_region
      %s23 = ssub.s32 21888, 21888
      %24 = vsyncadd [#allocation6], %s23
      %s25 = sshll.u32 [#allocation5], 4
      %s26 = int_to_ptr.vmem [resolvable:$true] %s25
      %31 = dma.hbm_to_vmem [thread:$0]  %s1, 21888, %s26, [#allocation6], 128, 128, 8
    $region9: #{tpu_custom_call.1} parent=1 // pred_fallthru
      _
    // Predicated region
    $region10: #{tpu_custom_call.1} parent=1 // pred_check
      _
    $region11: #{tpu_custom_call.1} parent=1 // pred_check_branch
      %33 = sbr.rel (0) target = $region13
    $region12: #{tpu_custom_call.1} parent=1 // pred_region
      %34 = dma.done [#allocation3], 128
    $region13: #{tpu_custom_call.1} parent=1 // pred_fallthru
      _
    // Predicated region
    $region14: #{tpu_custom_call.1} parent=1 // pred_check
      _
    $region15: #{tpu_custom_call.1} parent=1 // pred_check_branch
      %36 = sbr.rel (0) target = $region17
    $region16: #{tpu_custom_call.1} parent=1 // pred_region
      %37 = dma.done [#allocation6], 21888
    $region17: #{tpu_custom_call.1} parent=1 // pred_fallthru
      _
    %v38 = vlaneseq
    %v39 = vand.u32 %v38, 127
    %vm40 = vcmp.lt.s32.totalorder %v39, 4
    %v41 = vsel %vm40, 1, 0
    %v42 = vcvt.s32.f32 %v41
    %v43 = vlaneseq
    %v44 = vshrl.u32 %v43, 7
    %v45 = vadd.s32 %v44, 8
    %v46 = vadd.s32 %v44, 16
    %v47 = vadd.s32 %v44, 24
    %v48 = vadd.s32 %v44, 32
    %v49 = vadd.s32 %v44, 40
    %v50 = vadd.s32 %v44, 48
    %v51 = vadd.s32 %v44, 56
    %v52 = vadd.s32 %v44, 64
    %v53 = vadd.s32 %v44, 72
    %v54 = vadd.s32 %v44, 80
    %v55 = vadd.s32 %v44, 88
    %v56 = vadd.s32 %v44, 96
    %v57 = vadd.s32 %v44, 104
    %v58 = vadd.s32 %v44, 112
    %v59 = vadd.s32 %v44, 120
    %v60 = vadd.s32 %v44, 128
    %v61 = vadd.s32 %v44, 136
    %v62 = vadd.s32 %v44, 144
    %v63 = vadd.s32 %v44, 152
    %v64 = vadd.s32 %v44, 160
    %v65 = vadd.s32 %v44, 168
    %v66 = vadd.s32 %v44, 176
    %v67 = vadd.s32 %v44, 184
    %v68 = vadd.s32 %v44, 192
    %v69 = vadd.s32 %v44, 200
    %v70 = vand.u32 %v44, 15
    %v71 = vand.u32 %v45, 15
    %v72 = vand.u32 %v46, 15
    %v73 = vand.u32 %v47, 15
    %v74 = vand.u32 %v48, 15
    %v75 = vand.u32 %v49, 15
    %v76 = vand.u32 %v50, 15
    %v77 = vand.u32 %v51, 15
    %v78 = vand.u32 %v52, 15
    %v79 = vand.u32 %v53, 15
    %v80 = vand.u32 %v54, 15
    %v81 = vand.u32 %v55, 15
    %v82 = vand.u32 %v56, 15
    %v83 = vand.u32 %v57, 15
    %v84 = vand.u32 %v58, 15
    %v85 = vand.u32 %v59, 15
    %v86 = vand.u32 %v60, 15
    %v87 = vand.u32 %v61, 15
    %v88 = vand.u32 %v62, 15
    %v89 = vand.u32 %v63, 15
    %v90 = vand.u32 %v64, 15
    %v91 = vand.u32 %v65, 15
    %v92 = vand.u32 %v66, 15
    %v93 = vand.u32 %v67, 15
    %v94 = vand.u32 %v68, 15
    %v95 = vand.u32 %v69, 15
    %vm96 = vcmp.eq.s32.totalorder %v70, %v39
    %vm97 = vcmp.eq.s32.totalorder %v71, %v39
    %vm98 = vcmp.eq.s32.totalorder %v72, %v39
    %vm99 = vcmp.eq.s32.totalorder %v73, %v39
    %vm100 = vcmp.eq.s32.totalorder %v74, %v39
    %vm101 = vcmp.eq.s32.totalorder %v75, %v39
    %vm102 = vcmp.eq.s32.totalorder %v76, %v39
    %vm103 = vcmp.eq.s32.totalorder %v77, %v39
    %vm104 = vcmp.eq.s32.totalorder %v78, %v39
    %vm105 = vcmp.eq.s32.totalorder %v79, %v39
    %vm106 = vcmp.eq.s32.totalorder %v80, %v39
    %vm107 = vcmp.eq.s32.totalorder %v81, %v39
    %vm108 = vcmp.eq.s32.totalorder %v82, %v39
    %vm109 = vcmp.eq.s32.totalorder %v83, %v39
    %vm110 = vcmp.eq.s32.totalorder %v84, %v39
    %vm111 = vcmp.eq.s32.totalorder %v85, %v39
    %vm112 = vcmp.eq.s32.totalorder %v86, %v39
    %vm113 = vcmp.eq.s32.totalorder %v87, %v39
    %vm114 = vcmp.eq.s32.totalorder %v88, %v39
    %vm115 = vcmp.eq.s32.totalorder %v89, %v39
    %vm116 = vcmp.eq.s32.totalorder %v90, %v39
    %vm117 = vcmp.eq.s32.totalorder %v91, %v39
    %vm118 = vcmp.eq.s32.totalorder %v92, %v39
    %vm119 = vcmp.eq.s32.totalorder %v93, %v39
    %vm120 = vcmp.eq.s32.totalorder %v94, %v39
    %vm121 = vcmp.eq.s32.totalorder %v95, %v39
    %v122 = vsel %vm96, 1, 0
    %v123 = vsel %vm97, 1, 0
    %v124 = vsel %vm98, 1, 0
    %v125 = vsel %vm99, 1, 0
    %v126 = vsel %vm100, 1, 0
    %v127 = vsel %vm101, 1, 0
    %v128 = vsel %vm102, 1, 0
    %v129 = vsel %vm103, 1, 0
    %v130 = vsel %vm104, 1, 0
    %v131 = vsel %vm105, 1, 0
    %v132 = vsel %vm106, 1, 0
    %v133 = vsel %vm107, 1, 0
    %v134 = vsel %vm108, 1, 0
    %v135 = vsel %vm109, 1, 0
    %v136 = vsel %vm110, 1, 0
    %v137 = vsel %vm111, 1, 0
    %v138 = vsel %vm112, 1, 0
    %v139 = vsel %vm113, 1, 0
    %v140 = vsel %vm114, 1, 0
    %v141 = vsel %vm115, 1, 0
    %v142 = vsel %vm116, 1, 0
    %v143 = vsel %vm117, 1, 0
    %v144 = vsel %vm118, 1, 0
    %v145 = vsel %vm119, 1, 0
    %v146 = vsel %vm120, 1, 0
    %v147 = vsel %vm121, 1, 0
    %v148 = vcvt.s32.f32 %v122
    %v149 = vcvt.s32.f32 %v123
    %v150 = vcvt.s32.f32 %v124
    %v151 = vcvt.s32.f32 %v125
    %v152 = vcvt.s32.f32 %v126
    %v153 = vcvt.s32.f32 %v127
    %v154 = vcvt.s32.f32 %v128
    %v155 = vcvt.s32.f32 %v129
    %v156 = vcvt.s32.f32 %v130
    %v157 = vcvt.s32.f32 %v131
    %v158 = vcvt.s32.f32 %v132
    %v159 = vcvt.s32.f32 %v133
    %v160 = vcvt.s32.f32 %v134
    %v161 = vcvt.s32.f32 %v135
    %v162 = vcvt.s32.f32 %v136
    %v163 = vcvt.s32.f32 %v137
    %v164 = vcvt.s32.f32 %v138
    %v165 = vcvt.s32.f32 %v139
    %v166 = vcvt.s32.f32 %v140
    %v167 = vcvt.s32.f32 %v141
    %v168 = vcvt.s32.f32 %v142
    %v169 = vcvt.s32.f32 %v143
    %v170 = vcvt.s32.f32 %v144
    %v171 = vcvt.s32.f32 %v145
    %v172 = vcvt.s32.f32 %v146
    %v173 = vcvt.s32.f32 %v147
    %v174 = vadd.s32 %v39, 128
    %v175 = vand.u32 %v39, 15
    %v176 = vand.u32 %v174, 15
    %vm177 = vcmp.eq.s32.totalorder %v175, %v44
    %vm178 = vcmp.eq.s32.totalorder %v176, %v44
    %vm179 = vcmp.eq.s32.totalorder %v175, %v45
    %vm180 = vcmp.eq.s32.totalorder %v176, %v45
    %v181 = vsel %vm177, 1, 0
    %v182 = vsel %vm178, 1, 0
    %v183 = vsel %vm179, 1, 0
    %v184 = vsel %vm180, 1, 0
    %v185 = vcvt.s32.f32 %v181
    %v186 = vcvt.s32.f32 %v182
    %v187 = vcvt.s32.f32 %v183
    %v188 = vcvt.s32.f32 %v184
    %v189 = vand.u32 %v44, 31
    %v190 = vand.u32 %v45, 31
    %v191 = vand.u32 %v46, 31
    %v192 = vand.u32 %v47, 31
    %v193 = vand.u32 %v48, 31
    %v194 = vand.u32 %v49, 31
    %v195 = vand.u32 %v50, 31
    %v196 = vand.u32 %v51, 31
    %v197 = vand.u32 %v52, 31
    %v198 = vand.u32 %v53, 31
    %v199 = vand.u32 %v54, 31
    %v200 = vand.u32 %v55, 31
    %v201 = vand.u32 %v56, 31
    %v202 = vand.u32 %v57, 31
    %v203 = vand.u32 %v58, 31
    %v204 = vand.u32 %v59, 31
    %vm205 = vcmp.eq.s32.totalorder %v189, %v39
    %vm206 = vcmp.eq.s32.totalorder %v190, %v39
    %vm207 = vcmp.eq.s32.totalorder %v191, %v39
    %vm208 = vcmp.eq.s32.totalorder %v192, %v39
    %vm209 = vcmp.eq.s32.totalorder %v193, %v39
    %vm210 = vcmp.eq.s32.totalorder %v194, %v39
    %vm211 = vcmp.eq.s32.totalorder %v195, %v39
    %vm212 = vcmp.eq.s32.totalorder %v196, %v39
    %vm213 = vcmp.eq.s32.totalorder %v197, %v39
    %vm214 = vcmp.eq.s32.totalorder %v198, %v39
    %vm215 = vcmp.eq.s32.totalorder %v199, %v39
    %vm216 = vcmp.eq.s32.totalorder %v200, %v39
    %vm217 = vcmp.eq.s32.totalorder %v201, %v39
    %vm218 = vcmp.eq.s32.totalorder %v202, %v39
    %vm219 = vcmp.eq.s32.totalorder %v203, %v39
    %vm220 = vcmp.eq.s32.totalorder %v204, %v39
    %v221 = vsel %vm205, 1, 0
    %v222 = vsel %vm206, 1, 0
    %v223 = vsel %vm207, 1, 0
    %v224 = vsel %vm208, 1, 0
    %v225 = vsel %vm209, 1, 0
    %v226 = vsel %vm210, 1, 0
    %v227 = vsel %vm211, 1, 0
    %v228 = vsel %vm212, 1, 0
    %v229 = vsel %vm213, 1, 0
    %v230 = vsel %vm214, 1, 0
    %v231 = vsel %vm215, 1, 0
    %v232 = vsel %vm216, 1, 0
    %v233 = vsel %vm217, 1, 0
    %v234 = vsel %vm218, 1, 0
    %v235 = vsel %vm219, 1, 0
    %v236 = vsel %vm220, 1, 0
    %v237 = vcvt.s32.f32 %v221
    %v238 = vcvt.s32.f32 %v222
    %v239 = vcvt.s32.f32 %v223
    %v240 = vcvt.s32.f32 %v224
    %v241 = vcvt.s32.f32 %v225
    %v242 = vcvt.s32.f32 %v226
    %v243 = vcvt.s32.f32 %v227
    %v244 = vcvt.s32.f32 %v228
    %v245 = vcvt.s32.f32 %v229
    %v246 = vcvt.s32.f32 %v230
    %v247 = vcvt.s32.f32 %v231
    %v248 = vcvt.s32.f32 %v232
    %v249 = vcvt.s32.f32 %v233
    %v250 = vcvt.s32.f32 %v234
    %v251 = vcvt.s32.f32 %v235
    %v252 = vcvt.s32.f32 %v236
    %v253 = vand.u32 %v39, 31
    %vm254 = vcmp.eq.s32.totalorder %v253, %v44
    %vm255 = vcmp.eq.s32.totalorder %v253, %v45
    %vm256 = vcmp.eq.s32.totalorder %v253, %v46
    %vm257 = vcmp.eq.s32.totalorder %v253, %v47
    %v258 = vsel %vm254, 1, 0
    %v259 = vsel %vm255, 1, 0
    %v260 = vsel %vm256, 1, 0
    %v261 = vsel %vm257, 1, 0
    %v262 = vcvt.s32.f32 %v258
    %v263 = vcvt.s32.f32 %v259
    %v264 = vcvt.s32.f32 %v260
    %v265 = vcvt.s32.f32 %v261
    %v266 = vld [vmem:[#allocation2] sm:$0xff]
    %v267 = vld [vmem:[#allocation5] sm:$0xff]
    %v268 = vld [vmem:[#allocation5 + $0x8] sm:$0xff]
    %v269 = vld [vmem:[#allocation5 + $0x10] sm:$0xff]
    %v270 = vld [vmem:[#allocation5 + $0x18] sm:$0xff]
    %v271 = vld [vmem:[#allocation5 + $0x20] sm:$0xff]
    %v272 = vld [vmem:[#allocation5 + $0x28] sm:$0xff]
    %v273 = vld [vmem:[#allocation5 + $0x30] sm:$0xff]
    %v274 = vld [vmem:[#allocation5 + $0x38] sm:$0xff]
    %v275 = vld [vmem:[#allocation5 + $0x40] sm:$0xff]
    %v276 = vld [vmem:[#allocation5 + $0x48] sm:$0xff]
    %v277 = vld [vmem:[#allocation5 + $0x50] sm:$0xff]
    %v278 = vld [vmem:[#allocation5 + $0x58] sm:$0xff]
    %v279 = vld [vmem:[#allocation5 + $0x60] sm:$0xff]
    %v280 = vld [vmem:[#allocation5 + $0x68] sm:$0xff]
    %v281 = vld [vmem:[#allocation5 + $0x70] sm:$0xff]
    %v282 = vld [vmem:[#allocation5 + $0x78] sm:$0xff]
    %283 = vmatprep.subr.mxu0 0.0
    %284 = vmatpush1.msra.mxu0 %v282
    %285 = vmatprep.subr.mxu0 0.0
    %286 = vmatpush1.msra.mxu0 %v281
    %287 = vmatprep.subr.mxu0 0.0
    %288 = vmatpush1.msra.mxu0 %v280
    %289 = vmatprep.subr.mxu0 0.0
    %290 = vmatpush1.msra.mxu0 %v279
    %291 = vmatprep.subr.mxu0 0.0
    %292 = vmatpush1.msra.mxu0 %v278
    %293 = vmatprep.subr.mxu0 0.0
    %294 = vmatpush1.msra.mxu0 %v277
    %295 = vmatprep.subr.mxu0 0.0
    %296 = vmatpush1.msra.mxu0 %v276
    %297 = vmatprep.subr.mxu0 0.0
    %298 = vmatpush1.msra.mxu0 %v275
    %299 = vmatprep.subr.mxu0 0.0
    %300 = vmatpush1.msra.mxu0 %v274
    %301 = vmatprep.subr.mxu0 0.0
    %302 = vmatpush1.msra.mxu0 %v273
    %303 = vmatprep.subr.mxu0 0.0
    %304 = vmatpush1.msra.mxu0 %v272
    %305 = vmatprep.subr.mxu0 0.0
    %306 = vmatpush1.msra.mxu0 %v271
    %307 = vmatprep.subr.mxu0 0.0
    %308 = vmatpush1.msra.mxu0 %v270
    %309 = vmatprep.subr.mxu0 0.0
    %310 = vmatpush1.msra.mxu0 %v269
    %311 = vmatprep.subr.mxu0 0.0
    %312 = vmatpush1.msra.mxu0 %v268
    %313 = vmatprep.subr.mxu0 0.0
    %314 = vmatpush1.msra.mxu0 %v267
    %315 = vmatprep.subr.mxu0 0.0
    %316 = vmatpush2.msra.mxu0 0.0
    %317 = vmatprep.subr.mxu0 0.0
    %318 = vmatpush2.msra.mxu0 0.0
    %319 = vmatprep.subr.mxu0 0.0
    %320 = vmatpush2.msra.mxu0 0.0
    %321 = vmatprep.subr.mxu0 0.0
    %322 = vmatpush2.msra.mxu0 0.0
    %323 = vmatprep.subr.mxu0 0.0
    %324 = vmatpush2.msra.mxu0 0.0
    %325 = vmatprep.subr.mxu0 0.0
    %326 = vmatpush2.msra.mxu0 0.0
    %327 = vmatprep.subr.mxu0 0.0
    %328 = vmatpush2.msra.mxu0 0.0
    %329 = vmatprep.subr.mxu0 0.0
    %330 = vmatpush2.msra.mxu0 0.0
    %331 = vmatprep.subr.mxu0 0.0
    %332 = vmatpush2.msra.mxu0 0.0
    %333 = vmatprep.subr.mxu0 0.0
    %334 = vmatpush2.msra.mxu0 0.0
    %335 = vmatprep.subr.mxu0 0.0
    %336 = vmatpush2.msra.mxu0 0.0
    %337 = vmatprep.subr.mxu0 0.0
    %338 = vmatpush2.msra.mxu0 0.0
    %339 = vmatprep.subr.mxu0 0.0
    %340 = vmatpush2.msra.mxu0 0.0
    %341 = vmatprep.subr.mxu0 0.0
    %342 = vmatpush2.msra.mxu0 0.0
    %343 = vmatprep.subr.mxu0 0.0
    %344 = vmatpush2.msra.mxu0 0.0
    %345 = vmatprep.subr.mxu0 0.0
    %346 = vmatpush2.msra.mxu0 0.0
    %347 = vmatprep.mubr.f32.mxu0 0.0
    %348 = vmatmul.mubr.f32.gmra.mxu0 %v266
    %v349 = vpop.f32.mrf.mxu0
    %v350 = vadd.f32 0.0, %v349
    %v351 = vpop.f32.mrf.mxu0
    %352 = vdwg.mxu0
    %v353 = vld [vmem:[#allocation5 + $0x80] sm:$0xff]
    %v354 = vld [vmem:[#allocation5 + $0x88] sm:$0xff]
    %v355 = vld [vmem:[#allocation5 + $0x90] sm:$0xff]
    %v356 = vld [vmem:[#allocation5 + $0x98] sm:$0xff]
    %v357 = vld [vmem:[#allocation5 + $0xa0] sm:$0xff]
    %v358 = vld [vmem:[#allocation5 + $0xa8] sm:$0xff]
    %v359 = vld [vmem:[#allocation5 + $0xb0] sm:$0xff]
    %v360 = vld [vmem:[#allocation5 + $0xb8] sm:$0xff]
    %v361 = vld [vmem:[#allocation5 + $0xc0] sm:$0xff]
    %v362 = vld [vmem:[#allocation5 + $0xc8] sm:$0xff]
    %v363 = vld [vmem:[#allocation5 + $0xd0] sm:$0xff]
    %v364 = vld [vmem:[#allocation5 + $0xd8] sm:$0xff]
    %v365 = vld [vmem:[#allocation5 + $0xe0] sm:$0xff]
    %v366 = vld [vmem:[#allocation5 + $0xe8] sm:$0xff]
    %v367 = vld [vmem:[#allocation5 + $0xf0] sm:$0xff]
    %v368 = vld [vmem:[#allocation5 + $0xf8] sm:$0xff]
    %369 = vmatprep.subr.mxu0 0.0
    %370 = vmatpush1.msra.mxu0 %v368
    %371 = vmatprep.subr.mxu0 0.0
    %372 = vmatpush1.msra.mxu0 %v367
    %373 = vmatprep.subr.mxu0 0.0
    %374 = vmatpush1.msra.mxu0 %v366
    %375 = vmatprep.subr.mxu0 0.0
    %376 = vmatpush1.msra.mxu0 %v365
    %377 = vmatprep.subr.mxu0 0.0
    %378 = vmatpush1.msra.mxu0 %v364
    %379 = vmatprep.subr.mxu0 0.0
    %380 = vmatpush1.msra.mxu0 %v363
    %381 = vmatprep.subr.mxu0 0.0
    %382 = vmatpush1.msra.mxu0 %v362
    %383 = vmatprep.subr.mxu0 0.0
    %384 = vmatpush1.msra.mxu0 %v361
    %385 = vmatprep.subr.mxu0 0.0
    %386 = vmatpush1.msra.mxu0 %v360
    %387 = vmatprep.subr.mxu0 0.0
    %388 = vmatpush1.msra.mxu0 %v359
    %389 = vmatprep.subr.mxu0 0.0
    %390 = vmatpush1.msra.mxu0 %v358
    %391 = vmatprep.subr.mxu0 0.0
    %392 = vmatpush1.msra.mxu0 %v357
    %393 = vmatprep.subr.mxu0 0.0
    %394 = vmatpush1.msra.mxu0 %v356
    %395 = vmatprep.subr.mxu0 0.0
    %396 = vmatpush1.msra.mxu0 %v355
    %397 = vmatprep.subr.mxu0 0.0
    %398 = vmatpush1.msra.mxu0 %v354
    %399 = vmatprep.subr.mxu0 0.0
    %400 = vmatpush1.msra.mxu0 %v353
    %401 = vmatprep.subr.mxu0 0.0
    %402 = vmatpush2.msra.mxu0 0.0
    %403 = vmatprep.subr.mxu0 0.0
    %404 = vmatpush2.msra.mxu0 0.0
    %405 = vmatprep.subr.mxu0 0.0
    %406 = vmatpush2.msra.mxu0 0.0
    %407 = vmatprep.subr.mxu0 0.0
    %408 = vmatpush2.msra.mxu0 0.0
    %409 = vmatprep.subr.mxu0 0.0
    %410 = vmatpush2.msra.mxu0 0.0
    %411 = vmatprep.subr.mxu0 0.0
    %412 = vmatpush2.msra.mxu0 0.0
    %413 = vmatprep.subr.mxu0 0.0
    %414 = vmatpush2.msra.mxu0 0.0
    %415 = vmatprep.subr.mxu0 0.0
    %416 = vmatpush2.msra.mxu0 0.0
    %417 = vmatprep.subr.mxu0 0.0
    %418 = vmatpush2.msra.mxu0 0.0
    %419 = vmatprep.subr.mxu0 0.0
    %420 = vmatpush2.msra.mxu0 0.0
    %421 = vmatprep.subr.mxu0 0.0
    %422 = vmatpush2.msra.mxu0 0.0
    %423 = vmatprep.subr.mxu0 0.0
    %424 = vmatpush2.msra.mxu0 0.0
    %425 = vmatprep.subr.mxu0 0.0
    %426 = vmatpush2.msra.mxu0 0.0
    %427 = vmatprep.subr.mxu0 0.0
    %428 = vmatpush2.msra.mxu0 0.0
    %429 = vmatprep.subr.mxu0 0.0
    %430 = vmatpush2.msra.mxu0 0.0
    %431 = vmatprep.subr.mxu0 0.0
    %432 = vmatpush2.msra.mxu0 0.0
    %433 = vmatprep.mubr.f32.mxu0 0.0
    %434 = vmatmul.mubr.f32.gmra.mxu0 %v266
    %v435 = vpop.f32.mrf.mxu0
    %v436 = vadd.f32 0.0, %v435
    %v437 = vpop.f32.mrf.mxu0
    %438 = vdwg.mxu0
    %v439 = vld [vmem:[#allocation5 + $0x100] sm:$0x1]
    %v440 = vld [vmem:[#allocation5 + $0x108] sm:$0x1]
    %vm441 = vcmask 64512
    %v443 = vsel %vm441, %v42, 0
    %445 = vmatprep.subr.mxu0 0.0
    %446 = vmatpush1.msra.mxu0 0.0
    %447 = vmatprep.subr.mxu0 0.0
    %448 = vmatpush1.msra.mxu0 0.0
    %449 = vmatprep.subr.mxu0 0.0
    %450 = vmatpush1.msra.mxu0 0.0
    %451 = vmatprep.subr.mxu0 0.0
    %452 = vmatpush1.msra.mxu0 0.0
    %453 = vmatprep.subr.mxu0 0.0
    %454 = vmatpush1.msra.mxu0 0.0
    %455 = vmatprep.subr.mxu0 0.0
    %456 = vmatpush1.msra.mxu0 0.0
    %457 = vmatprep.subr.mxu0 0.0
    %458 = vmatpush1.msra.mxu0 0.0
    %459 = vmatprep.subr.mxu0 0.0
    %460 = vmatpush1.msra.mxu0 0.0
    %461 = vmatprep.subr.mxu0 0.0
    %462 = vmatpush1.msra.mxu0 0.0
    %463 = vmatprep.subr.mxu0 0.0
    %464 = vmatpush1.msra.mxu0 0.0
    %465 = vmatprep.subr.mxu0 0.0
    %466 = vmatpush1.msra.mxu0 0.0
    %467 = vmatprep.subr.mxu0 0.0
    %468 = vmatpush1.msra.mxu0 0.0
    %469 = vmatprep.subr.mxu0 0.0
    %470 = vmatpush1.msra.mxu0 0.0
    %471 = vmatprep.subr.mxu0 0.0
    %472 = vmatpush1.msra.mxu0 0.0
    %473 = vmatprep.subr.mxu0 0.0
    %474 = vmatpush1.msra.mxu0 0.0
    %475 = vmatprep.subr.mxu0 %v436
    %476 = vmatpush1.msra.mxu0 %v350
    %477 = vmatprep.subr.mxu0 0.0
    %478 = vmatpush2.msra.mxu0 0.0
    %479 = vmatprep.subr.mxu0 0.0
    %480 = vmatpush2.msra.mxu0 0.0
    %481 = vmatprep.subr.mxu0 0.0
    %482 = vmatpush2.msra.mxu0 0.0
    %483 = vmatprep.subr.mxu0 0.0
    %484 = vmatpush2.msra.mxu0 0.0
    %485 = vmatprep.subr.mxu0 0.0
    %486 = vmatpush2.msra.mxu0 0.0
    %487 = vmatprep.subr.mxu0 0.0
    %488 = vmatpush2.msra.mxu0 0.0
    %489 = vmatprep.subr.mxu0 0.0
    %490 = vmatpush2.msra.mxu0 0.0
    %491 = vmatprep.subr.mxu0 0.0
    %492 = vmatpush2.msra.mxu0 0.0
    %493 = vmatprep.subr.mxu0 0.0
    %494 = vmatpush2.msra.mxu0 0.0
    %495 = vmatprep.subr.mxu0 0.0
    %496 = vmatpush2.msra.mxu0 0.0
    %497 = vmatprep.subr.mxu0 0.0
    %498 = vmatpush2.msra.mxu0 0.0
    %499 = vmatprep.subr.mxu0 0.0
    %500 = vmatpush2.msra.mxu0 0.0
    %501 = vmatprep.subr.mxu0 0.0
    %502 = vmatpush2.msra.mxu0 0.0
    %503 = vmatprep.subr.mxu0 0.0
    %504 = vmatpush2.msra.mxu0 0.0
    %505 = vmatprep.subr.mxu0 0.0
    %506 = vmatpush2.msra.mxu0 0.0
    %507 = vmatprep.subr.mxu0 0.0
    %508 = vmatpush2.msra.mxu0 0.0
    %509 = vmatprep.mubr.f32.mxu0 0.0
    %510 = vmatmul.mubr.f32.gmra.mxu0 %v443
    %v511 = vpop.f32.mrf.mxu0
    %v512 = vadd.f32 0.0, %v511
    %v513 = vpop.f32.mrf.mxu0
    %v514 = vadd.f32 0.0, %v513
    %515 = vdwg.mxu0
    %v516 = vmul.f32 %v350, %v350
    %v517 = vmul.f32 %v436, %v436
    %518 = vmatprep.subr.mxu0 0.0
    %519 = vmatpush1.msra.mxu0 0.0
    %520 = vmatprep.subr.mxu0 0.0
    %521 = vmatpush1.msra.mxu0 0.0
    %522 = vmatprep.subr.mxu0 0.0
    %523 = vmatpush1.msra.mxu0 0.0
    %524 = vmatprep.subr.mxu0 0.0
    %525 = vmatpush1.msra.mxu0 0.0
    %526 = vmatprep.subr.mxu0 0.0
    %527 = vmatpush1.msra.mxu0 0.0
    %528 = vmatprep.subr.mxu0 0.0
    %529 = vmatpush1.msra.mxu0 0.0
    %530 = vmatprep.subr.mxu0 0.0
    %531 = vmatpush1.msra.mxu0 0.0
    %532 = vmatprep.subr.mxu0 0.0
    %533 = vmatpush1.msra.mxu0 0.0
    %534 = vmatprep.subr.mxu0 0.0
    %535 = vmatpush1.msra.mxu0 0.0
    %536 = vmatprep.subr.mxu0 0.0
    %537 = vmatpush1.msra.mxu0 0.0
    %538 = vmatprep.subr.mxu0 0.0
    %539 = vmatpush1.msra.mxu0 0.0
    %540 = vmatprep.subr.mxu0 0.0
    %541 = vmatpush1.msra.mxu0 0.0
    %542 = vmatprep.subr.mxu0 0.0
    %543 = vmatpush1.msra.mxu0 0.0
    %544 = vmatprep.subr.mxu0 0.0
    %545 = vmatpush1.msra.mxu0 0.0
    %546 = vmatprep.subr.mxu0 0.0
    %547 = vmatpush1.msra.mxu0 0.0
    %548 = vmatprep.subr.mxu0 %v517
    %549 = vmatpush1.msra.mxu0 %v516
    %550 = vmatprep.subr.mxu0 0.0
    %551 = vmatpush2.msra.mxu0 0.0
    %552 = vmatprep.subr.mxu0 0.0
    %553 = vmatpush2.msra.mxu0 0.0
    %554 = vmatprep.subr.mxu0 0.0
    %555 = vmatpush2.msra.mxu0 0.0
    %556 = vmatprep.subr.mxu0 0.0
    %557 = vmatpush2.msra.mxu0 0.0
    %558 = vmatprep.subr.mxu0 0.0
    %559 = vmatpush2.msra.mxu0 0.0
    %560 = vmatprep.subr.mxu0 0.0
    %561 = vmatpush2.msra.mxu0 0.0
    %562 = vmatprep.subr.mxu0 0.0
    %563 = vmatpush2.msra.mxu0 0.0
    %564 = vmatprep.subr.mxu0 0.0
    %565 = vmatpush2.msra.mxu0 0.0
    %566 = vmatprep.subr.mxu0 0.0
    %567 = vmatpush2.msra.mxu0 0.0
    %568 = vmatprep.subr.mxu0 0.0
    %569 = vmatpush2.msra.mxu0 0.0
    %570 = vmatprep.subr.mxu0 0.0
    %571 = vmatpush2.msra.mxu0 0.0
    %572 = vmatprep.subr.mxu0 0.0
    %573 = vmatpush2.msra.mxu0 0.0
    %574 = vmatprep.subr.mxu0 0.0
    %575 = vmatpush2.msra.mxu0 0.0
    %576 = vmatprep.subr.mxu0 0.0
    %577 = vmatpush2.msra.mxu0 0.0
    %578 = vmatprep.subr.mxu0 0.0
    %579 = vmatpush2.msra.mxu0 0.0
    %580 = vmatprep.subr.mxu0 0.0
    %581 = vmatpush2.msra.mxu0 0.0
    %582 = vmatprep.mubr.f32.mxu0 0.0
    %583 = vmatmul.mubr.f32.gmra.mxu0 %v443
    %v584 = vpop.f32.mrf.mxu0
    %v585 = vadd.f32 0.0, %v584
    %v586 = vpop.f32.mrf.mxu0
    %v587 = vadd.f32 0.0, %v586
    %588 = vdwg.mxu0
    %vm589 = vcmask 654336
    %v591 = vsel %vm589, %v514, 0
    %593 = vmatprep.subr.mxu0 0.0
    %594 = vmatpush1.msra.mxu0 %v163
    %595 = vmatprep.subr.mxu0 0.0
    %596 = vmatpush1.msra.mxu0 %v162
    %597 = vmatprep.subr.mxu0 0.0
    %598 = vmatpush1.msra.mxu0 %v161
    %599 = vmatprep.subr.mxu0 0.0
    %600 = vmatpush1.msra.mxu0 %v160
    %601 = vmatprep.subr.mxu0 0.0
    %602 = vmatpush1.msra.mxu0 %v159
    %603 = vmatprep.subr.mxu0 0.0
    %604 = vmatpush1.msra.mxu0 %v158
    %605 = vmatprep.subr.mxu0 0.0
    %606 = vmatpush1.msra.mxu0 %v157
    %607 = vmatprep.subr.mxu0 0.0
    %608 = vmatpush1.msra.mxu0 %v156
    %609 = vmatprep.subr.mxu0 0.0
    %610 = vmatpush1.msra.mxu0 %v155
    %611 = vmatprep.subr.mxu0 0.0
    %612 = vmatpush1.msra.mxu0 %v154
    %613 = vmatprep.subr.mxu0 0.0
    %614 = vmatpush1.msra.mxu0 %v153
    %615 = vmatprep.subr.mxu0 0.0
    %616 = vmatpush1.msra.mxu0 %v152
    %617 = vmatprep.subr.mxu0 0.0
    %618 = vmatpush1.msra.mxu0 %v151
    %619 = vmatprep.subr.mxu0 0.0
    %620 = vmatpush1.msra.mxu0 %v150
    %621 = vmatprep.subr.mxu0 0.0
    %622 = vmatpush1.msra.mxu0 %v149
    %623 = vmatprep.subr.mxu0 0.0
    %624 = vmatpush1.msra.mxu0 %v148
    %625 = vmatprep.subr.mxu0 0.0
    %626 = vmatpush2.msra.mxu0 0.0
    %627 = vmatprep.subr.mxu0 0.0
    %628 = vmatpush2.msra.mxu0 0.0
    %629 = vmatprep.subr.mxu0 0.0
    %630 = vmatpush2.msra.mxu0 0.0
    %631 = vmatprep.subr.mxu0 0.0
    %632 = vmatpush2.msra.mxu0 0.0
    %633 = vmatprep.subr.mxu0 0.0
    %634 = vmatpush2.msra.mxu0 0.0
    %635 = vmatprep.subr.mxu0 0.0
    %636 = vmatpush2.msra.mxu0 0.0
    %637 = vmatprep.subr.mxu0 0.0
    %638 = vmatpush2.msra.mxu0 %v173
    %639 = vmatprep.subr.mxu0 0.0
    %640 = vmatpush2.msra.mxu0 %v172
    %641 = vmatprep.subr.mxu0 0.0
    %642 = vmatpush2.msra.mxu0 %v171
    %643 = vmatprep.subr.mxu0 0.0
    %644 = vmatpush2.msra.mxu0 %v170
    %645 = vmatprep.subr.mxu0 0.0
    %646 = vmatpush2.msra.mxu0 %v169
    %647 = vmatprep.subr.mxu0 0.0
    %648 = vmatpush2.msra.mxu0 %v168
    %649 = vmatprep.subr.mxu0 0.0
    %650 = vmatpush2.msra.mxu0 %v167
    %651 = vmatprep.subr.mxu0 0.0
    %652 = vmatpush2.msra.mxu0 %v166
    %653 = vmatprep.subr.mxu0 0.0
    %654 = vmatpush2.msra.mxu0 %v165
    %655 = vmatprep.subr.mxu0 0.0
    %656 = vmatpush2.msra.mxu0 %v164
    %657 = vmatprep.mubr.f32.mxu0 %v591
    %658 = vmatmul.mubr.f32.gmra.mxu0 %v512
    %v659 = vpop.f32.mrf.mxu0
    %v660 = vadd.f32 0.0, %v659
    %v661 = vpop.f32.mrf.mxu0
    %662 = vdwg.mxu0
    %v663 = vmul.f32 %v660, 0.01923077
    %v665 = vsel %vm589, %v587, 0
    %667 = vmatprep.subr.mxu0 0.0
    %668 = vmatpush1.msra.mxu0 %v163
    %669 = vmatprep.subr.mxu0 0.0
    %670 = vmatpush1.msra.mxu0 %v162
    %671 = vmatprep.subr.mxu0 0.0
    %672 = vmatpush1.msra.mxu0 %v161
    %673 = vmatprep.subr.mxu0 0.0
    %674 = vmatpush1.msra.mxu0 %v160
    %675 = vmatprep.subr.mxu0 0.0
    %676 = vmatpush1.msra.mxu0 %v159
    %677 = vmatprep.subr.mxu0 0.0
    %678 = vmatpush1.msra.mxu0 %v158
    %679 = vmatprep.subr.mxu0 0.0
    %680 = vmatpush1.msra.mxu0 %v157
    %681 = vmatprep.subr.mxu0 0.0
    %682 = vmatpush1.msra.mxu0 %v156
    %683 = vmatprep.subr.mxu0 0.0
    %684 = vmatpush1.msra.mxu0 %v155
    %685 = vmatprep.subr.mxu0 0.0
    %686 = vmatpush1.msra.mxu0 %v154
    %687 = vmatprep.subr.mxu0 0.0
    %688 = vmatpush1.msra.mxu0 %v153
    %689 = vmatprep.subr.mxu0 0.0
    %690 = vmatpush1.msra.mxu0 %v152
    %691 = vmatprep.subr.mxu0 0.0
    %692 = vmatpush1.msra.mxu0 %v151
    %693 = vmatprep.subr.mxu0 0.0
    %694 = vmatpush1.msra.mxu0 %v150
    %695 = vmatprep.subr.mxu0 0.0
    %696 = vmatpush1.msra.mxu0 %v149
    %697 = vmatprep.subr.mxu0 0.0
    %698 = vmatpush1.msra.mxu0 %v148
    %699 = vmatprep.subr.mxu0 0.0
    %700 = vmatpush2.msra.mxu0 0.0
    %701 = vmatprep.subr.mxu0 0.0
    %702 = vmatpush2.msra.mxu0 0.0
    %703 = vmatprep.subr.mxu0 0.0
    %704 = vmatpush2.msra.mxu0 0.0
    %705 = vmatprep.subr.mxu0 0.0
    %706 = vmatpush2.msra.mxu0 0.0
    %707 = vmatprep.subr.mxu0 0.0
    %708 = vmatpush2.msra.mxu0 0.0
    %709 = vmatprep.subr.mxu0 0.0
    %710 = vmatpush2.msra.mxu0 0.0
    %711 = vmatprep.subr.mxu0 0.0
    %712 = vmatpush2.msra.mxu0 %v173
    %713 = vmatprep.subr.mxu0 0.0
    %714 = vmatpush2.msra.mxu0 %v172
    %715 = vmatprep.subr.mxu0 0.0
    %716 = vmatpush2.msra.mxu0 %v171
    %717 = vmatprep.subr.mxu0 0.0
    %718 = vmatpush2.msra.mxu0 %v170
    %719 = vmatprep.subr.mxu0 0.0
    %720 = vmatpush2.msra.mxu0 %v169
    %721 = vmatprep.subr.mxu0 0.0
    %722 = vmatpush2.msra.mxu0 %v168
    %723 = vmatprep.subr.mxu0 0.0
    %724 = vmatpush2.msra.mxu0 %v167
    %725 = vmatprep.subr.mxu0 0.0
    %726 = vmatpush2.msra.mxu0 %v166
    %727 = vmatprep.subr.mxu0 0.0
    %728 = vmatpush2.msra.mxu0 %v165
    %729 = vmatprep.subr.mxu0 0.0
    %730 = vmatpush2.msra.mxu0 %v164
    %731 = vmatprep.mubr.f32.mxu0 %v665
    %732 = vmatmul.mubr.f32.gmra.mxu0 %v585
    %v733 = vpop.f32.mrf.mxu0
    %v734 = vadd.f32 0.0, %v733
    %v735 = vpop.f32.mrf.mxu0
    %736 = vdwg.mxu0
    %v737 = vmul.f32 %v734, 0.01923077
    %v738 = vmul.f32 %v663, %v663
    %v739 = vsub.f32 %v737, %v738
    %v740 = vmax.f32 %v739, 0.0
    %v741 = vadd.f32 %v740, 1e-05
    %v742 = vrsqrt.pop %v741
    %v743 = vmul.f32 %v439, %v742
    %v744 = vmul.f32 %v663, %v743
    %v745 = vsub.f32 %v440, %v744
    %vm746 = vcmask 130048
    %v748 = vsel %vm746, %v743, 0
    %750 = vmatprep.subr.mxu0 0.0
    %751 = vmatpush1.msra.mxu0 0.0
    %752 = vmatprep.subr.mxu0 0.0
    %753 = vmatpush1.msra.mxu0 0.0
    %754 = vmatprep.subr.mxu0 0.0
    %755 = vmatpush1.msra.mxu0 0.0
    %756 = vmatprep.subr.mxu0 0.0
    %757 = vmatpush1.msra.mxu0 0.0
    %758 = vmatprep.subr.mxu0 0.0
    %759 = vmatpush1.msra.mxu0 0.0
    %760 = vmatprep.subr.mxu0 0.0
    %761 = vmatpush1.msra.mxu0 0.0
    %762 = vmatprep.subr.mxu0 0.0
    %763 = vmatpush1.msra.mxu0 0.0
    %764 = vmatprep.subr.mxu0 0.0
    %765 = vmatpush1.msra.mxu0 0.0
    %766 = vmatprep.subr.mxu0 0.0
    %767 = vmatpush1.msra.mxu0 0.0
    %768 = vmatprep.subr.mxu0 0.0
    %769 = vmatpush1.msra.mxu0 0.0
    %770 = vmatprep.subr.mxu0 0.0
    %771 = vmatpush1.msra.mxu0 0.0
    %772 = vmatprep.subr.mxu0 0.0
    %773 = vmatpush1.msra.mxu0 0.0
    %774 = vmatprep.subr.mxu0 0.0
    %775 = vmatpush1.msra.mxu0 0.0
    %776 = vmatprep.subr.mxu0 0.0
    %777 = vmatpush1.msra.mxu0 0.0
    %778 = vmatprep.subr.mxu0 %v188
    %779 = vmatpush1.msra.mxu0 %v187
    %780 = vmatprep.subr.mxu0 %v186
    %781 = vmatpush1.msra.mxu0 %v185
    %782 = vmatprep.subr.mxu0 0.0
    %783 = vmatpush2.msra.mxu0 0.0
    %784 = vmatprep.subr.mxu0 0.0
    %785 = vmatpush2.msra.mxu0 0.0
    %786 = vmatprep.subr.mxu0 0.0
    %787 = vmatpush2.msra.mxu0 0.0
    %788 = vmatprep.subr.mxu0 0.0
    %789 = vmatpush2.msra.mxu0 0.0
    %790 = vmatprep.subr.mxu0 0.0
    %791 = vmatpush2.msra.mxu0 0.0
    %792 = vmatprep.subr.mxu0 0.0
    %793 = vmatpush2.msra.mxu0 0.0
    %794 = vmatprep.subr.mxu0 0.0
    %795 = vmatpush2.msra.mxu0 0.0
    %796 = vmatprep.subr.mxu0 0.0
    %797 = vmatpush2.msra.mxu0 0.0
    %798 = vmatprep.subr.mxu0 0.0
    %799 = vmatpush2.msra.mxu0 0.0
    %800 = vmatprep.subr.mxu0 0.0
    %801 = vmatpush2.msra.mxu0 0.0
    %802 = vmatprep.subr.mxu0 0.0
    %803 = vmatpush2.msra.mxu0 0.0
    %804 = vmatprep.subr.mxu0 0.0
    %805 = vmatpush2.msra.mxu0 0.0
    %806 = vmatprep.subr.mxu0 0.0
    %807 = vmatpush2.msra.mxu0 0.0
    %808 = vmatprep.subr.mxu0 0.0
    %809 = vmatpush2.msra.mxu0 0.0
    %810 = vmatprep.subr.mxu0 0.0
    %811 = vmatpush2.msra.mxu0 0.0
    %812 = vmatprep.subr.mxu0 0.0
    %813 = vmatpush2.msra.mxu0 0.0
    %814 = vmatprep.mubr.f32.mxu0 0.0
    %815 = vmatmul.mubr.f32.gmra.mxu0 %v748
    %v816 = vpop.f32.mrf.mxu0
    %v817 = vadd.f32 0.0, %v816
    %v818 = vpop.f32.mrf.mxu0
    %v819 = vadd.f32 0.0, %v818
    %820 = vdwg.mxu0
    %v822 = vsel %vm746, %v745, 0
    %824 = vmatprep.subr.mxu0 0.0
    %825 = vmatpush1.msra.mxu0 0.0
    %826 = vmatprep.subr.mxu0 0.0
    %827 = vmatpush1.msra.mxu0 0.0
    %828 = vmatprep.subr.mxu0 0.0
    %829 = vmatpush1.msra.mxu0 0.0
    %830 = vmatprep.subr.mxu0 0.0
    %831 = vmatpush1.msra.mxu0 0.0
    %832 = vmatprep.subr.mxu0 0.0
    %833 = vmatpush1.msra.mxu0 0.0
    %834 = vmatprep.subr.mxu0 0.0
    %835 = vmatpush1.msra.mxu0 0.0
    %836 = vmatprep.subr.mxu0 0.0
    %837 = vmatpush1.msra.mxu0 0.0
    %838 = vmatprep.subr.mxu0 0.0
    %839 = vmatpush1.msra.mxu0 0.0
    %840 = vmatprep.subr.mxu0 0.0
    %841 = vmatpush1.msra.mxu0 0.0
    %842 = vmatprep.subr.mxu0 0.0
    %843 = vmatpush1.msra.mxu0 0.0
    %844 = vmatprep.subr.mxu0 0.0
    %845 = vmatpush1.msra.mxu0 0.0
    %846 = vmatprep.subr.mxu0 0.0
    %847 = vmatpush1.msra.mxu0 0.0
    %848 = vmatprep.subr.mxu0 0.0
    %849 = vmatpush1.msra.mxu0 0.0
    %850 = vmatprep.subr.mxu0 0.0
    %851 = vmatpush1.msra.mxu0 0.0
    %852 = vmatprep.subr.mxu0 %v188
    %853 = vmatpush1.msra.mxu0 %v187
    %854 = vmatprep.subr.mxu0 %v186
    %855 = vmatpush1.msra.mxu0 %v185
    %856 = vmatprep.subr.mxu0 0.0
    %857 = vmatpush2.msra.mxu0 0.0
    %858 = vmatprep.subr.mxu0 0.0
    %859 = vmatpush2.msra.mxu0 0.0
    %860 = vmatprep.subr.mxu0 0.0
    %861 = vmatpush2.msra.mxu0 0.0
    %862 = vmatprep.subr.mxu0 0.0
    %863 = vmatpush2.msra.mxu0 0.0
    %864 = vmatprep.subr.mxu0 0.0
    %865 = vmatpush2.msra.mxu0 0.0
    %866 = vmatprep.subr.mxu0 0.0
    %867 = vmatpush2.msra.mxu0 0.0
    %868 = vmatprep.subr.mxu0 0.0
    %869 = vmatpush2.msra.mxu0 0.0
    %870 = vmatprep.subr.mxu0 0.0
    %871 = vmatpush2.msra.mxu0 0.0
    %872 = vmatprep.subr.mxu0 0.0
    %873 = vmatpush2.msra.mxu0 0.0
    %874 = vmatprep.subr.mxu0 0.0
    %875 = vmatpush2.msra.mxu0 0.0
    %876 = vmatprep.subr.mxu0 0.0
    %877 = vmatpush2.msra.mxu0 0.0
    %878 = vmatprep.subr.mxu0 0.0
    %879 = vmatpush2.msra.mxu0 0.0
    %880 = vmatprep.subr.mxu0 0.0
    %881 = vmatpush2.msra.mxu0 0.0
    %882 = vmatprep.subr.mxu0 0.0
    %883 = vmatpush2.msra.mxu0 0.0
    %884 = vmatprep.subr.mxu0 0.0
    %885 = vmatpush2.msra.mxu0 0.0
    %886 = vmatprep.subr.mxu0 0.0
    %887 = vmatpush2.msra.mxu0 0.0
    %888 = vmatprep.mubr.f32.mxu0 0.0
    %889 = vmatmul.mubr.f32.gmra.mxu0 %v822
    %v890 = vpop.f32.mrf.mxu0
    %v891 = vadd.f32 0.0, %v890
    %v892 = vpop.f32.mrf.mxu0
    %v893 = vadd.f32 0.0, %v892
    %894 = vdwg.mxu0
    %v895 = vlaneseq
    %v896 = vshrl.u32 %v895, 7
    %v897 = vsub.s32 0, %v896
    %v898 = vrot.slane %v817, %v897
    %v899 = vlaneseq
    %v900 = vshrl.u32 %v899, 7
    %v901 = vsub.s32 0, %v900
    %v902 = vrot.slane %v819, %v901
    %v903 = vmul.f32 %v350, %v898
    %v904 = vmul.f32 %v436, %v902
    %v905 = vlaneseq
    %v906 = vshrl.u32 %v905, 7
    %v907 = vsub.s32 0, %v906
    %v908 = vrot.slane %v891, %v907
    %v909 = vlaneseq
    %v910 = vshrl.u32 %v909, 7
    %v911 = vsub.s32 0, %v910
    %v912 = vrot.slane %v893, %v911
    %v913 = vadd.f32 %v903, %v908
    %v914 = vadd.f32 %v904, %v912
    %v915 = vld [vmem:[#allocation5 + $0x110] sm:$0xff]
    %v916 = vld [vmem:[#allocation5 + $0x118] sm:$0xff]
    %v917 = vld [vmem:[#allocation5 + $0x120] sm:$0xff]
    %v918 = vld [vmem:[#allocation5 + $0x128] sm:$0xff]
    %v919 = vld [vmem:[#allocation5 + $0x130] sm:$0xff]
    %v920 = vld [vmem:[#allocation5 + $0x138] sm:$0xff]
    %v921 = vld [vmem:[#allocation5 + $0x140] sm:$0xff]
    %v922 = vld [vmem:[#allocation5 + $0x148] sm:$0xff]
    %v923 = vld [vmem:[#allocation5 + $0x150] sm:$0xff]
    %v924 = vld [vmem:[#allocation5 + $0x158] sm:$0xff]
    %v925 = vld [vmem:[#allocation5 + $0x160] sm:$0xff]
    %v926 = vld [vmem:[#allocation5 + $0x168] sm:$0xff]
    %v927 = vld [vmem:[#allocation5 + $0x170] sm:$0xff]
    %v928 = vld [vmem:[#allocation5 + $0x178] sm:$0xff]
    %v929 = vld [vmem:[#allocation5 + $0x180] sm:$0xff]
    %v930 = vld [vmem:[#allocation5 + $0x188] sm:$0xff]
    %v931 = vld [vmem:[#allocation5 + $0x190] sm:$0xff]
    %v932 = vld [vmem:[#allocation5 + $0x198] sm:$0xff]
    %v933 = vld [vmem:[#allocation5 + $0x1a0] sm:$0xff]
    %v934 = vld [vmem:[#allocation5 + $0x1a8] sm:$0xff]
    %v935 = vld [vmem:[#allocation5 + $0x1b0] sm:$0xff]
    %v936 = vld [vmem:[#allocation5 + $0x1b8] sm:$0xff]
    %v937 = vld [vmem:[#allocation5 + $0x1c0] sm:$0xff]
    %v938 = vld [vmem:[#allocation5 + $0x1c8] sm:$0xff]
    %v939 = vld [vmem:[#allocation5 + $0x1d0] sm:$0xff]
    %v940 = vld [vmem:[#allocation5 + $0x1d8] sm:$0xff]
    %v942 = vsel %vm589, %v914, 0
    %944 = vmatprep.subr.mxu0 0.0
    %945 = vmatpush1.msra.mxu0 %v930
    %946 = vmatprep.subr.mxu0 0.0
    %947 = vmatpush1.msra.mxu0 %v929
    %948 = vmatprep.subr.mxu0 0.0
    %949 = vmatpush1.msra.mxu0 %v928
    %950 = vmatprep.subr.mxu0 0.0
    %951 = vmatpush1.msra.mxu0 %v927
    %952 = vmatprep.subr.mxu0 0.0
    %953 = vmatpush1.msra.mxu0 %v926
    %954 = vmatprep.subr.mxu0 0.0
    %955 = vmatpush1.msra.mxu0 %v925
    %956 = vmatprep.subr.mxu0 0.0
    %957 = vmatpush1.msra.mxu0 %v924
    %958 = vmatprep.subr.mxu0 0.0
    %959 = vmatpush1.msra.mxu0 %v923
    %960 = vmatprep.subr.mxu0 0.0
    %961 = vmatpush1.msra.mxu0 %v922
    %962 = vmatprep.subr.mxu0 0.0
    %963 = vmatpush1.msra.mxu0 %v921
    %964 = vmatprep.subr.mxu0 0.0
    %965 = vmatpush1.msra.mxu0 %v920
    %966 = vmatprep.subr.mxu0 0.0
    %967 = vmatpush1.msra.mxu0 %v919
    %968 = vmatprep.subr.mxu0 0.0
    %969 = vmatpush1.msra.mxu0 %v918
    %970 = vmatprep.subr.mxu0 0.0
    %971 = vmatpush1.msra.mxu0 %v917
    %972 = vmatprep.subr.mxu0 0.0
    %973 = vmatpush1.msra.mxu0 %v916
    %974 = vmatprep.subr.mxu0 0.0
    %975 = vmatpush1.msra.mxu0 %v915
    %976 = vmatprep.subr.mxu0 0.0
    %977 = vmatpush2.msra.mxu0 0.0
    %978 = vmatprep.subr.mxu0 0.0
    %979 = vmatpush2.msra.mxu0 0.0
    %980 = vmatprep.subr.mxu0 0.0
    %981 = vmatpush2.msra.mxu0 0.0
    %982 = vmatprep.subr.mxu0 0.0
    %983 = vmatpush2.msra.mxu0 0.0
    %984 = vmatprep.subr.mxu0 0.0
    %985 = vmatpush2.msra.mxu0 0.0
    %986 = vmatprep.subr.mxu0 0.0
    %987 = vmatpush2.msra.mxu0 0.0
    %988 = vmatprep.subr.mxu0 0.0
    %989 = vmatpush2.msra.mxu0 %v940
    %990 = vmatprep.subr.mxu0 0.0
    %991 = vmatpush2.msra.mxu0 %v939
    %992 = vmatprep.subr.mxu0 0.0
    %993 = vmatpush2.msra.mxu0 %v938
    %994 = vmatprep.subr.mxu0 0.0
    %995 = vmatpush2.msra.mxu0 %v937
    %996 = vmatprep.subr.mxu0 0.0
    %997 = vmatpush2.msra.mxu0 %v936
    %998 = vmatprep.subr.mxu0 0.0
    %999 = vmatpush2.msra.mxu0 %v935
    %1000 = vmatprep.subr.mxu0 0.0
    %1001 = vmatpush2.msra.mxu0 %v934
    %1002 = vmatprep.subr.mxu0 0.0
    %1003 = vmatpush2.msra.mxu0 %v933
    %1004 = vmatprep.subr.mxu0 0.0
    %1005 = vmatpush2.msra.mxu0 %v932
    %1006 = vmatprep.subr.mxu0 0.0
    %1007 = vmatpush2.msra.mxu0 %v931
    %1008 = vmatprep.mubr.f32.mxu0 %v942
    %1009 = vmatmul.mubr.f32.gmra.mxu0 %v913
    %v1010 = vpop.f32.mrf.mxu0
    %v1011 = vadd.f32 0.0, %v1010
    %v1012 = vpop.f32.mrf.mxu0
    %1013 = vdwg.mxu0
    %v1014 = vld [vmem:[#allocation5 + $0x1e0] sm:$0x1]
    %v1015 = vld [vmem:[#allocation5 + $0x1e8] sm:$0x1]
    %1016 = vmatprep.subr.mxu0 0.0
    %1017 = vmatpush1.msra.mxu0 0.0
    %1018 = vmatprep.subr.mxu0 0.0
    %1019 = vmatpush1.msra.mxu0 0.0
    %1020 = vmatprep.subr.mxu0 0.0
    %1021 = vmatpush1.msra.mxu0 0.0
    %1022 = vmatprep.subr.mxu0 0.0
    %1023 = vmatpush1.msra.mxu0 0.0
    %1024 = vmatprep.subr.mxu0 0.0
    %1025 = vmatpush1.msra.mxu0 0.0
    %1026 = vmatprep.subr.mxu0 0.0
    %1027 = vmatpush1.msra.mxu0 0.0
    %1028 = vmatprep.subr.mxu0 0.0
    %1029 = vmatpush1.msra.mxu0 0.0
    %1030 = vmatprep.subr.mxu0 0.0
    %1031 = vmatpush1.msra.mxu0 0.0
    %1032 = vmatprep.subr.mxu0 0.0
    %1033 = vmatpush1.msra.mxu0 0.0
    %1034 = vmatprep.subr.mxu0 0.0
    %1035 = vmatpush1.msra.mxu0 0.0
    %1036 = vmatprep.subr.mxu0 0.0
    %1037 = vmatpush1.msra.mxu0 0.0
    %1038 = vmatprep.subr.mxu0 0.0
    %1039 = vmatpush1.msra.mxu0 0.0
    %1040 = vmatprep.subr.mxu0 0.0
    %1041 = vmatpush1.msra.mxu0 0.0
    %1042 = vmatprep.subr.mxu0 0.0
    %1043 = vmatpush1.msra.mxu0 0.0
    %1044 = vmatprep.subr.mxu0 0.0
    %1045 = vmatpush1.msra.mxu0 0.0
    %1046 = vmatprep.subr.mxu0 0.0
    %1047 = vmatpush1.msra.mxu0 %v1011
    %1048 = vmatprep.subr.mxu0 0.0
    %1049 = vmatpush2.msra.mxu0 0.0
    %1050 = vmatprep.subr.mxu0 0.0
    %1051 = vmatpush2.msra.mxu0 0.0
    %1052 = vmatprep.subr.mxu0 0.0
    %1053 = vmatpush2.msra.mxu0 0.0
    %1054 = vmatprep.subr.mxu0 0.0
    %1055 = vmatpush2.msra.mxu0 0.0
    %1056 = vmatprep.subr.mxu0 0.0
    %1057 = vmatpush2.msra.mxu0 0.0
    %1058 = vmatprep.subr.mxu0 0.0
    %1059 = vmatpush2.msra.mxu0 0.0
    %1060 = vmatprep.subr.mxu0 0.0
    %1061 = vmatpush2.msra.mxu0 0.0
    %1062 = vmatprep.subr.mxu0 0.0
    %1063 = vmatpush2.msra.mxu0 0.0
    %1064 = vmatprep.subr.mxu0 0.0
    %1065 = vmatpush2.msra.mxu0 0.0
    %1066 = vmatprep.subr.mxu0 0.0
    %1067 = vmatpush2.msra.mxu0 0.0
    %1068 = vmatprep.subr.mxu0 0.0
    %1069 = vmatpush2.msra.mxu0 0.0
    %1070 = vmatprep.subr.mxu0 0.0
    %1071 = vmatpush2.msra.mxu0 0.0
    %1072 = vmatprep.subr.mxu0 0.0
    %1073 = vmatpush2.msra.mxu0 0.0
    %1074 = vmatprep.subr.mxu0 0.0
    %1075 = vmatpush2.msra.mxu0 0.0
    %1076 = vmatprep.subr.mxu0 0.0
    %1077 = vmatpush2.msra.mxu0 0.0
    %1078 = vmatprep.subr.mxu0 0.0
    %1079 = vmatpush2.msra.mxu0 0.0
    %1080 = vmatprep.mubr.f32.mxu0 0.0
    %1081 = vmatmul.mubr.f32.gmra.mxu0 %v443
    %v1082 = vpop.f32.mrf.mxu0
    %v1083 = vadd.f32 0.0, %v1082
    %v1084 = vpop.f32.mrf.mxu0
    %1085 = vdwg.mxu0
    %v1086 = vmul.f32 %v1011, %v1011
    %1087 = vmatprep.subr.mxu0 0.0
    %1088 = vmatpush1.msra.mxu0 0.0
    %1089 = vmatprep.subr.mxu0 0.0
    %1090 = vmatpush1.msra.mxu0 0.0
    %1091 = vmatprep.subr.mxu0 0.0
    %1092 = vmatpush1.msra.mxu0 0.0
    %1093 = vmatprep.subr.mxu0 0.0
    %1094 = vmatpush1.msra.mxu0 0.0
    %1095 = vmatprep.subr.mxu0 0.0
    %1096 = vmatpush1.msra.mxu0 0.0
    %1097 = vmatprep.subr.mxu0 0.0
    %1098 = vmatpush1.msra.mxu0 0.0
    %1099 = vmatprep.subr.mxu0 0.0
    %1100 = vmatpush1.msra.mxu0 0.0
    %1101 = vmatprep.subr.mxu0 0.0
    %1102 = vmatpush1.msra.mxu0 0.0
    %1103 = vmatprep.subr.mxu0 0.0
    %1104 = vmatpush1.msra.mxu0 0.0
    %1105 = vmatprep.subr.mxu0 0.0
    %1106 = vmatpush1.msra.mxu0 0.0
    %1107 = vmatprep.subr.mxu0 0.0
    %1108 = vmatpush1.msra.mxu0 0.0
    %1109 = vmatprep.subr.mxu0 0.0
    %1110 = vmatpush1.msra.mxu0 0.0
    %1111 = vmatprep.subr.mxu0 0.0
    %1112 = vmatpush1.msra.mxu0 0.0
    %1113 = vmatprep.subr.mxu0 0.0
    %1114 = vmatpush1.msra.mxu0 0.0
    %1115 = vmatprep.subr.mxu0 0.0
    %1116 = vmatpush1.msra.mxu0 0.0
    %1117 = vmatprep.subr.mxu0 0.0
    %1118 = vmatpush1.msra.mxu0 %v1086
    %1119 = vmatprep.subr.mxu0 0.0
    %1120 = vmatpush2.msra.mxu0 0.0
    %1121 = vmatprep.subr.mxu0 0.0
    %1122 = vmatpush2.msra.mxu0 0.0
    %1123 = vmatprep.subr.mxu0 0.0
    %1124 = vmatpush2.msra.mxu0 0.0
    %1125 = vmatprep.subr.mxu0 0.0
    %1126 = vmatpush2.msra.mxu0 0.0
    %1127 = vmatprep.subr.mxu0 0.0
    %1128 = vmatpush2.msra.mxu0 0.0
    %1129 = vmatprep.subr.mxu0 0.0
    %1130 = vmatpush2.msra.mxu0 0.0
    %1131 = vmatprep.subr.mxu0 0.0
    %1132 = vmatpush2.msra.mxu0 0.0
    %1133 = vmatprep.subr.mxu0 0.0
    %1134 = vmatpush2.msra.mxu0 0.0
    %1135 = vmatprep.subr.mxu0 0.0
    %1136 = vmatpush2.msra.mxu0 0.0
    %1137 = vmatprep.subr.mxu0 0.0
    %1138 = vmatpush2.msra.mxu0 0.0
    %1139 = vmatprep.subr.mxu0 0.0
    %1140 = vmatpush2.msra.mxu0 0.0
    %1141 = vmatprep.subr.mxu0 0.0
    %1142 = vmatpush2.msra.mxu0 0.0
    %1143 = vmatprep.subr.mxu0 0.0
    %1144 = vmatpush2.msra.mxu0 0.0
    %1145 = vmatprep.subr.mxu0 0.0
    %1146 = vmatpush2.msra.mxu0 0.0
    %1147 = vmatprep.subr.mxu0 0.0
    %1148 = vmatpush2.msra.mxu0 0.0
    %1149 = vmatprep.subr.mxu0 0.0
    %1150 = vmatpush2.msra.mxu0 0.0
    %1151 = vmatprep.mubr.f32.mxu0 0.0
    %1152 = vmatmul.mubr.f32.gmra.mxu0 %v443
    %v1153 = vpop.f32.mrf.mxu0
    %v1154 = vadd.f32 0.0, %v1153
    %v1155 = vpop.f32.mrf.mxu0
    %1156 = vdwg.mxu0
    %1157 = vmatprep.subr.mxu0 0.0
    %1158 = vmatpush1.msra.mxu0 %v252
    %1159 = vmatprep.subr.mxu0 0.0
    %1160 = vmatpush1.msra.mxu0 %v251
    %1161 = vmatprep.subr.mxu0 0.0
    %1162 = vmatpush1.msra.mxu0 %v250
    %1163 = vmatprep.subr.mxu0 0.0
    %1164 = vmatpush1.msra.mxu0 %v249
    %1165 = vmatprep.subr.mxu0 0.0
    %1166 = vmatpush1.msra.mxu0 %v248
    %1167 = vmatprep.subr.mxu0 0.0
    %1168 = vmatpush1.msra.mxu0 %v247
    %1169 = vmatprep.subr.mxu0 0.0
    %1170 = vmatpush1.msra.mxu0 %v246
    %1171 = vmatprep.subr.mxu0 0.0
    %1172 = vmatpush1.msra.mxu0 %v245
    %1173 = vmatprep.subr.mxu0 0.0
    %1174 = vmatpush1.msra.mxu0 %v244
    %1175 = vmatprep.subr.mxu0 0.0
    %1176 = vmatpush1.msra.mxu0 %v243
    %1177 = vmatprep.subr.mxu0 0.0
    %1178 = vmatpush1.msra.mxu0 %v242
    %1179 = vmatprep.subr.mxu0 0.0
    %1180 = vmatpush1.msra.mxu0 %v241
    %1181 = vmatprep.subr.mxu0 0.0
    %1182 = vmatpush1.msra.mxu0 %v240
    %1183 = vmatprep.subr.mxu0 0.0
    %1184 = vmatpush1.msra.mxu0 %v239
    %1185 = vmatprep.subr.mxu0 0.0
    %1186 = vmatpush1.msra.mxu0 %v238
    %1187 = vmatprep.subr.mxu0 0.0
    %1188 = vmatpush1.msra.mxu0 %v237
    %1189 = vmatprep.subr.mxu0 0.0
    %1190 = vmatpush2.msra.mxu0 0.0
    %1191 = vmatprep.subr.mxu0 0.0
    %1192 = vmatpush2.msra.mxu0 0.0
    %1193 = vmatprep.subr.mxu0 0.0
    %1194 = vmatpush2.msra.mxu0 0.0
    %1195 = vmatprep.subr.mxu0 0.0
    %1196 = vmatpush2.msra.mxu0 0.0
    %1197 = vmatprep.subr.mxu0 0.0
    %1198 = vmatpush2.msra.mxu0 0.0
    %1199 = vmatprep.subr.mxu0 0.0
    %1200 = vmatpush2.msra.mxu0 0.0
    %1201 = vmatprep.subr.mxu0 0.0
    %1202 = vmatpush2.msra.mxu0 0.0
    %1203 = vmatprep.subr.mxu0 0.0
    %1204 = vmatpush2.msra.mxu0 0.0
    %1205 = vmatprep.subr.mxu0 0.0
    %1206 = vmatpush2.msra.mxu0 0.0
    %1207 = vmatprep.subr.mxu0 0.0
    %1208 = vmatpush2.msra.mxu0 0.0
    %1209 = vmatprep.subr.mxu0 0.0
    %1210 = vmatpush2.msra.mxu0 0.0
    %1211 = vmatprep.subr.mxu0 0.0
    %1212 = vmatpush2.msra.mxu0 0.0
    %1213 = vmatprep.subr.mxu0 0.0
    %1214 = vmatpush2.msra.mxu0 0.0
    %1215 = vmatprep.subr.mxu0 0.0
    %1216 = vmatpush2.msra.mxu0 0.0
    %1217 = vmatprep.subr.mxu0 0.0
    %1218 = vmatpush2.msra.mxu0 0.0
    %1219 = vmatprep.subr.mxu0 0.0
    %1220 = vmatpush2.msra.mxu0 0.0
    %1221 = vmatprep.mubr.f32.mxu0 0.0
    %1222 = vmatmul.mubr.f32.gmra.mxu0 %v1083
    %v1223 = vpop.f32.mrf.mxu0
    %v1224 = vadd.f32 0.0, %v1223
    %v1225 = vpop.f32.mrf.mxu0
    %1226 = vdwg.mxu0
    %v1227 = vmul.f32 %v1224, 0.0625
    %1228 = vmatprep.subr.mxu0 0.0
    %1229 = vmatpush1.msra.mxu0 %v252
    %1230 = vmatprep.subr.mxu0 0.0
    %1231 = vmatpush1.msra.mxu0 %v251
    %1232 = vmatprep.subr.mxu0 0.0
    %1233 = vmatpush1.msra.mxu0 %v250
    %1234 = vmatprep.subr.mxu0 0.0
    %1235 = vmatpush1.msra.mxu0 %v249
    %1236 = vmatprep.subr.mxu0 0.0
    %1237 = vmatpush1.msra.mxu0 %v248
    %1238 = vmatprep.subr.mxu0 0.0
    %1239 = vmatpush1.msra.mxu0 %v247
    %1240 = vmatprep.subr.mxu0 0.0
    %1241 = vmatpush1.msra.mxu0 %v246
    %1242 = vmatprep.subr.mxu0 0.0
    %1243 = vmatpush1.msra.mxu0 %v245
    %1244 = vmatprep.subr.mxu0 0.0
    %1245 = vmatpush1.msra.mxu0 %v244
    %1246 = vmatprep.subr.mxu0 0.0
    %1247 = vmatpush1.msra.mxu0 %v243
    %1248 = vmatprep.subr.mxu0 0.0
    %1249 = vmatpush1.msra.mxu0 %v242
    %1250 = vmatprep.subr.mxu0 0.0
    %1251 = vmatpush1.msra.mxu0 %v241
    %1252 = vmatprep.subr.mxu0 0.0
    %1253 = vmatpush1.msra.mxu0 %v240
    %1254 = vmatprep.subr.mxu0 0.0
    %1255 = vmatpush1.msra.mxu0 %v239
    %1256 = vmatprep.subr.mxu0 0.0
    %1257 = vmatpush1.msra.mxu0 %v238
    %1258 = vmatprep.subr.mxu0 0.0
    %1259 = vmatpush1.msra.mxu0 %v237
    %1260 = vmatprep.subr.mxu0 0.0
    %1261 = vmatpush2.msra.mxu0 0.0
    %1262 = vmatprep.subr.mxu0 0.0
    %1263 = vmatpush2.msra.mxu0 0.0
    %1264 = vmatprep.subr.mxu0 0.0
    %1265 = vmatpush2.msra.mxu0 0.0
    %1266 = vmatprep.subr.mxu0 0.0
    %1267 = vmatpush2.msra.mxu0 0.0
    %1268 = vmatprep.subr.mxu0 0.0
    %1269 = vmatpush2.msra.mxu0 0.0
    %1270 = vmatprep.subr.mxu0 0.0
    %1271 = vmatpush2.msra.mxu0 0.0
    %1272 = vmatprep.subr.mxu0 0.0
    %1273 = vmatpush2.msra.mxu0 0.0
    %1274 = vmatprep.subr.mxu0 0.0
    %1275 = vmatpush2.msra.mxu0 0.0
    %1276 = vmatprep.subr.mxu0 0.0
    %1277 = vmatpush2.msra.mxu0 0.0
    %1278 = vmatprep.subr.mxu0 0.0
    %1279 = vmatpush2.msra.mxu0 0.0
    %1280 = vmatprep.subr.mxu0 0.0
    %1281 = vmatpush2.msra.mxu0 0.0
    %1282 = vmatprep.subr.mxu0 0.0
    %1283 = vmatpush2.msra.mxu0 0.0
    %1284 = vmatprep.subr.mxu0 0.0
    %1285 = vmatpush2.msra.mxu0 0.0
    %1286 = vmatprep.subr.mxu0 0.0
    %1287 = vmatpush2.msra.mxu0 0.0
    %1288 = vmatprep.subr.mxu0 0.0
    %1289 = vmatpush2.msra.mxu0 0.0
    %1290 = vmatprep.subr.mxu0 0.0
    %1291 = vmatpush2.msra.mxu0 0.0
    %1292 = vmatprep.mubr.f32.mxu0 0.0
    %1293 = vmatmul.mubr.f32.gmra.mxu0 %v1154
    %v1294 = vpop.f32.mrf.mxu0
    %v1295 = vadd.f32 0.0, %v1294
    %v1296 = vpop.f32.mrf.mxu0
    %1297 = vdwg.mxu0
    %v1298 = vmul.f32 %v1295, 0.0625
    %v1299 = vmul.f32 %v1227, %v1227
    %v1300 = vsub.f32 %v1298, %v1299
    %v1301 = vmax.f32 %v1300, 0.0
    %v1302 = vadd.f32 %v1301, 1e-05
    %v1303 = vrsqrt.pop %v1302
    %v1304 = vmul.f32 %v1014, %v1303
    %v1305 = vmul.f32 %v1227, %v1304
    %v1306 = vsub.f32 %v1015, %v1305
    %vm1307 = vcmask 261120
    %v1309 = vsel %vm1307, %v1304, 0
    %1311 = vmatprep.subr.mxu0 0.0
    %1312 = vmatpush1.msra.mxu0 0.0
    %1313 = vmatprep.subr.mxu0 0.0
    %1314 = vmatpush1.msra.mxu0 0.0
    %1315 = vmatprep.subr.mxu0 0.0
    %1316 = vmatpush1.msra.mxu0 0.0
    %1317 = vmatprep.subr.mxu0 0.0
    %1318 = vmatpush1.msra.mxu0 0.0
    %1319 = vmatprep.subr.mxu0 0.0
    %1320 = vmatpush1.msra.mxu0 0.0
    %1321 = vmatprep.subr.mxu0 0.0
    %1322 = vmatpush1.msra.mxu0 0.0
    %1323 = vmatprep.subr.mxu0 0.0
    %1324 = vmatpush1.msra.mxu0 0.0
    %1325 = vmatprep.subr.mxu0 0.0
    %1326 = vmatpush1.msra.mxu0 0.0
    %1327 = vmatprep.subr.mxu0 0.0
    %1328 = vmatpush1.msra.mxu0 0.0
    %1329 = vmatprep.subr.mxu0 0.0
    %1330 = vmatpush1.msra.mxu0 0.0
    %1331 = vmatprep.subr.mxu0 0.0
    %1332 = vmatpush1.msra.mxu0 0.0
    %1333 = vmatprep.subr.mxu0 0.0
    %1334 = vmatpush1.msra.mxu0 0.0
    %1335 = vmatprep.subr.mxu0 0.0
    %1336 = vmatpush1.msra.mxu0 %v265
    %1337 = vmatprep.subr.mxu0 0.0
    %1338 = vmatpush1.msra.mxu0 %v264
    %1339 = vmatprep.subr.mxu0 0.0
    %1340 = vmatpush1.msra.mxu0 %v263
    %1341 = vmatprep.subr.mxu0 0.0
    %1342 = vmatpush1.msra.mxu0 %v262
    %1343 = vmatprep.subr.mxu0 0.0
    %1344 = vmatpush2.msra.mxu0 0.0
    %1345 = vmatprep.subr.mxu0 0.0
    %1346 = vmatpush2.msra.mxu0 0.0
    %1347 = vmatprep.subr.mxu0 0.0
    %1348 = vmatpush2.msra.mxu0 0.0
    %1349 = vmatprep.subr.mxu0 0.0
    %1350 = vmatpush2.msra.mxu0 0.0
    %1351 = vmatprep.subr.mxu0 0.0
    %1352 = vmatpush2.msra.mxu0 0.0
    %1353 = vmatprep.subr.mxu0 0.0
    %1354 = vmatpush2.msra.mxu0 0.0
    %1355 = vmatprep.subr.mxu0 0.0
    %1356 = vmatpush2.msra.mxu0 0.0
    %1357 = vmatprep.subr.mxu0 0.0
    %1358 = vmatpush2.msra.mxu0 0.0
    %1359 = vmatprep.subr.mxu0 0.0
    %1360 = vmatpush2.msra.mxu0 0.0
    %1361 = vmatprep.subr.mxu0 0.0
    %1362 = vmatpush2.msra.mxu0 0.0
    %1363 = vmatprep.subr.mxu0 0.0
    %1364 = vmatpush2.msra.mxu0 0.0
    %1365 = vmatprep.subr.mxu0 0.0
    %1366 = vmatpush2.msra.mxu0 0.0
    %1367 = vmatprep.subr.mxu0 0.0
    %1368 = vmatpush2.msra.mxu0 0.0
    %1369 = vmatprep.subr.mxu0 0.0
    %1370 = vmatpush2.msra.mxu0 0.0
    %1371 = vmatprep.subr.mxu0 0.0
    %1372 = vmatpush2.msra.mxu0 0.0
    %1373 = vmatprep.subr.mxu0 0.0
    %1374 = vmatpush2.msra.mxu0 0.0
    %1375 = vmatprep.mubr.f32.mxu0 0.0
    %1376 = vmatmul.mubr.f32.gmra.mxu0 %v1309
    %v1377 = vpop.f32.mrf.mxu0
    %v1378 = vadd.f32 0.0, %v1377
    %v1379 = vpop.f32.mrf.mxu0
    %1380 = vdwg.mxu0
    %v1382 = vsel %vm1307, %v1306, 0
    %1384 = vmatprep.subr.mxu0 0.0
    %1385 = vmatpush1.msra.mxu0 0.0
    %1386 = vmatprep.subr.mxu0 0.0
    %1387 = vmatpush1.msra.mxu0 0.0
    %1388 = vmatprep.subr.mxu0 0.0
    %1389 = vmatpush1.msra.mxu0 0.0
    %1390 = vmatprep.subr.mxu0 0.0
    %1391 = vmatpush1.msra.mxu0 0.0
    %1392 = vmatprep.subr.mxu0 0.0
    %1393 = vmatpush1.msra.mxu0 0.0
    %1394 = vmatprep.subr.mxu0 0.0
    %1395 = vmatpush1.msra.mxu0 0.0
    %1396 = vmatprep.subr.mxu0 0.0
    %1397 = vmatpush1.msra.mxu0 0.0
    %1398 = vmatprep.subr.mxu0 0.0
    %1399 = vmatpush1.msra.mxu0 0.0
    %1400 = vmatprep.subr.mxu0 0.0
    %1401 = vmatpush1.msra.mxu0 0.0
    %1402 = vmatprep.subr.mxu0 0.0
    %1403 = vmatpush1.msra.mxu0 0.0
    %1404 = vmatprep.subr.mxu0 0.0
    %1405 = vmatpush1.msra.mxu0 0.0
    %1406 = vmatprep.subr.mxu0 0.0
    %1407 = vmatpush1.msra.mxu0 0.0
    %1408 = vmatprep.subr.mxu0 0.0
    %1409 = vmatpush1.msra.mxu0 %v265
    %1410 = vmatprep.subr.mxu0 0.0
    %1411 = vmatpush1.msra.mxu0 %v264
    %1412 = vmatprep.subr.mxu0 0.0
    %1413 = vmatpush1.msra.mxu0 %v263
    %1414 = vmatprep.subr.mxu0 0.0
    %1415 = vmatpush1.msra.mxu0 %v262
    %1416 = vmatprep.subr.mxu0 0.0
    %1417 = vmatpush2.msra.mxu0 0.0
    %1418 = vmatprep.subr.mxu0 0.0
    %1419 = vmatpush2.msra.mxu0 0.0
    %1420 = vmatprep.subr.mxu0 0.0
    %1421 = vmatpush2.msra.mxu0 0.0
    %1422 = vmatprep.subr.mxu0 0.0
    %1423 = vmatpush2.msra.mxu0 0.0
    %1424 = vmatprep.subr.mxu0 0.0
    %1425 = vmatpush2.msra.mxu0 0.0
    %1426 = vmatprep.subr.mxu0 0.0
    %1427 = vmatpush2.msra.mxu0 0.0
    %1428 = vmatprep.subr.mxu0 0.0
    %1429 = vmatpush2.msra.mxu0 0.0
    %1430 = vmatprep.subr.mxu0 0.0
    %1431 = vmatpush2.msra.mxu0 0.0
    %1432 = vmatprep.subr.mxu0 0.0
    %1433 = vmatpush2.msra.mxu0 0.0
    %1434 = vmatprep.subr.mxu0 0.0
    %1435 = vmatpush2.msra.mxu0 0.0
    %1436 = vmatprep.subr.mxu0 0.0
    %1437 = vmatpush2.msra.mxu0 0.0
    %1438 = vmatprep.subr.mxu0 0.0
    %1439 = vmatpush2.msra.mxu0 0.0
    %1440 = vmatprep.subr.mxu0 0.0
    %1441 = vmatpush2.msra.mxu0 0.0
    %1442 = vmatprep.subr.mxu0 0.0
    %1443 = vmatpush2.msra.mxu0 0.0
    %1444 = vmatprep.subr.mxu0 0.0
    %1445 = vmatpush2.msra.mxu0 0.0
    %1446 = vmatprep.subr.mxu0 0.0
    %1447 = vmatpush2.msra.mxu0 0.0
    %1448 = vmatprep.mubr.f32.mxu0 0.0
    %1449 = vmatmul.mubr.f32.gmra.mxu0 %v1382
    %v1450 = vpop.f32.mrf.mxu0
    %v1451 = vadd.f32 0.0, %v1450
    %v1452 = vpop.f32.mrf.mxu0
    %1453 = vdwg.mxu0
    %v1454 = vlaneseq
    %v1455 = vshrl.u32 %v1454, 7
    %v1456 = vsub.s32 0, %v1455
    %v1457 = vrot.slane %v1378, %v1456
    %v1458 = vmul.f32 %v1011, %v1457
    %v1459 = vlaneseq
    %v1460 = vshrl.u32 %v1459, 7
    %v1461 = vsub.s32 0, %v1460
    %v1462 = vrot.slane %v1451, %v1461
    %v1463 = vadd.f32 %v1458, %v1462
    %v1464 = vld [vmem:[#allocation5 + $0x1f0] sm:$0xff]
    %v1465 = vld [vmem:[#allocation5 + $0x1f8] sm:$0xff]
    %v1466 = vld [vmem:[#allocation5 + $0x200] sm:$0xff]
    %v1467 = vld [vmem:[#allocation5 + $0x208] sm:$0xff]
    %v1468 = vld [vmem:[#allocation5 + $0x210] sm:$0xff]
    %v1469 = vld [vmem:[#allocation5 + $0x218] sm:$0xff]
    %v1470 = vld [vmem:[#allocation5 + $0x220] sm:$0xff]
    %v1471 = vld [vmem:[#allocation5 + $0x228] sm:$0xff]
    %v1472 = vld [vmem:[#allocation5 + $0x230] sm:$0xff]
    %v1473 = vld [vmem:[#allocation5 + $0x238] sm:$0xff]
    %v1474 = vld [vmem:[#allocation5 + $0x240] sm:$0xff]
    %v1475 = vld [vmem:[#allocation5 + $0x248] sm:$0xff]
    %v1476 = vld [vmem:[#allocation5 + $0x250] sm:$0xff]
    %v1477 = vld [vmem:[#allocation5 + $0x258] sm:$0xff]
    %v1478 = vld [vmem:[#allocation5 + $0x260] sm:$0xff]
    %v1479 = vld [vmem:[#allocation5 + $0x268] sm:$0xff]
    %v1480 = vld [vmem:[#allocation5 + $0x270] sm:$0x1]
    %v1481 = vlaneseq
    %v1482 = vshrl.u32 %v1481, 7
    %v1483 = vsub.s32 0, %v1482
    %v1484 = vrot.slane %v1480, %v1483
    %1485 = vmatprep.subr.mxu0 0.0
    %1486 = vmatpush1.msra.mxu0 %v1479
    %1487 = vmatprep.subr.mxu0 0.0
    %1488 = vmatpush1.msra.mxu0 %v1478
    %1489 = vmatprep.subr.mxu0 0.0
    %1490 = vmatpush1.msra.mxu0 %v1477
    %1491 = vmatprep.subr.mxu0 0.0
    %1492 = vmatpush1.msra.mxu0 %v1476
    %1493 = vmatprep.subr.mxu0 0.0
    %1494 = vmatpush1.msra.mxu0 %v1475
    %1495 = vmatprep.subr.mxu0 0.0
    %1496 = vmatpush1.msra.mxu0 %v1474
    %1497 = vmatprep.subr.mxu0 0.0
    %1498 = vmatpush1.msra.mxu0 %v1473
    %1499 = vmatprep.subr.mxu0 0.0
    %1500 = vmatpush1.msra.mxu0 %v1472
    %1501 = vmatprep.subr.mxu0 0.0
    %1502 = vmatpush1.msra.mxu0 %v1471
    %1503 = vmatprep.subr.mxu0 0.0
    %1504 = vmatpush1.msra.mxu0 %v1470
    %1505 = vmatprep.subr.mxu0 0.0
    %1506 = vmatpush1.msra.mxu0 %v1469
    %1507 = vmatprep.subr.mxu0 0.0
    %1508 = vmatpush1.msra.mxu0 %v1468
    %1509 = vmatprep.subr.mxu0 0.0
    %1510 = vmatpush1.msra.mxu0 %v1467
    %1511 = vmatprep.subr.mxu0 0.0
    %1512 = vmatpush1.msra.mxu0 %v1466
    %1513 = vmatprep.subr.mxu0 0.0
    %1514 = vmatpush1.msra.mxu0 %v1465
    %1515 = vmatprep.subr.mxu0 0.0
    %1516 = vmatpush1.msra.mxu0 %v1464
    %1517 = vmatprep.subr.mxu0 0.0
    %1518 = vmatpush2.msra.mxu0 0.0
    %1519 = vmatprep.subr.mxu0 0.0
    %1520 = vmatpush2.msra.mxu0 0.0
    %1521 = vmatprep.subr.mxu0 0.0
    %1522 = vmatpush2.msra.mxu0 0.0
    %1523 = vmatprep.subr.mxu0 0.0
    %1524 = vmatpush2.msra.mxu0 0.0
    %1525 = vmatprep.subr.mxu0 0.0
    %1526 = vmatpush2.msra.mxu0 0.0
    %1527 = vmatprep.subr.mxu0 0.0
    %1528 = vmatpush2.msra.mxu0 0.0
    %1529 = vmatprep.subr.mxu0 0.0
    %1530 = vmatpush2.msra.mxu0 0.0
    %1531 = vmatprep.subr.mxu0 0.0
    %1532 = vmatpush2.msra.mxu0 0.0
    %1533 = vmatprep.subr.mxu0 0.0
    %1534 = vmatpush2.msra.mxu0 0.0
    %1535 = vmatprep.subr.mxu0 0.0
    %1536 = vmatpush2.msra.mxu0 0.0
    %1537 = vmatprep.subr.mxu0 0.0
    %1538 = vmatpush2.msra.mxu0 0.0
    %1539 = vmatprep.subr.mxu0 0.0
    %1540 = vmatpush2.msra.mxu0 0.0
    %1541 = vmatprep.subr.mxu0 0.0
    %1542 = vmatpush2.msra.mxu0 0.0
    %1543 = vmatprep.subr.mxu0 0.0
    %1544 = vmatpush2.msra.mxu0 0.0
    %1545 = vmatprep.subr.mxu0 0.0
    %1546 = vmatpush2.msra.mxu0 0.0
    %1547 = vmatprep.subr.mxu0 0.0
    %1548 = vmatpush2.msra.mxu0 0.0
    %1549 = vmatprep.mubr.f32.mxu0 0.0
    %1550 = vmatmul.mubr.f32.gmra.mxu0 %v1463
    %v1551 = vpop.f32.mrf.mxu0
    %v1552 = vadd.f32 %v1484, %v1551
    %v1553 = vpop.f32.mrf.mxu0
    %1554 = vdwg.mxu0
    %vm1555 = vcmp.gt.f32.partialorder %v1552, 0.0
    %v1556 = vmul.f32 %v1552, 0.1
    %v1557 = vsel %vm1555, %v1552, %v1556
    %v1558 = vld [vmem:[#allocation5 + $0x278] sm:$0xff]
    %v1559 = vld [vmem:[#allocation5 + $0x280] sm:$0xff]
    %v1560 = vld [vmem:[#allocation5 + $0x288] sm:$0xff]
    %v1561 = vld [vmem:[#allocation5 + $0x290] sm:$0xff]
    %v1562 = vld [vmem:[#allocation5 + $0x298] sm:$0xff]
    %v1563 = vld [vmem:[#allocation5 + $0x2a0] sm:$0xff]
    %v1564 = vld [vmem:[#allocation5 + $0x2a8] sm:$0xff]
    %v1565 = vld [vmem:[#allocation5 + $0x2b0] sm:$0xff]
    %v1566 = vld [vmem:[#allocation5 + $0x2b8] sm:$0x1]
    %v1567 = vlaneseq
    %v1568 = vshrl.u32 %v1567, 7
    %v1569 = vsub.s32 0, %v1568
    %v1570 = vrot.slane %v1566, %v1569
    %vm1571 = vcmask 523264
    %v1573 = vsel %vm1571, %v1557, 0
    %1575 = vmatprep.subr.mxu0 0.0
    %1576 = vmatpush1.msra.mxu0 0.0
    %1577 = vmatprep.subr.mxu0 0.0
    %1578 = vmatpush1.msra.mxu0 0.0
    %1579 = vmatprep.subr.mxu0 0.0
    %1580 = vmatpush1.msra.mxu0 0.0
    %1581 = vmatprep.subr.mxu0 0.0
    %1582 = vmatpush1.msra.mxu0 0.0
    %1583 = vmatprep.subr.mxu0 0.0
    %1584 = vmatpush1.msra.mxu0 0.0
    %1585 = vmatprep.subr.mxu0 0.0
    %1586 = vmatpush1.msra.mxu0 0.0
    %1587 = vmatprep.subr.mxu0 0.0
    %1588 = vmatpush1.msra.mxu0 0.0
    %1589 = vmatprep.subr.mxu0 0.0
    %1590 = vmatpush1.msra.mxu0 0.0
    %1591 = vmatprep.subr.mxu0 0.0
    %1592 = vmatpush1.msra.mxu0 %v1565
    %1593 = vmatprep.subr.mxu0 0.0
    %1594 = vmatpush1.msra.mxu0 %v1564
    %1595 = vmatprep.subr.mxu0 0.0
    %1596 = vmatpush1.msra.mxu0 %v1563
    %1597 = vmatprep.subr.mxu0 0.0
    %1598 = vmatpush1.msra.mxu0 %v1562
    %1599 = vmatprep.subr.mxu0 0.0
    %1600 = vmatpush1.msra.mxu0 %v1561
    %1601 = vmatprep.subr.mxu0 0.0
    %1602 = vmatpush1.msra.mxu0 %v1560
    %1603 = vmatprep.subr.mxu0 0.0
    %1604 = vmatpush1.msra.mxu0 %v1559
    %1605 = vmatprep.subr.mxu0 0.0
    %1606 = vmatpush1.msra.mxu0 %v1558
    %1607 = vmatprep.subr.mxu0 0.0
    %1608 = vmatpush2.msra.mxu0 0.0
    %1609 = vmatprep.subr.mxu0 0.0
    %1610 = vmatpush2.msra.mxu0 0.0
    %1611 = vmatprep.subr.mxu0 0.0
    %1612 = vmatpush2.msra.mxu0 0.0
    %1613 = vmatprep.subr.mxu0 0.0
    %1614 = vmatpush2.msra.mxu0 0.0
    %1615 = vmatprep.subr.mxu0 0.0
    %1616 = vmatpush2.msra.mxu0 0.0
    %1617 = vmatprep.subr.mxu0 0.0
    %1618 = vmatpush2.msra.mxu0 0.0
    %1619 = vmatprep.subr.mxu0 0.0
    %1620 = vmatpush2.msra.mxu0 0.0
    %1621 = vmatprep.subr.mxu0 0.0
    %1622 = vmatpush2.msra.mxu0 0.0
    %1623 = vmatprep.subr.mxu0 0.0
    %1624 = vmatpush2.msra.mxu0 0.0
    %1625 = vmatprep.subr.mxu0 0.0
    %1626 = vmatpush2.msra.mxu0 0.0
    %1627 = vmatprep.subr.mxu0 0.0
    %1628 = vmatpush2.msra.mxu0 0.0
    %1629 = vmatprep.subr.mxu0 0.0
    %1630 = vmatpush2.msra.mxu0 0.0
    %1631 = vmatprep.subr.mxu0 0.0
    %1632 = vmatpush2.msra.mxu0 0.0
    %1633 = vmatprep.subr.mxu0 0.0
    %1634 = vmatpush2.msra.mxu0 0.0
    %1635 = vmatprep.subr.mxu0 0.0
    %1636 = vmatpush2.msra.mxu0 0.0
    %1637 = vmatprep.subr.mxu0 0.0
    %1638 = vmatpush2.msra.mxu0 0.0
    %1639 = vmatprep.mubr.f32.mxu0 0.0
    %1640 = vmatmul.mubr.f32.gmra.mxu0 %v1573
    %v1641 = vpop.f32.mrf.mxu0
    %v1642 = vadd.f32 %v1570, %v1641
    %v1643 = vpop.f32.mrf.mxu0
    %1644 = vdwg.mxu0
    %vm1645 = vcmp.gt.f32.partialorder %v1642, 0.0
    %v1646 = vmul.f32 %v1642, 0.1
    %v1647 = vsel %vm1645, %v1642, %v1646
    %v1648 = vld [vmem:[#allocation5 + $0x2c0] sm:$0xff]
    %v1649 = vld [vmem:[#allocation5 + $0x2c8] sm:$0xff]
    %v1650 = vld [vmem:[#allocation5 + $0x2d0] sm:$0xff]
    %v1651 = vld [vmem:[#allocation5 + $0x2d8] sm:$0xff]
    %v1652 = vld [vmem:[#allocation5 + $0x2e0] sm:$0x1]
    %v1653 = vlaneseq
    %v1654 = vshrl.u32 %v1653, 7
    %v1655 = vsub.s32 0, %v1654
    %v1656 = vrot.slane %v1652, %v1655
    %v1658 = vsel %vm1307, %v1647, 0
    %1660 = vmatprep.subr.mxu0 0.0
    %1661 = vmatpush1.msra.mxu0 0.0
    %1662 = vmatprep.subr.mxu0 0.0
    %1663 = vmatpush1.msra.mxu0 0.0
    %1664 = vmatprep.subr.mxu0 0.0
    %1665 = vmatpush1.msra.mxu0 0.0
    %1666 = vmatprep.subr.mxu0 0.0
    %1667 = vmatpush1.msra.mxu0 0.0
    %1668 = vmatprep.subr.mxu0 0.0
    %1669 = vmatpush1.msra.mxu0 0.0
    %1670 = vmatprep.subr.mxu0 0.0
    %1671 = vmatpush1.msra.mxu0 0.0
    %1672 = vmatprep.subr.mxu0 0.0
    %1673 = vmatpush1.msra.mxu0 0.0
    %1674 = vmatprep.subr.mxu0 0.0
    %1675 = vmatpush1.msra.mxu0 0.0
    %1676 = vmatprep.subr.mxu0 0.0
    %1677 = vmatpush1.msra.mxu0 0.0
    %1678 = vmatprep.subr.mxu0 0.0
    %1679 = vmatpush1.msra.mxu0 0.0
    %1680 = vmatprep.subr.mxu0 0.0
    %1681 = vmatpush1.msra.mxu0 0.0
    %1682 = vmatprep.subr.mxu0 0.0
    %1683 = vmatpush1.msra.mxu0 0.0
    %1684 = vmatprep.subr.mxu0 0.0
    %1685 = vmatpush1.msra.mxu0 %v1651
    %1686 = vmatprep.subr.mxu0 0.0
    %1687 = vmatpush1.msra.mxu0 %v1650
    %1688 = vmatprep.subr.mxu0 0.0
    %1689 = vmatpush1.msra.mxu0 %v1649
    %1690 = vmatprep.subr.mxu0 0.0
    %1691 = vmatpush1.msra.mxu0 %v1648
    %1692 = vmatprep.subr.mxu0 0.0
    %1693 = vmatpush2.msra.mxu0 0.0
    %1694 = vmatprep.subr.mxu0 0.0
    %1695 = vmatpush2.msra.mxu0 0.0
    %1696 = vmatprep.subr.mxu0 0.0
    %1697 = vmatpush2.msra.mxu0 0.0
    %1698 = vmatprep.subr.mxu0 0.0
    %1699 = vmatpush2.msra.mxu0 0.0
    %1700 = vmatprep.subr.mxu0 0.0
    %1701 = vmatpush2.msra.mxu0 0.0
    %1702 = vmatprep.subr.mxu0 0.0
    %1703 = vmatpush2.msra.mxu0 0.0
    %1704 = vmatprep.subr.mxu0 0.0
    %1705 = vmatpush2.msra.mxu0 0.0
    %1706 = vmatprep.subr.mxu0 0.0
    %1707 = vmatpush2.msra.mxu0 0.0
    %1708 = vmatprep.subr.mxu0 0.0
    %1709 = vmatpush2.msra.mxu0 0.0
    %1710 = vmatprep.subr.mxu0 0.0
    %1711 = vmatpush2.msra.mxu0 0.0
    %1712 = vmatprep.subr.mxu0 0.0
    %1713 = vmatpush2.msra.mxu0 0.0
    %1714 = vmatprep.subr.mxu0 0.0
    %1715 = vmatpush2.msra.mxu0 0.0
    %1716 = vmatprep.subr.mxu0 0.0
    %1717 = vmatpush2.msra.mxu0 0.0
    %1718 = vmatprep.subr.mxu0 0.0
    %1719 = vmatpush2.msra.mxu0 0.0
    %1720 = vmatprep.subr.mxu0 0.0
    %1721 = vmatpush2.msra.mxu0 0.0
    %1722 = vmatprep.subr.mxu0 0.0
    %1723 = vmatpush2.msra.mxu0 0.0
    %1724 = vmatprep.mubr.f32.mxu0 0.0
    %1725 = vmatmul.mubr.f32.gmra.mxu0 %v1658
    %v1726 = vpop.f32.mrf.mxu0
    %v1727 = vadd.f32 %v1656, %v1726
    %v1728 = vpop.f32.mrf.mxu0
    %1729 = vdwg.mxu0
    %v1730 = vmax.f32 %v1727, 0.0
    %v1731 = vld [vmem:[#allocation5 + $0x2e8] sm:$0xff]
    %v1732 = vld [vmem:[#allocation5 + $0x2f0] sm:$0xff]
    %v1733 = vld [vmem:[#allocation5 + $0x2f8] sm:$0x1]
    %v1734 = vlaneseq
    %v1735 = vshrl.u32 %v1734, 7
    %v1736 = vsub.s32 0, %v1735
    %v1737 = vrot.slane %v1733, %v1736
    %v1739 = vsel %vm746, %v1730, 0
    %1741 = vmatprep.subr.mxu0 0.0
    %1742 = vmatpush1.msra.mxu0 0.0
    %1743 = vmatprep.subr.mxu0 0.0
    %1744 = vmatpush1.msra.mxu0 0.0
    %1745 = vmatprep.subr.mxu0 0.0
    %1746 = vmatpush1.msra.mxu0 0.0
    %1747 = vmatprep.subr.mxu0 0.0
    %1748 = vmatpush1.msra.mxu0 0.0
    %1749 = vmatprep.subr.mxu0 0.0
    %1750 = vmatpush1.msra.mxu0 0.0
    %1751 = vmatprep.subr.mxu0 0.0
    %1752 = vmatpush1.msra.mxu0 0.0
    %1753 = vmatprep.subr.mxu0 0.0
    %1754 = vmatpush1.msra.mxu0 0.0
    %1755 = vmatprep.subr.mxu0 0.0
    %1756 = vmatpush1.msra.mxu0 0.0
    %1757 = vmatprep.subr.mxu0 0.0
    %1758 = vmatpush1.msra.mxu0 0.0
    %1759 = vmatprep.subr.mxu0 0.0
    %1760 = vmatpush1.msra.mxu0 0.0
    %1761 = vmatprep.subr.mxu0 0.0
    %1762 = vmatpush1.msra.mxu0 0.0
    %1763 = vmatprep.subr.mxu0 0.0
    %1764 = vmatpush1.msra.mxu0 0.0
    %1765 = vmatprep.subr.mxu0 0.0
    %1766 = vmatpush1.msra.mxu0 0.0
    %1767 = vmatprep.subr.mxu0 0.0
    %1768 = vmatpush1.msra.mxu0 0.0
    %1769 = vmatprep.subr.mxu0 0.0
    %1770 = vmatpush1.msra.mxu0 %v1732
    %1771 = vmatprep.subr.mxu0 0.0
    %1772 = vmatpush1.msra.mxu0 %v1731
    %1773 = vmatprep.subr.mxu0 0.0
    %1774 = vmatpush2.msra.mxu0 0.0
    %1775 = vmatprep.subr.mxu0 0.0
    %1776 = vmatpush2.msra.mxu0 0.0
    %1777 = vmatprep.subr.mxu0 0.0
    %1778 = vmatpush2.msra.mxu0 0.0
    %1779 = vmatprep.subr.mxu0 0.0
    %1780 = vmatpush2.msra.mxu0 0.0
    %1781 = vmatprep.subr.mxu0 0.0
    %1782 = vmatpush2.msra.mxu0 0.0
    %1783 = vmatprep.subr.mxu0 0.0
    %1784 = vmatpush2.msra.mxu0 0.0
    %1785 = vmatprep.subr.mxu0 0.0
    %1786 = vmatpush2.msra.mxu0 0.0
    %1787 = vmatprep.subr.mxu0 0.0
    %1788 = vmatpush2.msra.mxu0 0.0
    %1789 = vmatprep.subr.mxu0 0.0
    %1790 = vmatpush2.msra.mxu0 0.0
    %1791 = vmatprep.subr.mxu0 0.0
    %1792 = vmatpush2.msra.mxu0 0.0
    %1793 = vmatprep.subr.mxu0 0.0
    %1794 = vmatpush2.msra.mxu0 0.0
    %1795 = vmatprep.subr.mxu0 0.0
    %1796 = vmatpush2.msra.mxu0 0.0
    %1797 = vmatprep.subr.mxu0 0.0
    %1798 = vmatpush2.msra.mxu0 0.0
    %1799 = vmatprep.subr.mxu0 0.0
    %1800 = vmatpush2.msra.mxu0 0.0
    %1801 = vmatprep.subr.mxu0 0.0
    %1802 = vmatpush2.msra.mxu0 0.0
    %1803 = vmatprep.subr.mxu0 0.0
    %1804 = vmatpush2.msra.mxu0 0.0
    %1805 = vmatprep.mubr.f32.mxu0 0.0
    %1806 = vmatmul.mubr.f32.gmra.mxu0 %v1739
    %v1807 = vpop.f32.mrf.mxu0
    %v1808 = vadd.f32 %v1737, %v1807
    %v1809 = vpop.f32.mrf.mxu0
    %1810 = vdwg.mxu0
    %vm1811 = vcmp.gt.f32.partialorder %v1808, 0.0
    %v1812 = vmul.f32 %v1808, 0.01
    %v1813 = vsel %vm1811, %v1808, %v1812
    %v1814 = vld [vmem:[#allocation5 + $0x300] sm:$0xff]
    %v1815 = vld [vmem:[#allocation5 + $0x308] sm:$0xff]
    %v1816 = vld [vmem:[#allocation5 + $0x310] sm:$0xff]
    %v1817 = vld [vmem:[#allocation5 + $0x318] sm:$0xff]
    %v1818 = vld [vmem:[#allocation5 + $0x320] sm:$0x1]
    %v1819 = vlaneseq
    %v1820 = vshrl.u32 %v1819, 7
    %v1821 = vsub.s32 0, %v1820
    %v1822 = vrot.slane %v1818, %v1821
    %v1824 = vsel %vm1307, %v1813, 0
    %1826 = vmatprep.subr.mxu0 0.0
    %1827 = vmatpush1.msra.mxu0 0.0
    %1828 = vmatprep.subr.mxu0 0.0
    %1829 = vmatpush1.msra.mxu0 0.0
    %1830 = vmatprep.subr.mxu0 0.0
    %1831 = vmatpush1.msra.mxu0 0.0
    %1832 = vmatprep.subr.mxu0 0.0
    %1833 = vmatpush1.msra.mxu0 0.0
    %1834 = vmatprep.subr.mxu0 0.0
    %1835 = vmatpush1.msra.mxu0 0.0
    %1836 = vmatprep.subr.mxu0 0.0
    %1837 = vmatpush1.msra.mxu0 0.0
    %1838 = vmatprep.subr.mxu0 0.0
    %1839 = vmatpush1.msra.mxu0 0.0
    %1840 = vmatprep.subr.mxu0 0.0
    %1841 = vmatpush1.msra.mxu0 0.0
    %1842 = vmatprep.subr.mxu0 0.0
    %1843 = vmatpush1.msra.mxu0 0.0
    %1844 = vmatprep.subr.mxu0 0.0
    %1845 = vmatpush1.msra.mxu0 0.0
    %1846 = vmatprep.subr.mxu0 0.0
    %1847 = vmatpush1.msra.mxu0 0.0
    %1848 = vmatprep.subr.mxu0 0.0
    %1849 = vmatpush1.msra.mxu0 0.0
    %1850 = vmatprep.subr.mxu0 0.0
    %1851 = vmatpush1.msra.mxu0 %v1817
    %1852 = vmatprep.subr.mxu0 0.0
    %1853 = vmatpush1.msra.mxu0 %v1816
    %1854 = vmatprep.subr.mxu0 0.0
    %1855 = vmatpush1.msra.mxu0 %v1815
    %1856 = vmatprep.subr.mxu0 0.0
    %1857 = vmatpush1.msra.mxu0 %v1814
    %1858 = vmatprep.subr.mxu0 0.0
    %1859 = vmatpush2.msra.mxu0 0.0
    %1860 = vmatprep.subr.mxu0 0.0
    %1861 = vmatpush2.msra.mxu0 0.0
    %1862 = vmatprep.subr.mxu0 0.0
    %1863 = vmatpush2.msra.mxu0 0.0
    %1864 = vmatprep.subr.mxu0 0.0
    %1865 = vmatpush2.msra.mxu0 0.0
    %1866 = vmatprep.subr.mxu0 0.0
    %1867 = vmatpush2.msra.mxu0 0.0
    %1868 = vmatprep.subr.mxu0 0.0
    %1869 = vmatpush2.msra.mxu0 0.0
    %1870 = vmatprep.subr.mxu0 0.0
    %1871 = vmatpush2.msra.mxu0 0.0
    %1872 = vmatprep.subr.mxu0 0.0
    %1873 = vmatpush2.msra.mxu0 0.0
    %1874 = vmatprep.subr.mxu0 0.0
    %1875 = vmatpush2.msra.mxu0 0.0
    %1876 = vmatprep.subr.mxu0 0.0
    %1877 = vmatpush2.msra.mxu0 0.0
    %1878 = vmatprep.subr.mxu0 0.0
    %1879 = vmatpush2.msra.mxu0 0.0
    %1880 = vmatprep.subr.mxu0 0.0
    %1881 = vmatpush2.msra.mxu0 0.0
    %1882 = vmatprep.subr.mxu0 0.0
    %1883 = vmatpush2.msra.mxu0 0.0
    %1884 = vmatprep.subr.mxu0 0.0
    %1885 = vmatpush2.msra.mxu0 0.0
    %1886 = vmatprep.subr.mxu0 0.0
    %1887 = vmatpush2.msra.mxu0 0.0
    %1888 = vmatprep.subr.mxu0 0.0
    %1889 = vmatpush2.msra.mxu0 0.0
    %1890 = vmatprep.mubr.f32.mxu0 0.0
    %1891 = vmatmul.mubr.f32.gmra.mxu0 %v1824
    %v1892 = vpop.f32.mrf.mxu0
    %v1893 = vadd.f32 %v1822, %v1892
    %v1894 = vpop.f32.mrf.mxu0
    %1895 = vdwg.mxu0
    %vm1896 = vcmp.gt.f32.partialorder %v1893, 0.0
    %v1897 = vmul.f32 %v1893, 0.01
    %v1898 = vsel %vm1896, %v1893, %v1897
    %v1899 = vld [vmem:[#allocation5 + $0x328] sm:$0xff]
    %v1900 = vld [vmem:[#allocation5 + $0x330] sm:$0xff]
    %v1901 = vld [vmem:[#allocation5 + $0x338] sm:$0xff]
    %v1902 = vld [vmem:[#allocation5 + $0x340] sm:$0xff]
    %v1903 = vld [vmem:[#allocation5 + $0x348] sm:$0xff]
    %v1904 = vld [vmem:[#allocation5 + $0x350] sm:$0xff]
    %v1905 = vld [vmem:[#allocation5 + $0x358] sm:$0xff]
    %v1906 = vld [vmem:[#allocation5 + $0x360] sm:$0xff]
    %v1907 = vld [vmem:[#allocation5 + $0x368] sm:$0x1]
    %v1908 = vlaneseq
    %v1909 = vshrl.u32 %v1908, 7
    %v1910 = vsub.s32 0, %v1909
    %v1911 = vrot.slane %v1907, %v1910
    %v1913 = vsel %vm1571, %v1898, 0
    %1915 = vmatprep.subr.mxu0 0.0
    %1916 = vmatpush1.msra.mxu0 0.0
    %1917 = vmatprep.subr.mxu0 0.0
    %1918 = vmatpush1.msra.mxu0 0.0
    %1919 = vmatprep.subr.mxu0 0.0
    %1920 = vmatpush1.msra.mxu0 0.0
    %1921 = vmatprep.subr.mxu0 0.0
    %1922 = vmatpush1.msra.mxu0 0.0
    %1923 = vmatprep.subr.mxu0 0.0
    %1924 = vmatpush1.msra.mxu0 0.0
    %1925 = vmatprep.subr.mxu0 0.0
    %1926 = vmatpush1.msra.mxu0 0.0
    %1927 = vmatprep.subr.mxu0 0.0
    %1928 = vmatpush1.msra.mxu0 0.0
    %1929 = vmatprep.subr.mxu0 0.0
    %1930 = vmatpush1.msra.mxu0 0.0
    %1931 = vmatprep.subr.mxu0 0.0
    %1932 = vmatpush1.msra.mxu0 %v1906
    %1933 = vmatprep.subr.mxu0 0.0
    %1934 = vmatpush1.msra.mxu0 %v1905
    %1935 = vmatprep.subr.mxu0 0.0
    %1936 = vmatpush1.msra.mxu0 %v1904
    %1937 = vmatprep.subr.mxu0 0.0
    %1938 = vmatpush1.msra.mxu0 %v1903
    %1939 = vmatprep.subr.mxu0 0.0
    %1940 = vmatpush1.msra.mxu0 %v1902
    %1941 = vmatprep.subr.mxu0 0.0
    %1942 = vmatpush1.msra.mxu0 %v1901
    %1943 = vmatprep.subr.mxu0 0.0
    %1944 = vmatpush1.msra.mxu0 %v1900
    %1945 = vmatprep.subr.mxu0 0.0
    %1946 = vmatpush1.msra.mxu0 %v1899
    %1947 = vmatprep.subr.mxu0 0.0
    %1948 = vmatpush2.msra.mxu0 0.0
    %1949 = vmatprep.subr.mxu0 0.0
    %1950 = vmatpush2.msra.mxu0 0.0
    %1951 = vmatprep.subr.mxu0 0.0
    %1952 = vmatpush2.msra.mxu0 0.0
    %1953 = vmatprep.subr.mxu0 0.0
    %1954 = vmatpush2.msra.mxu0 0.0
    %1955 = vmatprep.subr.mxu0 0.0
    %1956 = vmatpush2.msra.mxu0 0.0
    %1957 = vmatprep.subr.mxu0 0.0
    %1958 = vmatpush2.msra.mxu0 0.0
    %1959 = vmatprep.subr.mxu0 0.0
    %1960 = vmatpush2.msra.mxu0 0.0
    %1961 = vmatprep.subr.mxu0 0.0
    %1962 = vmatpush2.msra.mxu0 0.0
    %1963 = vmatprep.subr.mxu0 0.0
    %1964 = vmatpush2.msra.mxu0 0.0
    %1965 = vmatprep.subr.mxu0 0.0
    %1966 = vmatpush2.msra.mxu0 0.0
    %1967 = vmatprep.subr.mxu0 0.0
    %1968 = vmatpush2.msra.mxu0 0.0
    %1969 = vmatprep.subr.mxu0 0.0
    %1970 = vmatpush2.msra.mxu0 0.0
    %1971 = vmatprep.subr.mxu0 0.0
    %1972 = vmatpush2.msra.mxu0 0.0
    %1973 = vmatprep.subr.mxu0 0.0
    %1974 = vmatpush2.msra.mxu0 0.0
    %1975 = vmatprep.subr.mxu0 0.0
    %1976 = vmatpush2.msra.mxu0 0.0
    %1977 = vmatprep.subr.mxu0 0.0
    %1978 = vmatpush2.msra.mxu0 0.0
    %1979 = vmatprep.mubr.f32.mxu0 0.0
    %1980 = vmatmul.mubr.f32.gmra.mxu0 %v1913
    %v1981 = vpop.f32.mrf.mxu0
    %v1982 = vadd.f32 %v1911, %v1981
    %v1983 = vpop.f32.mrf.mxu0
    %1984 = vdwg.mxu0
    %v1985 = vtanh.pop %v1982
    %v1986 = vld [vmem:[#allocation5 + $0x370] sm:$0xff]
    %v1987 = vld [vmem:[#allocation5 + $0x378] sm:$0xff]
    %v1988 = vld [vmem:[#allocation5 + $0x380] sm:$0xff]
    %v1989 = vld [vmem:[#allocation5 + $0x388] sm:$0xff]
    %v1990 = vld [vmem:[#allocation5 + $0x390] sm:$0xff]
    %v1991 = vld [vmem:[#allocation5 + $0x398] sm:$0xff]
    %v1992 = vld [vmem:[#allocation5 + $0x3a0] sm:$0xff]
    %v1993 = vld [vmem:[#allocation5 + $0x3a8] sm:$0xff]
    %v1994 = vld [vmem:[#allocation5 + $0x3b0] sm:$0xff]
    %v1995 = vld [vmem:[#allocation5 + $0x3b8] sm:$0xff]
    %v1996 = vld [vmem:[#allocation5 + $0x3c0] sm:$0xff]
    %v1997 = vld [vmem:[#allocation5 + $0x3c8] sm:$0xff]
    %v1998 = vld [vmem:[#allocation5 + $0x3d0] sm:$0xff]
    %v1999 = vld [vmem:[#allocation5 + $0x3d8] sm:$0xff]
    %v2000 = vld [vmem:[#allocation5 + $0x3e0] sm:$0xff]
    %v2001 = vld [vmem:[#allocation5 + $0x3e8] sm:$0xff]
    %2002 = vmatprep.subr.mxu0 0.0
    %2003 = vmatpush1.msra.mxu0 %v2001
    %2004 = vmatprep.subr.mxu0 0.0
    %2005 = vmatpush1.msra.mxu0 %v2000
    %2006 = vmatprep.subr.mxu0 0.0
    %2007 = vmatpush1.msra.mxu0 %v1999
    %2008 = vmatprep.subr.mxu0 0.0
    %2009 = vmatpush1.msra.mxu0 %v1998
    %2010 = vmatprep.subr.mxu0 0.0
    %2011 = vmatpush1.msra.mxu0 %v1997
    %2012 = vmatprep.subr.mxu0 0.0
    %2013 = vmatpush1.msra.mxu0 %v1996
    %2014 = vmatprep.subr.mxu0 0.0
    %2015 = vmatpush1.msra.mxu0 %v1995
    %2016 = vmatprep.subr.mxu0 0.0
    %2017 = vmatpush1.msra.mxu0 %v1994
    %2018 = vmatprep.subr.mxu0 0.0
    %2019 = vmatpush1.msra.mxu0 %v1993
    %2020 = vmatprep.subr.mxu0 0.0
    %2021 = vmatpush1.msra.mxu0 %v1992
    %2022 = vmatprep.subr.mxu0 0.0
    %2023 = vmatpush1.msra.mxu0 %v1991
    %2024 = vmatprep.subr.mxu0 0.0
    %2025 = vmatpush1.msra.mxu0 %v1990
    %2026 = vmatprep.subr.mxu0 0.0
    %2027 = vmatpush1.msra.mxu0 %v1989
    %2028 = vmatprep.subr.mxu0 0.0
    %2029 = vmatpush1.msra.mxu0 %v1988
    %2030 = vmatprep.subr.mxu0 0.0
    %2031 = vmatpush1.msra.mxu0 %v1987
    %2032 = vmatprep.subr.mxu0 0.0
    %2033 = vmatpush1.msra.mxu0 %v1986
    %2034 = vmatprep.subr.mxu0 0.0
    %2035 = vmatpush2.msra.mxu0 0.0
    %2036 = vmatprep.subr.mxu0 0.0
    %2037 = vmatpush2.msra.mxu0 0.0
    %2038 = vmatprep.subr.mxu0 0.0
    %2039 = vmatpush2.msra.mxu0 0.0
    %2040 = vmatprep.subr.mxu0 0.0
    %2041 = vmatpush2.msra.mxu0 0.0
    %2042 = vmatprep.subr.mxu0 0.0
    %2043 = vmatpush2.msra.mxu0 0.0
    %2044 = vmatprep.subr.mxu0 0.0
    %2045 = vmatpush2.msra.mxu0 0.0
    %2046 = vmatprep.subr.mxu0 0.0
    %2047 = vmatpush2.msra.mxu0 0.0
    %2048 = vmatprep.subr.mxu0 0.0
    %2049 = vmatpush2.msra.mxu0 0.0
    %2050 = vmatprep.subr.mxu0 0.0
    %2051 = vmatpush2.msra.mxu0 0.0
    %2052 = vmatprep.subr.mxu0 0.0
    %2053 = vmatpush2.msra.mxu0 0.0
    %2054 = vmatprep.subr.mxu0 0.0
    %2055 = vmatpush2.msra.mxu0 0.0
    %2056 = vmatprep.subr.mxu0 0.0
    %2057 = vmatpush2.msra.mxu0 0.0
    %2058 = vmatprep.subr.mxu0 0.0
    %2059 = vmatpush2.msra.mxu0 0.0
    %2060 = vmatprep.subr.mxu0 0.0
    %2061 = vmatpush2.msra.mxu0 0.0
    %2062 = vmatprep.subr.mxu0 0.0
    %2063 = vmatpush2.msra.mxu0 0.0
    %2064 = vmatprep.subr.mxu0 0.0
    %2065 = vmatpush2.msra.mxu0 0.0
    %2066 = vmatprep.mubr.f32.mxu0 0.0
    %2067 = vmatmul.mubr.f32.gmra.mxu0 %v1985
    %v2068 = vpop.f32.mrf.mxu0
    %v2069 = vadd.f32 0.0, %v2068
    %v2070 = vpop.f32.mrf.mxu0
    %2071 = vdwg.mxu0
    %v2072 = vld [vmem:[#allocation5 + $0x3f0] sm:$0xff]
    %v2073 = vld [vmem:[#allocation5 + $0x3f8] sm:$0xff]
    %v2074 = vld [vmem:[#allocation5 + $0x400] sm:$0xff]
    %v2075 = vld [vmem:[#allocation5 + $0x408] sm:$0xff]
    %v2076 = vld [vmem:[#allocation5 + $0x410] sm:$0xff]
    %v2077 = vld [vmem:[#allocation5 + $0x418] sm:$0xff]
    %v2078 = vld [vmem:[#allocation5 + $0x420] sm:$0xff]
    %v2079 = vld [vmem:[#allocation5 + $0x428] sm:$0xff]
    %v2080 = vld [vmem:[#allocation5 + $0x430] sm:$0xff]
    %v2081 = vld [vmem:[#allocation5 + $0x438] sm:$0xff]
    %v2082 = vld [vmem:[#allocation5 + $0x440] sm:$0xff]
    %v2083 = vld [vmem:[#allocation5 + $0x448] sm:$0xff]
    %v2084 = vld [vmem:[#allocation5 + $0x450] sm:$0xff]
    %v2085 = vld [vmem:[#allocation5 + $0x458] sm:$0xff]
    %v2086 = vld [vmem:[#allocation5 + $0x460] sm:$0xff]
    %v2087 = vld [vmem:[#allocation5 + $0x468] sm:$0xff]
    %2088 = vmatprep.subr.mxu0 0.0
    %2089 = vmatpush1.msra.mxu0 %v2087
    %2090 = vmatprep.subr.mxu0 0.0
    %2091 = vmatpush1.msra.mxu0 %v2086
    %2092 = vmatprep.subr.mxu0 0.0
    %2093 = vmatpush1.msra.mxu0 %v2085
    %2094 = vmatprep.subr.mxu0 0.0
    %2095 = vmatpush1.msra.mxu0 %v2084
    %2096 = vmatprep.subr.mxu0 0.0
    %2097 = vmatpush1.msra.mxu0 %v2083
    %2098 = vmatprep.subr.mxu0 0.0
    %2099 = vmatpush1.msra.mxu0 %v2082
    %2100 = vmatprep.subr.mxu0 0.0
    %2101 = vmatpush1.msra.mxu0 %v2081
    %2102 = vmatprep.subr.mxu0 0.0
    %2103 = vmatpush1.msra.mxu0 %v2080
    %2104 = vmatprep.subr.mxu0 0.0
    %2105 = vmatpush1.msra.mxu0 %v2079
    %2106 = vmatprep.subr.mxu0 0.0
    %2107 = vmatpush1.msra.mxu0 %v2078
    %2108 = vmatprep.subr.mxu0 0.0
    %2109 = vmatpush1.msra.mxu0 %v2077
    %2110 = vmatprep.subr.mxu0 0.0
    %2111 = vmatpush1.msra.mxu0 %v2076
    %2112 = vmatprep.subr.mxu0 0.0
    %2113 = vmatpush1.msra.mxu0 %v2075
    %2114 = vmatprep.subr.mxu0 0.0
    %2115 = vmatpush1.msra.mxu0 %v2074
    %2116 = vmatprep.subr.mxu0 0.0
    %2117 = vmatpush1.msra.mxu0 %v2073
    %2118 = vmatprep.subr.mxu0 0.0
    %2119 = vmatpush1.msra.mxu0 %v2072
    %2120 = vmatprep.subr.mxu0 0.0
    %2121 = vmatpush2.msra.mxu0 0.0
    %2122 = vmatprep.subr.mxu0 0.0
    %2123 = vmatpush2.msra.mxu0 0.0
    %2124 = vmatprep.subr.mxu0 0.0
    %2125 = vmatpush2.msra.mxu0 0.0
    %2126 = vmatprep.subr.mxu0 0.0
    %2127 = vmatpush2.msra.mxu0 0.0
    %2128 = vmatprep.subr.mxu0 0.0
    %2129 = vmatpush2.msra.mxu0 0.0
    %2130 = vmatprep.subr.mxu0 0.0
    %2131 = vmatpush2.msra.mxu0 0.0
    %2132 = vmatprep.subr.mxu0 0.0
    %2133 = vmatpush2.msra.mxu0 0.0
    %2134 = vmatprep.subr.mxu0 0.0
    %2135 = vmatpush2.msra.mxu0 0.0
    %2136 = vmatprep.subr.mxu0 0.0
    %2137 = vmatpush2.msra.mxu0 0.0
    %2138 = vmatprep.subr.mxu0 0.0
    %2139 = vmatpush2.msra.mxu0 0.0
    %2140 = vmatprep.subr.mxu0 0.0
    %2141 = vmatpush2.msra.mxu0 0.0
    %2142 = vmatprep.subr.mxu0 0.0
    %2143 = vmatpush2.msra.mxu0 0.0
    %2144 = vmatprep.subr.mxu0 0.0
    %2145 = vmatpush2.msra.mxu0 0.0
    %2146 = vmatprep.subr.mxu0 0.0
    %2147 = vmatpush2.msra.mxu0 0.0
    %2148 = vmatprep.subr.mxu0 0.0
    %2149 = vmatpush2.msra.mxu0 0.0
    %2150 = vmatprep.subr.mxu0 0.0
    %2151 = vmatpush2.msra.mxu0 0.0
    %2152 = vmatprep.mubr.f32.mxu0 0.0
    %2153 = vmatmul.mubr.f32.gmra.mxu0 %v1985
    %v2154 = vpop.f32.mrf.mxu0
    %v2155 = vadd.f32 0.0, %v2154
    %v2156 = vpop.f32.mrf.mxu0
    %2157 = vdwg.mxu0
    %v2158 = vld [vmem:[#allocation5 + $0x470] sm:$0x1]
    %v2159 = vld [vmem:[#allocation5 + $0x478] sm:$0x1]
    %2160 = vmatprep.subr.mxu0 0.0
    %2161 = vmatpush1.msra.mxu0 0.0
    %2162 = vmatprep.subr.mxu0 0.0
    %2163 = vmatpush1.msra.mxu0 0.0
    %2164 = vmatprep.subr.mxu0 0.0
    %2165 = vmatpush1.msra.mxu0 0.0
    %2166 = vmatprep.subr.mxu0 0.0
    %2167 = vmatpush1.msra.mxu0 0.0
    %2168 = vmatprep.subr.mxu0 0.0
    %2169 = vmatpush1.msra.mxu0 0.0
    %2170 = vmatprep.subr.mxu0 0.0
    %2171 = vmatpush1.msra.mxu0 0.0
    %2172 = vmatprep.subr.mxu0 0.0
    %2173 = vmatpush1.msra.mxu0 0.0
    %2174 = vmatprep.subr.mxu0 0.0
    %2175 = vmatpush1.msra.mxu0 0.0
    %2176 = vmatprep.subr.mxu0 0.0
    %2177 = vmatpush1.msra.mxu0 0.0
    %2178 = vmatprep.subr.mxu0 0.0
    %2179 = vmatpush1.msra.mxu0 0.0
    %2180 = vmatprep.subr.mxu0 0.0
    %2181 = vmatpush1.msra.mxu0 0.0
    %2182 = vmatprep.subr.mxu0 0.0
    %2183 = vmatpush1.msra.mxu0 0.0
    %2184 = vmatprep.subr.mxu0 0.0
    %2185 = vmatpush1.msra.mxu0 0.0
    %2186 = vmatprep.subr.mxu0 0.0
    %2187 = vmatpush1.msra.mxu0 0.0
    %2188 = vmatprep.subr.mxu0 0.0
    %2189 = vmatpush1.msra.mxu0 0.0
    %2190 = vmatprep.subr.mxu0 %v2155
    %2191 = vmatpush1.msra.mxu0 %v2069
    %2192 = vmatprep.subr.mxu0 0.0
    %2193 = vmatpush2.msra.mxu0 0.0
    %2194 = vmatprep.subr.mxu0 0.0
    %2195 = vmatpush2.msra.mxu0 0.0
    %2196 = vmatprep.subr.mxu0 0.0
    %2197 = vmatpush2.msra.mxu0 0.0
    %2198 = vmatprep.subr.mxu0 0.0
    %2199 = vmatpush2.msra.mxu0 0.0
    %2200 = vmatprep.subr.mxu0 0.0
    %2201 = vmatpush2.msra.mxu0 0.0
    %2202 = vmatprep.subr.mxu0 0.0
    %2203 = vmatpush2.msra.mxu0 0.0
    %2204 = vmatprep.subr.mxu0 0.0
    %2205 = vmatpush2.msra.mxu0 0.0
    %2206 = vmatprep.subr.mxu0 0.0
    %2207 = vmatpush2.msra.mxu0 0.0
    %2208 = vmatprep.subr.mxu0 0.0
    %2209 = vmatpush2.msra.mxu0 0.0
    %2210 = vmatprep.subr.mxu0 0.0
    %2211 = vmatpush2.msra.mxu0 0.0
    %2212 = vmatprep.subr.mxu0 0.0
    %2213 = vmatpush2.msra.mxu0 0.0
    %2214 = vmatprep.subr.mxu0 0.0
    %2215 = vmatpush2.msra.mxu0 0.0
    %2216 = vmatprep.subr.mxu0 0.0
    %2217 = vmatpush2.msra.mxu0 0.0
    %2218 = vmatprep.subr.mxu0 0.0
    %2219 = vmatpush2.msra.mxu0 0.0
    %2220 = vmatprep.subr.mxu0 0.0
    %2221 = vmatpush2.msra.mxu0 0.0
    %2222 = vmatprep.subr.mxu0 0.0
    %2223 = vmatpush2.msra.mxu0 0.0
    %2224 = vmatprep.mubr.f32.mxu0 0.0
    %2225 = vmatmul.mubr.f32.gmra.mxu0 %v443
    %v2226 = vpop.f32.mrf.mxu0
    %v2227 = vadd.f32 0.0, %v2226
    %v2228 = vpop.f32.mrf.mxu0
    %v2229 = vadd.f32 0.0, %v2228
    %2230 = vdwg.mxu0
    %v2231 = vmul.f32 %v2069, %v2069
    %v2232 = vmul.f32 %v2155, %v2155
    %2233 = vmatprep.subr.mxu0 0.0
    %2234 = vmatpush1.msra.mxu0 0.0
    %2235 = vmatprep.subr.mxu0 0.0
    %2236 = vmatpush1.msra.mxu0 0.0
    %2237 = vmatprep.subr.mxu0 0.0
    %2238 = vmatpush1.msra.mxu0 0.0
    %2239 = vmatprep.subr.mxu0 0.0
    %2240 = vmatpush1.msra.mxu0 0.0
    %2241 = vmatprep.subr.mxu0 0.0
    %2242 = vmatpush1.msra.mxu0 0.0
    %2243 = vmatprep.subr.mxu0 0.0
    %2244 = vmatpush1.msra.mxu0 0.0
    %2245 = vmatprep.subr.mxu0 0.0
    %2246 = vmatpush1.msra.mxu0 0.0
    %2247 = vmatprep.subr.mxu0 0.0
    %2248 = vmatpush1.msra.mxu0 0.0
    %2249 = vmatprep.subr.mxu0 0.0
    %2250 = vmatpush1.msra.mxu0 0.0
    %2251 = vmatprep.subr.mxu0 0.0
    %2252 = vmatpush1.msra.mxu0 0.0
    %2253 = vmatprep.subr.mxu0 0.0
    %2254 = vmatpush1.msra.mxu0 0.0
    %2255 = vmatprep.subr.mxu0 0.0
    %2256 = vmatpush1.msra.mxu0 0.0
    %2257 = vmatprep.subr.mxu0 0.0
    %2258 = vmatpush1.msra.mxu0 0.0
    %2259 = vmatprep.subr.mxu0 0.0
    %2260 = vmatpush1.msra.mxu0 0.0
    %2261 = vmatprep.subr.mxu0 0.0
    %2262 = vmatpush1.msra.mxu0 0.0
    %2263 = vmatprep.subr.mxu0 %v2232
    %2264 = vmatpush1.msra.mxu0 %v2231
    %2265 = vmatprep.subr.mxu0 0.0
    %2266 = vmatpush2.msra.mxu0 0.0
    %2267 = vmatprep.subr.mxu0 0.0
    %2268 = vmatpush2.msra.mxu0 0.0
    %2269 = vmatprep.subr.mxu0 0.0
    %2270 = vmatpush2.msra.mxu0 0.0
    %2271 = vmatprep.subr.mxu0 0.0
    %2272 = vmatpush2.msra.mxu0 0.0
    %2273 = vmatprep.subr.mxu0 0.0
    %2274 = vmatpush2.msra.mxu0 0.0
    %2275 = vmatprep.subr.mxu0 0.0
    %2276 = vmatpush2.msra.mxu0 0.0
    %2277 = vmatprep.subr.mxu0 0.0
    %2278 = vmatpush2.msra.mxu0 0.0
    %2279 = vmatprep.subr.mxu0 0.0
    %2280 = vmatpush2.msra.mxu0 0.0
    %2281 = vmatprep.subr.mxu0 0.0
    %2282 = vmatpush2.msra.mxu0 0.0
    %2283 = vmatprep.subr.mxu0 0.0
    %2284 = vmatpush2.msra.mxu0 0.0
    %2285 = vmatprep.subr.mxu0 0.0
    %2286 = vmatpush2.msra.mxu0 0.0
    %2287 = vmatprep.subr.mxu0 0.0
    %2288 = vmatpush2.msra.mxu0 0.0
    %2289 = vmatprep.subr.mxu0 0.0
    %2290 = vmatpush2.msra.mxu0 0.0
    %2291 = vmatprep.subr.mxu0 0.0
    %2292 = vmatpush2.msra.mxu0 0.0
    %2293 = vmatprep.subr.mxu0 0.0
    %2294 = vmatpush2.msra.mxu0 0.0
    %2295 = vmatprep.subr.mxu0 0.0
    %2296 = vmatpush2.msra.mxu0 0.0
    %2297 = vmatprep.mubr.f32.mxu0 0.0
    %2298 = vmatmul.mubr.f32.gmra.mxu0 %v443
    %v2299 = vpop.f32.mrf.mxu0
    %v2300 = vadd.f32 0.0, %v2299
    %v2301 = vpop.f32.mrf.mxu0
    %v2302 = vadd.f32 0.0, %v2301
    %2303 = vdwg.mxu0
    %v2305 = vsel %vm589, %v2229, 0
    %2307 = vmatprep.subr.mxu0 0.0
    %2308 = vmatpush1.msra.mxu0 %v163
    %2309 = vmatprep.subr.mxu0 0.0
    %2310 = vmatpush1.msra.mxu0 %v162
    %2311 = vmatprep.subr.mxu0 0.0
    %2312 = vmatpush1.msra.mxu0 %v161
    %2313 = vmatprep.subr.mxu0 0.0
    %2314 = vmatpush1.msra.mxu0 %v160
    %2315 = vmatprep.subr.mxu0 0.0
    %2316 = vmatpush1.msra.mxu0 %v159
    %2317 = vmatprep.subr.mxu0 0.0
    %2318 = vmatpush1.msra.mxu0 %v158
    %2319 = vmatprep.subr.mxu0 0.0
    %2320 = vmatpush1.msra.mxu0 %v157
    %2321 = vmatprep.subr.mxu0 0.0
    %2322 = vmatpush1.msra.mxu0 %v156
    %2323 = vmatprep.subr.mxu0 0.0
    %2324 = vmatpush1.msra.mxu0 %v155
    %2325 = vmatprep.subr.mxu0 0.0
    %2326 = vmatpush1.msra.mxu0 %v154
    %2327 = vmatprep.subr.mxu0 0.0
    %2328 = vmatpush1.msra.mxu0 %v153
    %2329 = vmatprep.subr.mxu0 0.0
    %2330 = vmatpush1.msra.mxu0 %v152
    %2331 = vmatprep.subr.mxu0 0.0
    %2332 = vmatpush1.msra.mxu0 %v151
    %2333 = vmatprep.subr.mxu0 0.0
    %2334 = vmatpush1.msra.mxu0 %v150
    %2335 = vmatprep.subr.mxu0 0.0
    %2336 = vmatpush1.msra.mxu0 %v149
    %2337 = vmatprep.subr.mxu0 0.0
    %2338 = vmatpush1.msra.mxu0 %v148
    %2339 = vmatprep.subr.mxu0 0.0
    %2340 = vmatpush2.msra.mxu0 0.0
    %2341 = vmatprep.subr.mxu0 0.0
    %2342 = vmatpush2.msra.mxu0 0.0
    %2343 = vmatprep.subr.mxu0 0.0
    %2344 = vmatpush2.msra.mxu0 0.0
    %2345 = vmatprep.subr.mxu0 0.0
    %2346 = vmatpush2.msra.mxu0 0.0
    %2347 = vmatprep.subr.mxu0 0.0
    %2348 = vmatpush2.msra.mxu0 0.0
    %2349 = vmatprep.subr.mxu0 0.0
    %2350 = vmatpush2.msra.mxu0 0.0
    %2351 = vmatprep.subr.mxu0 0.0
    %2352 = vmatpush2.msra.mxu0 %v173
    %2353 = vmatprep.subr.mxu0 0.0
    %2354 = vmatpush2.msra.mxu0 %v172
    %2355 = vmatprep.subr.mxu0 0.0
    %2356 = vmatpush2.msra.mxu0 %v171
    %2357 = vmatprep.subr.mxu0 0.0
    %2358 = vmatpush2.msra.mxu0 %v170
    %2359 = vmatprep.subr.mxu0 0.0
    %2360 = vmatpush2.msra.mxu0 %v169
    %2361 = vmatprep.subr.mxu0 0.0
    %2362 = vmatpush2.msra.mxu0 %v168
    %2363 = vmatprep.subr.mxu0 0.0
    %2364 = vmatpush2.msra.mxu0 %v167
    %2365 = vmatprep.subr.mxu0 0.0
    %2366 = vmatpush2.msra.mxu0 %v166
    %2367 = vmatprep.subr.mxu0 0.0
    %2368 = vmatpush2.msra.mxu0 %v165
    %2369 = vmatprep.subr.mxu0 0.0
    %2370 = vmatpush2.msra.mxu0 %v164
    %2371 = vmatprep.mubr.f32.mxu0 %v2305
    %2372 = vmatmul.mubr.f32.gmra.mxu0 %v2227
    %v2373 = vpop.f32.mrf.mxu0
    %v2374 = vadd.f32 0.0, %v2373
    %v2375 = vpop.f32.mrf.mxu0
    %2376 = vdwg.mxu0
    %v2377 = vmul.f32 %v2374, 0.01923077
    %v2379 = vsel %vm589, %v2302, 0
    %2381 = vmatprep.subr.mxu0 0.0
    %2382 = vmatpush1.msra.mxu0 %v163
    %2383 = vmatprep.subr.mxu0 0.0
    %2384 = vmatpush1.msra.mxu0 %v162
    %2385 = vmatprep.subr.mxu0 0.0
    %2386 = vmatpush1.msra.mxu0 %v161
    %2387 = vmatprep.subr.mxu0 0.0
    %2388 = vmatpush1.msra.mxu0 %v160
    %2389 = vmatprep.subr.mxu0 0.0
    %2390 = vmatpush1.msra.mxu0 %v159
    %2391 = vmatprep.subr.mxu0 0.0
    %2392 = vmatpush1.msra.mxu0 %v158
    %2393 = vmatprep.subr.mxu0 0.0
    %2394 = vmatpush1.msra.mxu0 %v157
    %2395 = vmatprep.subr.mxu0 0.0
    %2396 = vmatpush1.msra.mxu0 %v156
    %2397 = vmatprep.subr.mxu0 0.0
    %2398 = vmatpush1.msra.mxu0 %v155
    %2399 = vmatprep.subr.mxu0 0.0
    %2400 = vmatpush1.msra.mxu0 %v154
    %2401 = vmatprep.subr.mxu0 0.0
    %2402 = vmatpush1.msra.mxu0 %v153
    %2403 = vmatprep.subr.mxu0 0.0
    %2404 = vmatpush1.msra.mxu0 %v152
    %2405 = vmatprep.subr.mxu0 0.0
    %2406 = vmatpush1.msra.mxu0 %v151
    %2407 = vmatprep.subr.mxu0 0.0
    %2408 = vmatpush1.msra.mxu0 %v150
    %2409 = vmatprep.subr.mxu0 0.0
    %2410 = vmatpush1.msra.mxu0 %v149
    %2411 = vmatprep.subr.mxu0 0.0
    %2412 = vmatpush1.msra.mxu0 %v148
    %2413 = vmatprep.subr.mxu0 0.0
    %2414 = vmatpush2.msra.mxu0 0.0
    %2415 = vmatprep.subr.mxu0 0.0
    %2416 = vmatpush2.msra.mxu0 0.0
    %2417 = vmatprep.subr.mxu0 0.0
    %2418 = vmatpush2.msra.mxu0 0.0
    %2419 = vmatprep.subr.mxu0 0.0
    %2420 = vmatpush2.msra.mxu0 0.0
    %2421 = vmatprep.subr.mxu0 0.0
    %2422 = vmatpush2.msra.mxu0 0.0
    %2423 = vmatprep.subr.mxu0 0.0
    %2424 = vmatpush2.msra.mxu0 0.0
    %2425 = vmatprep.subr.mxu0 0.0
    %2426 = vmatpush2.msra.mxu0 %v173
    %2427 = vmatprep.subr.mxu0 0.0
    %2428 = vmatpush2.msra.mxu0 %v172
    %2429 = vmatprep.subr.mxu0 0.0
    %2430 = vmatpush2.msra.mxu0 %v171
    %2431 = vmatprep.subr.mxu0 0.0
    %2432 = vmatpush2.msra.mxu0 %v170
    %2433 = vmatprep.subr.mxu0 0.0
    %2434 = vmatpush2.msra.mxu0 %v169
    %2435 = vmatprep.subr.mxu0 0.0
    %2436 = vmatpush2.msra.mxu0 %v168
    %2437 = vmatprep.subr.mxu0 0.0
    %2438 = vmatpush2.msra.mxu0 %v167
    %2439 = vmatprep.subr.mxu0 0.0
    %2440 = vmatpush2.msra.mxu0 %v166
    %2441 = vmatprep.subr.mxu0 0.0
    %2442 = vmatpush2.msra.mxu0 %v165
    %2443 = vmatprep.subr.mxu0 0.0
    %2444 = vmatpush2.msra.mxu0 %v164
    %2445 = vmatprep.mubr.f32.mxu0 %v2379
    %2446 = vmatmul.mubr.f32.gmra.mxu0 %v2300
    %v2447 = vpop.f32.mrf.mxu0
    %v2448 = vadd.f32 0.0, %v2447
    %v2449 = vpop.f32.mrf.mxu0
    %2450 = vdwg.mxu0
    %v2451 = vmul.f32 %v2448, 0.01923077
    %v2452 = vmul.f32 %v2377, %v2377
    %v2453 = vsub.f32 %v2451, %v2452
    %v2454 = vmax.f32 %v2453, 0.0
    %v2455 = vadd.f32 %v2454, 1e-05
    %v2456 = vrsqrt.pop %v2455
    %v2457 = vmul.f32 %v2158, %v2456
    %v2458 = vmul.f32 %v2377, %v2457
    %v2459 = vsub.f32 %v2159, %v2458
    %v2461 = vsel %vm746, %v2457, 0
    %2463 = vmatprep.subr.mxu0 0.0
    %2464 = vmatpush1.msra.mxu0 0.0
    %2465 = vmatprep.subr.mxu0 0.0
    %2466 = vmatpush1.msra.mxu0 0.0
    %2467 = vmatprep.subr.mxu0 0.0
    %2468 = vmatpush1.msra.mxu0 0.0
    %2469 = vmatprep.subr.mxu0 0.0
    %2470 = vmatpush1.msra.mxu0 0.0
    %2471 = vmatprep.subr.mxu0 0.0
    %2472 = vmatpush1.msra.mxu0 0.0
    %2473 = vmatprep.subr.mxu0 0.0
    %2474 = vmatpush1.msra.mxu0 0.0
    %2475 = vmatprep.subr.mxu0 0.0
    %2476 = vmatpush1.msra.mxu0 0.0
    %2477 = vmatprep.subr.mxu0 0.0
    %2478 = vmatpush1.msra.mxu0 0.0
    %2479 = vmatprep.subr.mxu0 0.0
    %2480 = vmatpush1.msra.mxu0 0.0
    %2481 = vmatprep.subr.mxu0 0.0
    %2482 = vmatpush1.msra.mxu0 0.0
    %2483 = vmatprep.subr.mxu0 0.0
    %2484 = vmatpush1.msra.mxu0 0.0
    %2485 = vmatprep.subr.mxu0 0.0
    %2486 = vmatpush1.msra.mxu0 0.0
    %2487 = vmatprep.subr.mxu0 0.0
    %2488 = vmatpush1.msra.mxu0 0.0
    %2489 = vmatprep.subr.mxu0 0.0
    %2490 = vmatpush1.msra.mxu0 0.0
    %2491 = vmatprep.subr.mxu0 %v188
    %2492 = vmatpush1.msra.mxu0 %v187
    %2493 = vmatprep.subr.mxu0 %v186
    %2494 = vmatpush1.msra.mxu0 %v185
    %2495 = vmatprep.subr.mxu0 0.0
    %2496 = vmatpush2.msra.mxu0 0.0
    %2497 = vmatprep.subr.mxu0 0.0
    %2498 = vmatpush2.msra.mxu0 0.0
    %2499 = vmatprep.subr.mxu0 0.0
    %2500 = vmatpush2.msra.mxu0 0.0
    %2501 = vmatprep.subr.mxu0 0.0
    %2502 = vmatpush2.msra.mxu0 0.0
    %2503 = vmatprep.subr.mxu0 0.0
    %2504 = vmatpush2.msra.mxu0 0.0
    %2505 = vmatprep.subr.mxu0 0.0
    %2506 = vmatpush2.msra.mxu0 0.0
    %2507 = vmatprep.subr.mxu0 0.0
    %2508 = vmatpush2.msra.mxu0 0.0
    %2509 = vmatprep.subr.mxu0 0.0
    %2510 = vmatpush2.msra.mxu0 0.0
    %2511 = vmatprep.subr.mxu0 0.0
    %2512 = vmatpush2.msra.mxu0 0.0
    %2513 = vmatprep.subr.mxu0 0.0
    %2514 = vmatpush2.msra.mxu0 0.0
    %2515 = vmatprep.subr.mxu0 0.0
    %2516 = vmatpush2.msra.mxu0 0.0
    %2517 = vmatprep.subr.mxu0 0.0
    %2518 = vmatpush2.msra.mxu0 0.0
    %2519 = vmatprep.subr.mxu0 0.0
    %2520 = vmatpush2.msra.mxu0 0.0
    %2521 = vmatprep.subr.mxu0 0.0
    %2522 = vmatpush2.msra.mxu0 0.0
    %2523 = vmatprep.subr.mxu0 0.0
    %2524 = vmatpush2.msra.mxu0 0.0
    %2525 = vmatprep.subr.mxu0 0.0
    %2526 = vmatpush2.msra.mxu0 0.0
    %2527 = vmatprep.mubr.f32.mxu0 0.0
    %2528 = vmatmul.mubr.f32.gmra.mxu0 %v2461
    %v2529 = vpop.f32.mrf.mxu0
    %v2530 = vadd.f32 0.0, %v2529
    %v2531 = vpop.f32.mrf.mxu0
    %v2532 = vadd.f32 0.0, %v2531
    %2533 = vdwg.mxu0
    %v2535 = vsel %vm746, %v2459, 0
    %2537 = vmatprep.subr.mxu0 0.0
    %2538 = vmatpush1.msra.mxu0 0.0
    %2539 = vmatprep.subr.mxu0 0.0
    %2540 = vmatpush1.msra.mxu0 0.0
    %2541 = vmatprep.subr.mxu0 0.0
    %2542 = vmatpush1.msra.mxu0 0.0
    %2543 = vmatprep.subr.mxu0 0.0
    %2544 = vmatpush1.msra.mxu0 0.0
    %2545 = vmatprep.subr.mxu0 0.0
    %2546 = vmatpush1.msra.mxu0 0.0
    %2547 = vmatprep.subr.mxu0 0.0
    %2548 = vmatpush1.msra.mxu0 0.0
    %2549 = vmatprep.subr.mxu0 0.0
    %2550 = vmatpush1.msra.mxu0 0.0
    %2551 = vmatprep.subr.mxu0 0.0
    %2552 = vmatpush1.msra.mxu0 0.0
    %2553 = vmatprep.subr.mxu0 0.0
    %2554 = vmatpush1.msra.mxu0 0.0
    %2555 = vmatprep.subr.mxu0 0.0
    %2556 = vmatpush1.msra.mxu0 0.0
    %2557 = vmatprep.subr.mxu0 0.0
    %2558 = vmatpush1.msra.mxu0 0.0
    %2559 = vmatprep.subr.mxu0 0.0
    %2560 = vmatpush1.msra.mxu0 0.0
    %2561 = vmatprep.subr.mxu0 0.0
    %2562 = vmatpush1.msra.mxu0 0.0
    %2563 = vmatprep.subr.mxu0 0.0
    %2564 = vmatpush1.msra.mxu0 0.0
    %2565 = vmatprep.subr.mxu0 %v188
    %2566 = vmatpush1.msra.mxu0 %v187
    %2567 = vmatprep.subr.mxu0 %v186
    %2568 = vmatpush1.msra.mxu0 %v185
    %2569 = vmatprep.subr.mxu0 0.0
    %2570 = vmatpush2.msra.mxu0 0.0
    %2571 = vmatprep.subr.mxu0 0.0
    %2572 = vmatpush2.msra.mxu0 0.0
    %2573 = vmatprep.subr.mxu0 0.0
    %2574 = vmatpush2.msra.mxu0 0.0
    %2575 = vmatprep.subr.mxu0 0.0
    %2576 = vmatpush2.msra.mxu0 0.0
    %2577 = vmatprep.subr.mxu0 0.0
    %2578 = vmatpush2.msra.mxu0 0.0
    %2579 = vmatprep.subr.mxu0 0.0
    %2580 = vmatpush2.msra.mxu0 0.0
    %2581 = vmatprep.subr.mxu0 0.0
    %2582 = vmatpush2.msra.mxu0 0.0
    %2583 = vmatprep.subr.mxu0 0.0
    %2584 = vmatpush2.msra.mxu0 0.0
    %2585 = vmatprep.subr.mxu0 0.0
    %2586 = vmatpush2.msra.mxu0 0.0
    %2587 = vmatprep.subr.mxu0 0.0
    %2588 = vmatpush2.msra.mxu0 0.0
    %2589 = vmatprep.subr.mxu0 0.0
    %2590 = vmatpush2.msra.mxu0 0.0
    %2591 = vmatprep.subr.mxu0 0.0
    %2592 = vmatpush2.msra.mxu0 0.0
    %2593 = vmatprep.subr.mxu0 0.0
    %2594 = vmatpush2.msra.mxu0 0.0
    %2595 = vmatprep.subr.mxu0 0.0
    %2596 = vmatpush2.msra.mxu0 0.0
    %2597 = vmatprep.subr.mxu0 0.0
    %2598 = vmatpush2.msra.mxu0 0.0
    %2599 = vmatprep.subr.mxu0 0.0
    %2600 = vmatpush2.msra.mxu0 0.0
    %2601 = vmatprep.mubr.f32.mxu0 0.0
    %2602 = vmatmul.mubr.f32.gmra.mxu0 %v2535
    %v2603 = vpop.f32.mrf.mxu0
    %v2604 = vadd.f32 0.0, %v2603
    %v2605 = vpop.f32.mrf.mxu0
    %v2606 = vadd.f32 0.0, %v2605
    %2607 = vdwg.mxu0
    %v2608 = vlaneseq
    %v2609 = vshrl.u32 %v2608, 7
    %v2610 = vsub.s32 0, %v2609
    %v2611 = vrot.slane %v2530, %v2610
    %v2612 = vlaneseq
    %v2613 = vshrl.u32 %v2612, 7
    %v2614 = vsub.s32 0, %v2613
    %v2615 = vrot.slane %v2532, %v2614
    %v2616 = vmul.f32 %v2069, %v2611
    %v2617 = vmul.f32 %v2155, %v2615
    %v2618 = vlaneseq
    %v2619 = vshrl.u32 %v2618, 7
    %v2620 = vsub.s32 0, %v2619
    %v2621 = vrot.slane %v2604, %v2620
    %v2622 = vlaneseq
    %v2623 = vshrl.u32 %v2622, 7
    %v2624 = vsub.s32 0, %v2623
    %v2625 = vrot.slane %v2606, %v2624
    %v2626 = vadd.f32 %v2616, %v2621
    %v2627 = vadd.f32 %v2617, %v2625
    %v2628 = vld [vmem:[#allocation5 + $0x480] sm:$0xff]
    %v2629 = vld [vmem:[#allocation5 + $0x488] sm:$0xff]
    %v2630 = vld [vmem:[#allocation5 + $0x490] sm:$0xff]
    %v2631 = vld [vmem:[#allocation5 + $0x498] sm:$0xff]
    %v2632 = vld [vmem:[#allocation5 + $0x4a0] sm:$0xff]
    %v2633 = vld [vmem:[#allocation5 + $0x4a8] sm:$0xff]
    %v2634 = vld [vmem:[#allocation5 + $0x4b0] sm:$0xff]
    %v2635 = vld [vmem:[#allocation5 + $0x4b8] sm:$0xff]
    %v2636 = vld [vmem:[#allocation5 + $0x4c0] sm:$0xff]
    %v2637 = vld [vmem:[#allocation5 + $0x4c8] sm:$0xff]
    %v2638 = vld [vmem:[#allocation5 + $0x4d0] sm:$0xff]
    %v2639 = vld [vmem:[#allocation5 + $0x4d8] sm:$0xff]
    %v2640 = vld [vmem:[#allocation5 + $0x4e0] sm:$0xff]
    %v2641 = vld [vmem:[#allocation5 + $0x4e8] sm:$0xff]
    %v2642 = vld [vmem:[#allocation5 + $0x4f0] sm:$0xff]
    %v2643 = vld [vmem:[#allocation5 + $0x4f8] sm:$0xff]
    %v2644 = vld [vmem:[#allocation5 + $0x500] sm:$0xff]
    %v2645 = vld [vmem:[#allocation5 + $0x508] sm:$0xff]
    %v2646 = vld [vmem:[#allocation5 + $0x510] sm:$0xff]
    %v2647 = vld [vmem:[#allocation5 + $0x518] sm:$0xff]
    %v2648 = vld [vmem:[#allocation5 + $0x520] sm:$0xff]
    %v2649 = vld [vmem:[#allocation5 + $0x528] sm:$0xff]
    %v2650 = vld [vmem:[#allocation5 + $0x530] sm:$0xff]
    %v2651 = vld [vmem:[#allocation5 + $0x538] sm:$0xff]
    %v2652 = vld [vmem:[#allocation5 + $0x540] sm:$0xff]
    %v2653 = vld [vmem:[#allocation5 + $0x548] sm:$0xff]
    %v2654 = vld [vmem:[#allocation5 + $0x550] sm:$0x1]
    %v2655 = vlaneseq
    %v2656 = vshrl.u32 %v2655, 7
    %v2657 = vsub.s32 0, %v2656
    %v2658 = vrot.slane %v2654, %v2657
    %v2660 = vsel %vm589, %v2627, 0
    %2662 = vmatprep.subr.mxu0 0.0
    %2663 = vmatpush1.msra.mxu0 %v2643
    %2664 = vmatprep.subr.mxu0 0.0
    %2665 = vmatpush1.msra.mxu0 %v2642
    %2666 = vmatprep.subr.mxu0 0.0
    %2667 = vmatpush1.msra.mxu0 %v2641
    %2668 = vmatprep.subr.mxu0 0.0
    %2669 = vmatpush1.msra.mxu0 %v2640
    %2670 = vmatprep.subr.mxu0 0.0
    %2671 = vmatpush1.msra.mxu0 %v2639
    %2672 = vmatprep.subr.mxu0 0.0
    %2673 = vmatpush1.msra.mxu0 %v2638
    %2674 = vmatprep.subr.mxu0 0.0
    %2675 = vmatpush1.msra.mxu0 %v2637
    %2676 = vmatprep.subr.mxu0 0.0
    %2677 = vmatpush1.msra.mxu0 %v2636
    %2678 = vmatprep.subr.mxu0 0.0
    %2679 = vmatpush1.msra.mxu0 %v2635
    %2680 = vmatprep.subr.mxu0 0.0
    %2681 = vmatpush1.msra.mxu0 %v2634
    %2682 = vmatprep.subr.mxu0 0.0
    %2683 = vmatpush1.msra.mxu0 %v2633
    %2684 = vmatprep.subr.mxu0 0.0
    %2685 = vmatpush1.msra.mxu0 %v2632
    %2686 = vmatprep.subr.mxu0 0.0
    %2687 = vmatpush1.msra.mxu0 %v2631
    %2688 = vmatprep.subr.mxu0 0.0
    %2689 = vmatpush1.msra.mxu0 %v2630
    %2690 = vmatprep.subr.mxu0 0.0
    %2691 = vmatpush1.msra.mxu0 %v2629
    %2692 = vmatprep.subr.mxu0 0.0
    %2693 = vmatpush1.msra.mxu0 %v2628
    %2694 = vmatprep.subr.mxu0 0.0
    %2695 = vmatpush2.msra.mxu0 0.0
    %2696 = vmatprep.subr.mxu0 0.0
    %2697 = vmatpush2.msra.mxu0 0.0
    %2698 = vmatprep.subr.mxu0 0.0
    %2699 = vmatpush2.msra.mxu0 0.0
    %2700 = vmatprep.subr.mxu0 0.0
    %2701 = vmatpush2.msra.mxu0 0.0
    %2702 = vmatprep.subr.mxu0 0.0
    %2703 = vmatpush2.msra.mxu0 0.0
    %2704 = vmatprep.subr.mxu0 0.0
    %2705 = vmatpush2.msra.mxu0 0.0
    %2706 = vmatprep.subr.mxu0 0.0
    %2707 = vmatpush2.msra.mxu0 %v2653
    %2708 = vmatprep.subr.mxu0 0.0
    %2709 = vmatpush2.msra.mxu0 %v2652
    %2710 = vmatprep.subr.mxu0 0.0
    %2711 = vmatpush2.msra.mxu0 %v2651
    %2712 = vmatprep.subr.mxu0 0.0
    %2713 = vmatpush2.msra.mxu0 %v2650
    %2714 = vmatprep.subr.mxu0 0.0
    %2715 = vmatpush2.msra.mxu0 %v2649
    %2716 = vmatprep.subr.mxu0 0.0
    %2717 = vmatpush2.msra.mxu0 %v2648
    %2718 = vmatprep.subr.mxu0 0.0
    %2719 = vmatpush2.msra.mxu0 %v2647
    %2720 = vmatprep.subr.mxu0 0.0
    %2721 = vmatpush2.msra.mxu0 %v2646
    %2722 = vmatprep.subr.mxu0 0.0
    %2723 = vmatpush2.msra.mxu0 %v2645
    %2724 = vmatprep.subr.mxu0 0.0
    %2725 = vmatpush2.msra.mxu0 %v2644
    %2726 = vmatprep.mubr.f32.mxu0 %v2660
    %2727 = vmatmul.mubr.f32.gmra.mxu0 %v2626
    %v2728 = vpop.f32.mrf.mxu0
    %v2729 = vadd.f32 %v2658, %v2728
    %v2730 = vpop.f32.mrf.mxu0
    %2731 = vdwg.mxu0
    %v2732 = vtanh.pop %v2729
    %2733 = vst [vmem:[#allocation7] sm:$0xff] %v2732
    // Predicated region
    $region18: #{tpu_custom_call.1} parent=1 // pred_check
      _
    $region19: #{tpu_custom_call.1} parent=1 // pred_check_branch
      %2735 = sbr.rel (0) target = $region21
    $region20: #{tpu_custom_call.1} parent=1 // pred_region
      %s2737 = ssub.s32 128, 128
      %2738 = vsyncadd [#allocation4], %s2737
      %s2740 = sshll.u32 [#allocation7], 4
      %s2741 = int_to_ptr.vmem [resolvable:$true] %s2740
      %2743 = dma.vmem_to_hbm [thread:$0]  %s2741, 128, %s2, [#allocation4]
    $region21: #{tpu_custom_call.1} parent=1 // pred_fallthru
      _
    // Predicated region
    $region22: #{tpu_custom_call.1} parent=1 // pred_check
      _
    $region23: #{tpu_custom_call.1} parent=1 // pred_check_branch
      %2745 = sbr.rel (0) target = $region25
    $region24: #{tpu_custom_call.1} parent=1 // pred_region
      %2746 = dma.done [#allocation4], 128
    $region25: #{tpu_custom_call.1} parent=1 // pred_fallthru
      _
    %2747 = vsyncpa [#allocation3], 1
    %2748 = vsyncpa [#allocation6], 1
    %2749 = vsyncpa [#allocation4], 1

</llo_original>
